<compile_context>
chip_gen: v6e
topology: v6e:2x2x1
jax: 0.10.0
libtpu: 0.0.40
codegen_flags: <defaults>
</compile_context>

<pallas_src>
import functools

import jax
import jax.numpy as jnp
from jax.experimental import pallas as pl
from jax.experimental.pallas import tpu as pltpu

EPS = 1e-5
LANE = 128                               # TPU lane width
TM_DEFAULT = 512                         # im2col rows per grid step (mult of 16)
_VMEM_LIMIT_BYTES = 48 * 1024 * 1024     # stays inside v7x's 64 MiB/TC VMEM

_CPARAMS = pltpu.CompilerParams(
    dimension_semantics=("parallel",),
    vmem_limit_bytes=_VMEM_LIMIT_BYTES,
)


def _round_up(x, m):
    return ((x + m - 1) // m) * m


# ---------------------------------------------------------------------------
# Pallas kernels
# ---------------------------------------------------------------------------
def _stats(y):
    return jnp.concatenate(
        [jnp.sum(y, axis=0, keepdims=True),
         jnp.sum(y * y, axis=0, keepdims=True)], axis=0)


def _make_conv1_kernel(cin_pad, has_proj):
    """conv1 matmul (+ optional fused 1x1 projection shortcut) + BN stats.

    The projection shortcut's input is exactly the centre tap (kh=1, kw=1) of
    the conv1 3x3 im2col patches, i.e. columns [4*cin_pad : 5*cin_pad] of the
    patch tile already sitting in VMEM -> no separate HBM read for it.
    """
    if has_proj:
        def kernel(p_ref, w_ref, ws_ref, y_ref, st_ref, s_ref, sts_ref):
            p = p_ref[...]
            y = jnp.dot(p, w_ref[...], preferred_element_type=jnp.float32)
            y_ref[...] = y.astype(y_ref.dtype)          # bf16 writeback
            st_ref[...] = _stats(y)
            xs = p[:, 4 * cin_pad:5 * cin_pad]           # centre tap, lane-aligned
            s = jnp.dot(xs, ws_ref[...], preferred_element_type=jnp.float32)
            s_ref[...] = s
            sts_ref[...] = _stats(s)
        return kernel

    def kernel(p_ref, w_ref, y_ref, st_ref):
        y = jnp.dot(p_ref[...], w_ref[...], preferred_element_type=jnp.float32)
        y_ref[...] = y.astype(y_ref.dtype)
        st_ref[...] = _stats(y)
    return kernel


def _matmul_stats_kernel(p_ref, w_ref, y_ref, st_ref):
    """y = p @ w (bf16 operands, f32 accum) + per-tile channel sum / sumsq."""
    y = jnp.dot(p_ref[...], w_ref[...], preferred_element_type=jnp.float32)
    y_ref[...] = y
    st_ref[...] = _stats(y)


def _scale_shift_relu_kernel(y_ref, sc_ref, sh_ref, o_ref):
    """out = relu(y * scale + shift)   (folded BatchNorm + ReLU)."""
    o_ref[...] = jnp.maximum(
        y_ref[...] * sc_ref[...] + sh_ref[...], 0.0).astype(o_ref.dtype)


def _make_residual_kernel(has_proj, with_pre):
    """bn2(y2) + shortcut (projection-BN or identity), ReLU, optional preact."""
    if has_proj:
        def kernel(y_ref, s_ref, sc2_ref, sh2_ref, scs_ref, shs_ref, *out_refs):
            pre = (y_ref[...] * sc2_ref[...] + sh2_ref[...]
                   + s_ref[...] * scs_ref[...] + shs_ref[...])
            out_refs[0][...] = jnp.maximum(pre, 0.0)
            if with_pre:
                out_refs[1][...] = pre
    else:
        def kernel(y_ref, s_ref, sc2_ref, sh2_ref, *out_refs):
            pre = y_ref[...] * sc2_ref[...] + sh2_ref[...] + s_ref[...]
            out_refs[0][...] = jnp.maximum(pre, 0.0)
            if with_pre:
                out_refs[1][...] = pre
    return kernel


# ---------------------------------------------------------------------------
# pallas_call wrappers: 1-D grid over M, auto-pipelined, "parallel"
# ---------------------------------------------------------------------------
def _conv1_pass(patches, w1, wsc, tm, cin_pad):
    """conv1 (+ fused projection shortcut) matmul with BN stats."""
    mpad, k = patches.shape
    ppad = w1.shape[1]
    nt = mpad // tm
    tile_in = pl.BlockSpec((tm, k), lambda i: (i, 0))
    w_spec = pl.BlockSpec((k, ppad), lambda i: (0, 0))
    y_spec = pl.BlockSpec((tm, ppad), lambda i: (i, 0))
    st_spec = pl.BlockSpec((None, 2, ppad), lambda i: (i, 0, 0))
    has_proj = wsc is not None

    if has_proj:
        in_specs = [tile_in, w_spec,
                    pl.BlockSpec((cin_pad, ppad), lambda i: (0, 0))]
        args = (patches, w1, wsc)
        out_shape = (jax.ShapeDtypeStruct((mpad, ppad), jnp.bfloat16),
                     jax.ShapeDtypeStruct((nt, 2, ppad), jnp.float32),
                     jax.ShapeDtypeStruct((mpad, ppad), jnp.float32),
                     jax.ShapeDtypeStruct((nt, 2, ppad), jnp.float32))
        out_specs = (y_spec, st_spec, y_spec, st_spec)
    else:
        in_specs = [tile_in, w_spec]
        args = (patches, w1)
        out_shape = (jax.ShapeDtypeStruct((mpad, ppad), jnp.bfloat16),
                     jax.ShapeDtypeStruct((nt, 2, ppad), jnp.float32))
        out_specs = (y_spec, st_spec)

    return pl.pallas_call(
        _make_conv1_kernel(cin_pad, has_proj),
        out_shape=out_shape,
        grid_spec=pltpu.PrefetchScalarGridSpec(
            num_scalar_prefetch=0, grid=(nt,),
            in_specs=in_specs, out_specs=out_specs),
        compiler_params=_CPARAMS,
    )(*args)


def _conv_matmul_with_stats(patches, w, tm):
    mpad, k = patches.shape
    ppad = w.shape[1]
    nt = mpad // tm
    return pl.pallas_call(
        _matmul_stats_kernel,
        out_shape=(jax.ShapeDtypeStruct((mpad, ppad), jnp.float32),
                   jax.ShapeDtypeStruct((nt, 2, ppad), jnp.float32)),
        grid_spec=pltpu.PrefetchScalarGridSpec(
            num_scalar_prefetch=0,
            grid=(nt,),
            in_specs=[pl.BlockSpec((tm, k), lambda i: (i, 0)),
                      pl.BlockSpec((k, ppad), lambda i: (0, 0))],
            out_specs=(pl.BlockSpec((tm, ppad), lambda i: (i, 0)),
                       pl.BlockSpec((None, 2, ppad), lambda i: (i, 0, 0)))),
        compiler_params=_CPARAMS,
    )(patches, w)


def _bn_relu(y, scale, shift, tm, out_dtype):
    mpad, ppad = y.shape
    nt = mpad // tm
    return pl.pallas_call(
        _scale_shift_relu_kernel,
        out_shape=jax.ShapeDtypeStruct((mpad, ppad), out_dtype),
        grid_spec=pltpu.PrefetchScalarGridSpec(
            num_scalar_prefetch=0,
            grid=(nt,),
            in_specs=[pl.BlockSpec((tm, ppad), lambda i: (i, 0)),
                      pl.BlockSpec((1, ppad), lambda i: (0, 0)),
                      pl.BlockSpec((1, ppad), lambda i: (0, 0))],
            out_specs=pl.BlockSpec((tm, ppad), lambda i: (i, 0))),
        compiler_params=_CPARAMS,
    )(y, scale, shift)


def _residual_bn_relu(y2, s, sc2, sh2, scs, shs, *, has_proj, with_pre, tm):
    mpad, ppad = y2.shape
    nt = mpad // tm
    tile = pl.BlockSpec((tm, ppad), lambda i: (i, 0))
    row = pl.BlockSpec((1, ppad), lambda i: (0, 0))
    ins, in_specs = [y2, s, sc2, sh2], [tile, tile, row, row]
    if has_proj:
        ins += [scs, shs]
        in_specs += [row, row]
    n_out = 2 if with_pre else 1
    return pl.pallas_call(
        _make_residual_kernel(has_proj, with_pre),
        out_shape=tuple(jax.ShapeDtypeStruct((mpad, ppad), jnp.float32)
                        for _ in range(n_out)),
        grid_spec=pltpu.PrefetchScalarGridSpec(
            num_scalar_prefetch=0,
            grid=(nt,),
            in_specs=in_specs,
            out_specs=tuple(tile for _ in range(n_out))),
        compiler_params=_CPARAMS,
    )(*ins)


# ---------------------------------------------------------------------------
# Host-side glue: im2col, weight packing, BN fold
# ---------------------------------------------------------------------------
def _im2col(x_nhwc, stride):
    """3x3 / pad=1 patches, channel-fastest within each (kh, kw) tap."""
    n, h, w, c = x_nhwc.shape
    xp = jnp.pad(x_nhwc, ((0, 0), (1, 1), (1, 1), (0, 0)))
    ho = (h + 2 - 3) // stride + 1
    wo = (w + 2 - 3) // stride + 1
    cols = [xp[:, kh:kh + ho * stride:stride, kw:kw + wo * stride:stride, :]
            for kh in range(3) for kw in range(3)]
    return jnp.concatenate(cols, axis=-1), (n, ho, wo)


def _pack_w3x3(w_oihw, cin_pad, cout_pad):
    cout, cin = w_oihw.shape[:2]
    wt = jnp.transpose(w_oihw, (2, 3, 1, 0))                      # (3,3,ci,co)
    wt = jnp.pad(wt, ((0, 0), (0, 0), (0, cin_pad - cin), (0, cout_pad - cout)))
    return wt.reshape(9 * cin_pad, cout_pad).astype(jnp.bfloat16)


def _pack_w1x1(w_oihw, cin_pad, cout_pad):
    cout, cin = w_oihw.shape[:2]
    wt = jnp.pad(w_oihw[:, :, 0, 0].T,
                 ((0, cin_pad - cin), (0, cout_pad - cout)))
    return wt.astype(jnp.bfloat16)


def _bn_scale_shift(st_partials, m_true, gamma, beta):
    """Reduce per-tile partials and fold training-mode BN into (scale, shift)."""
    ppad = st_partials.shape[-1]
    total = jnp.sum(st_partials, axis=0)                          # (2, ppad)
    mean = total[0] / m_true
    var = jnp.maximum(total[1] / m_true - mean * mean, 0.0)
    g = jnp.pad(gamma, (0, ppad - gamma.shape[0]))                # padded ch -> 0
    b = jnp.pad(beta, (0, ppad - beta.shape[0]))
    scale = g * jax.lax.rsqrt(var + EPS)
    shift = b - mean * scale
    return scale.reshape(1, ppad), shift.reshape(1, ppad)


def init_basic_block_params(key, in_planes, planes, stride):
    k1, k2, k3 = jax.random.split(key, 3)
    params = {
        "w1": 0.1 * jax.random.normal(k1, (planes, in_planes, 3, 3), jnp.float32),
        "g1": jnp.ones((planes,), jnp.float32),
        "b1": jnp.zeros((planes,), jnp.float32),
        "w2": 0.1 * jax.random.normal(k2, (planes, planes, 3, 3), jnp.float32),
        "g2": jnp.ones((planes,), jnp.float32),
        "b2": jnp.zeros((planes,), jnp.float32),
    }
    if stride != 1 or in_planes != planes:
        params["wsc"] = 0.1 * jax.random.normal(
            k3, (planes, in_planes, 1, 1), jnp.float32)
        params["gsc"] = jnp.ones((planes,), jnp.float32)
        params["bsc"] = jnp.zeros((planes,), jnp.float32)
    return params


# ---------------------------------------------------------------------------
# Forward pass (NCHW in / NCHW out, matching the PyTorch module)
# ---------------------------------------------------------------------------
@functools.partial(jax.jit, static_argnames=("stride", "is_last", "tm"))
def basic_block_forward(x_nchw, params, *, stride=1, is_last=False,
                        tm=TM_DEFAULT):
    x = jnp.transpose(x_nchw, (0, 2, 3, 1)).astype(jnp.float32)   # NHWC
    n, h, w, cin = x.shape
    planes = params["w1"].shape[0]
    has_proj = "wsc" in params

    cpad = _round_up(cin, LANE)
    ppad = _round_up(planes, LANE)
    xp = jnp.pad(x, ((0, 0), (0, 0), (0, 0), (0, cpad - cin)))    # lane-pad chans

    # ---- conv1 (3x3, stride) [+ fused 1x1 projection shortcut] -------------
    # TODO(synk): replace host-side im2col (9x activation blow-up) with an
    # in-kernel halo + shifted-matmul conv to cut HBM traffic further.
    p1, (_, ho, wo) = _im2col(xp.astype(jnp.bfloat16), stride)
    m = n * ho * wo
    tm = min(tm, _round_up(m, 16))          # bf16 sublane packing -> mult of 16
    mpad = _round_up(m, tm)
    p1 = jnp.pad(p1.reshape(m, 9 * cpad), ((0, mpad - m), (0, 0)))

    w1p = _pack_w3x3(params["w1"], cpad, ppad)
    if has_proj:
        wscp = _pack_w1x1(params["wsc"], cpad, ppad)
        y1, st1, s, st_sc = _conv1_pass(p1, w1p, wscp, tm, cpad)
        scs, shs = _bn_scale_shift(st_sc, m, params["gsc"], params["bsc"])
    else:
        y1, st1 = _conv1_pass(p1, w1p, None, tm, cpad)
        # identity path: cin == planes, so cpad == ppad (residual add aligned)
        s = jnp.pad(xp.reshape(m, cpad), ((0, mpad - m), (0, 0)))
        scs = shs = None

    # ---- bn1 + relu (folded scale/shift, bf16 in / bf16 out) ---------------
    sc1, sh1 = _bn_scale_shift(st1, m, params["g1"], params["b1"])
    out1 = _bn_relu(y1, sc1, sh1, tm, jnp.bfloat16)               # (mpad, ppad)

    # ---- conv2 (3x3, stride 1) + bn2 ---------------------------------------
    p2, _ = _im2col(out1[:m].reshape(n, ho, wo, ppad), 1)
    p2 = jnp.pad(p2.reshape(m, 9 * ppad), ((0, mpad - m), (0, 0)))
    y2, st2 = _conv_matmul_with_stats(
        p2, _pack_w3x3(params["w2"], ppad, ppad), tm)
    sc2, sh2 = _bn_scale_shift(st2, m, params["g2"], params["b2"])

    # ---- residual add + relu (+ optional preact) ----------------------------
    outs = _residual_bn_relu(y2, s, sc2, sh2, scs, shs,
                             has_proj=has_proj, with_pre=is_last, tm=tm)

    def to_nchw(flat):
        return jnp.transpose(flat[:m, :planes].reshape(n, ho, wo, planes),
                             (0, 3, 1, 2))

    out = to_nchw(outs[0])
    if is_last:
        return out, to_nchw(outs[1])
    return out


# ---------------------------------------------------------------------------
# Pure-JAX reference (mirrors the PyTorch module, training-mode BN, f32)
# ---------------------------------------------------------------------------
def _conv_ref(x_nhwc, w_oihw, stride, pad):
    return jax.lax.conv_general_dilated(
        x_nhwc, jnp.transpose(w_oihw, (2, 3, 1, 0)),
        window_strides=(stride, stride), padding=[(pad, pad), (pad, pad)],
        dimension_numbers=("NHWC", "HWIO", "NHWC"))


def _bn_ref(y, g, b):
    m = jnp.mean(y, axis=(0, 1, 2), keepdims=True)
    v = jnp.mean(jnp.square(y - m), axis=(0, 1, 2), keepdims=True)
    return (y - m) * jax.lax.rsqrt(v + EPS) * g + b


def basic_block_ref(x_nchw, params, *, stride=1, is_last=False):
    x = jnp.transpose(x_nchw, (0, 2, 3, 1)).astype(jnp.float32)
    out = jnp.maximum(_bn_ref(_conv_ref(x, params["w1"], stride, 1),
                              params["g1"], params["b1"]), 0.0)
    out = _bn_ref(_conv_ref(out, params["w2"], 1, 1), params["g2"], params["b2"])
    if "wsc" in params:
        sc = _bn_ref(_conv_ref(x, params["wsc"], stride, 0),
                     params["gsc"], params["bsc"])
    else:
        sc = x
    pre = out + sc
    out = jnp.maximum(pre, 0.0)
    out = jnp.transpose(out, (0, 3, 1, 2))
    pre = jnp.transpose(pre, (0, 3, 1, 2))
    return (out, pre) if is_last else out


# ---------------------------------------------------------------------------
if __name__ == "__main__":
    key = jax.random.PRNGKey(0)
    kx, kp1, kp2 = jax.random.split(key, 3)

    # Case 1: projection shortcut (stride=2, channel change), is_last=True.
    N, CIN, H, W, PLANES, STRIDE = 2, 4, 16, 16, 8, 2
    x = jax.random.normal(kx, (N, CIN, H, W), jnp.float32)
    params = init_basic_block_params(kp1, CIN, PLANES, STRIDE)

    out, preact = basic_block_forward(x, params, stride=STRIDE, is_last=True)
    out = jax.block_until_ready(out)
    preact = jax.block_until_ready(preact)
    out_r, pre_r = basic_block_ref(x, params, stride=STRIDE, is_last=True)
    assert out.shape == (N, PLANES, H // STRIDE, W // STRIDE)
    assert preact.shape == (N, PLANES, H // STRIDE, W // STRIDE)
    # bf16 matmul operands / bf16 y1 writeback (f32 accumulation & BN stats)
    # -> slightly looser tolerance.
    assert jnp.allclose(out, out_r, atol=3e-2, rtol=3e-2)
    assert jnp.allclose(preact, pre_r, atol=3e-2, rtol=3e-2)

    # Case 2: identity shortcut (stride=1, same channels), is_last=False.
    params2 = init_basic_block_params(kp2, PLANES, PLANES, 1)
    x2 = jax.random.normal(kx, (N, PLANES, H, W), jnp.float32)
    out2 = jax.block_until_ready(
        basic_block_forward(x2, params2, stride=1, is_last=False))
    out2_r = basic_block_ref(x2, params2, stride=1, is_last=False)
    assert out2.shape == (N, PLANES, H, W)
    assert jnp.allclose(out2, out2_r, atol=3e-2, rtol=3e-2)

    print("KERNEL_OK")
</pallas_src>

<mosaic_0001>
module attributes {stable_mosaic.version = 11 : i64} {
  func.func @kernel(%arg0: i32, %arg1: memref<128x1152xbf16, #tpu.memory_space<vmem>>, %arg2: memref<1152x128xbf16, #tpu.memory_space<vmem>>, %arg3: memref<128x128xbf16, #tpu.memory_space<vmem>>, %arg4: memref<128x128xbf16, #tpu.memory_space<vmem>>, %arg5: memref<1x2x128xf32, #tpu.memory_space<vmem>>, %arg6: memref<128x128xf32, #tpu.memory_space<vmem>>, %arg7: memref<1x2x128xf32, #tpu.memory_space<vmem>>) attributes {dimension_semantics = [#tpu.dimension_semantics<parallel>], iteration_bounds = array<i64: 1>, scalar_prefetch = 0 : i64, scratch_operands = 0 : i64, tpu.core_type = #tpu.core_type<tc>, window_params = [{transform_indices = @transform_0, window_bounds = array<i64: 128, 1152>}, {pipeline_mode = #tpu.pipeline_mode<synchronous>, transform_indices = @transform_1, window_bounds = array<i64: 1152, 128>}, {pipeline_mode = #tpu.pipeline_mode<synchronous>, transform_indices = @transform_2, window_bounds = array<i64: 128, 128>}, {transform_indices = @transform_3, window_bounds = array<i64: 128, 128>}, {transform_indices = @transform_4, window_bounds = array<i64: 1, 2, 128>}, {transform_indices = @transform_5, window_bounds = array<i64: 128, 128>}, {transform_indices = @transform_6, window_bounds = array<i64: 1, 2, 128>}]} {
    %c0 = arith.constant 0 : index
    %c0_0 = arith.constant 0 : index
    %0 = vector.load %arg1[%c0, %c0_0] : memref<128x1152xbf16, #tpu.memory_space<vmem>>, vector<128x1152xbf16>
    %c0_1 = arith.constant 0 : index
    %c0_2 = arith.constant 0 : index
    %1 = vector.load %arg2[%c0_1, %c0_2] : memref<1152x128xbf16, #tpu.memory_space<vmem>>, vector<1152x128xbf16>
    %cst = arith.constant dense<0.000000e+00> : vector<128x128xf32>
    %2 = tpu.matmul %0, %1, %cst {dimension_numbers = #tpu.dot_dimension_numbers<[1], [0], [0], [1], [0, 0, 1, 1], [], []>} : vector<128x1152xbf16>, vector<1152x128xbf16>, vector<128x128xf32> -> vector<128x128xf32>
    %3 = arith.truncf %2 : vector<128x128xf32> to vector<128x128xbf16>
    %c0_3 = arith.constant 0 : index
    %c0_4 = arith.constant 0 : index
    %4 = vector.load %arg4[%c0_3, %c0_4] : memref<128x128xbf16, #tpu.memory_space<vmem>>, vector<128x128xbf16>
    tpu.vector_store %arg4[%c0_3, %c0_4], %3 {strides = array<i32>} : memref<128x128xbf16, #tpu.memory_space<vmem>>, vector<128x128xbf16>,
    %cst_5 = arith.constant dense<0.000000e+00> : vector<128xf32>
    %5 = vector.multi_reduction <add>, %2, %cst_5 [0] : vector<128x128xf32> to vector<128xf32>
    %6 = vector.shape_cast %5 : vector<128xf32> to vector<1x128xf32>
    %7 = arith.mulf %2, %2 : vector<128x128xf32>
    %cst_6 = arith.constant dense<0.000000e+00> : vector<128xf32>
    %8 = vector.multi_reduction <add>, %7, %cst_6 [0] : vector<128x128xf32> to vector<128xf32>
    %9 = vector.shape_cast %8 : vector<128xf32> to vector<1x128xf32>
    %10 = tpu.concatenate %6, %9 in 0 : vector<1x128xf32>, vector<1x128xf32> -> vector<2x128xf32>
    %c0_7 = arith.constant 0 : index
    %c0_8 = arith.constant 0 : index
    %c0_9 = arith.constant 0 : index
    %11 = vector.load %arg5[%c0_7, %c0_8, %c0_9] : memref<1x2x128xf32, #tpu.memory_space<vmem>>, vector<1x2x128xf32>
    %12 = vector.shape_cast %11 : vector<1x2x128xf32> to vector<2x128xf32>
    %13 = vector.shape_cast %10 : vector<2x128xf32> to vector<1x2x128xf32>
    tpu.vector_store %arg5[%c0_7, %c0_8, %c0_9], %13 {strides = array<i32>} : memref<1x2x128xf32, #tpu.memory_space<vmem>>, vector<1x2x128xf32>,
    %14 = vector.extract_strided_slice %0 {offsets = [0, 512], sizes = [128, 128], strides = [1, 1]} : vector<128x1152xbf16> to vector<128x128xbf16>
    %c0_10 = arith.constant 0 : index
    %c0_11 = arith.constant 0 : index
    %15 = vector.load %arg3[%c0_10, %c0_11] : memref<128x128xbf16, #tpu.memory_space<vmem>>, vector<128x128xbf16>
    %cst_12 = arith.constant dense<0.000000e+00> : vector<128x128xf32>
    %16 = tpu.matmul %14, %15, %cst_12 {dimension_numbers = #tpu.dot_dimension_numbers<[1], [0], [0], [1], [0, 0, 1, 1], [], []>} : vector<128x128xbf16>, vector<128x128xbf16>, vector<128x128xf32> -> vector<128x128xf32>
    %c0_13 = arith.constant 0 : index
    %c0_14 = arith.constant 0 : index
    %17 = vector.load %arg6[%c0_13, %c0_14] : memref<128x128xf32, #tpu.memory_space<vmem>>, vector<128x128xf32>
    tpu.vector_store %arg6[%c0_13, %c0_14], %16 {strides = array<i32>} : memref<128x128xf32, #tpu.memory_space<vmem>>, vector<128x128xf32>,
    %cst_15 = arith.constant dense<0.000000e+00> : vector<128xf32>
    %18 = vector.multi_reduction <add>, %16, %cst_15 [0] : vector<128x128xf32> to vector<128xf32>
    %19 = vector.shape_cast %18 : vector<128xf32> to vector<1x128xf32>
    %20 = arith.mulf %16, %16 : vector<128x128xf32>
    %cst_16 = arith.constant dense<0.000000e+00> : vector<128xf32>
    %21 = vector.multi_reduction <add>, %20, %cst_16 [0] : vector<128x128xf32> to vector<128xf32>
    %22 = vector.shape_cast %21 : vector<128xf32> to vector<1x128xf32>
    %23 = tpu.concatenate %19, %22 in 0 : vector<1x128xf32>, vector<1x128xf32> -> vector<2x128xf32>
    %c0_17 = arith.constant 0 : index
    %c0_18 = arith.constant 0 : index
    %c0_19 = arith.constant 0 : index
    %24 = vector.load %arg7[%c0_17, %c0_18, %c0_19] : memref<1x2x128xf32, #tpu.memory_space<vmem>>, vector<1x2x128xf32>
    %25 = vector.shape_cast %24 : vector<1x2x128xf32> to vector<2x128xf32>
    %26 = vector.shape_cast %23 : vector<2x128xf32> to vector<1x2x128xf32>
    tpu.vector_store %arg7[%c0_17, %c0_18, %c0_19], %26 {strides = array<i32>} : memref<1x2x128xf32, #tpu.memory_space<vmem>>, vector<1x2x128xf32>,
    return
  }
  func.func @transform_0(%arg0: i32) -> (i32, i32) {
    %c0_i32 = arith.constant 0 : i32
    %c0_i32_0 = arith.constant 0 : i32
    return %arg0, %c0_i32 : i32, i32
  }
  func.func @transform_1(%arg0: i32) -> (i32, i32) {
    %c0_i32 = arith.constant 0 : i32
    %c0_i32_0 = arith.constant 0 : i32
    %c0_i32_1 = arith.constant 0 : i32
    return %c0_i32, %c0_i32_0 : i32, i32
  }
  func.func @transform_2(%arg0: i32) -> (i32, i32) {
    %c0_i32 = arith.constant 0 : i32
    %c0_i32_0 = arith.constant 0 : i32
    %c0_i32_1 = arith.constant 0 : i32
    return %c0_i32, %c0_i32_0 : i32, i32
  }
  func.func @transform_3(%arg0: i32) -> (i32, i32) {
    %c0_i32 = arith.constant 0 : i32
    %c0_i32_0 = arith.constant 0 : i32
    return %arg0, %c0_i32 : i32, i32
  }
  func.func @transform_4(%arg0: i32) -> (i32, i32, i32) {
    %c0_i32 = arith.constant 0 : i32
    %c0_i32_0 = arith.constant 0 : i32
    %c0_i32_1 = arith.constant 0 : i32
    return %arg0, %c0_i32, %c0_i32_0 : i32, i32, i32
  }
  func.func @transform_5(%arg0: i32) -> (i32, i32) {
    %c0_i32 = arith.constant 0 : i32
    %c0_i32_0 = arith.constant 0 : i32
    return %arg0, %c0_i32 : i32, i32
  }
  func.func @transform_6(%arg0: i32) -> (i32, i32, i32) {
    %c0_i32 = arith.constant 0 : i32
    %c0_i32_0 = arith.constant 0 : i32
    %c0_i32_1 = arith.constant 0 : i32
    return %arg0, %c0_i32, %c0_i32_0 : i32, i32, i32
  }
}

module attributes {stable_mosaic.version = 11 : i64} {
  func.func @_scale_shift_relu_kernel(%arg0: i32, %arg1: memref<128x128xbf16, #tpu.memory_space<vmem>>, %arg2: memref<1x128xf32, #tpu.memory_space<vmem>>, %arg3: memref<1x128xf32, #tpu.memory_space<vmem>>, %arg4: memref<128x128xbf16, #tpu.memory_space<vmem>>) attributes {dimension_semantics = [#tpu.dimension_semantics<parallel>], iteration_bounds = array<i64: 1>, scalar_prefetch = 0 : i64, scratch_operands = 0 : i64, tpu.core_type = #tpu.core_type<tc>, window_params = [{transform_indices = @transform_0, window_bounds = array<i64: 128, 128>}, {pipeline_mode = #tpu.pipeline_mode<synchronous>, transform_indices = @transform_1, window_bounds = array<i64: 1, 128>}, {pipeline_mode = #tpu.pipeline_mode<synchronous>, transform_indices = @transform_2, window_bounds = array<i64: 1, 128>}, {transform_indices = @transform_3, window_bounds = array<i64: 128, 128>}]} {
    %c0 = arith.constant 0 : index
    %c0_0 = arith.constant 0 : index
    %0 = vector.load %arg1[%c0, %c0_0] : memref<128x128xbf16, #tpu.memory_space<vmem>>, vector<128x128xbf16>
    %c0_1 = arith.constant 0 : index
    %c0_2 = arith.constant 0 : index
    %1 = vector.load %arg2[%c0_1, %c0_2] : memref<1x128xf32, #tpu.memory_space<vmem>>, vector<1x128xf32>
    %2 = arith.extf %0 : vector<128x128xbf16> to vector<128x128xf32>
    %3 = vector.broadcast %1 : vector<1x128xf32> to vector<128x128xf32>
    %4 = arith.mulf %2, %3 : vector<128x128xf32>
    %c0_3 = arith.constant 0 : index
    %c0_4 = arith.constant 0 : index
    %5 = vector.load %arg3[%c0_3, %c0_4] : memref<1x128xf32, #tpu.memory_space<vmem>>, vector<1x128xf32>
    %6 = vector.broadcast %5 : vector<1x128xf32> to vector<128x128xf32>
    %7 = arith.addf %4, %6 : vector<128x128xf32>
    %cst = arith.constant 0.000000e+00 : f32
    %8 = vector.broadcast %cst : f32 to vector<128x128xf32>
    %9 = arith.maximumf %7, %8 : vector<128x128xf32>
    %10 = arith.truncf %9 : vector<128x128xf32> to vector<128x128xbf16>
    %c0_5 = arith.constant 0 : index
    %c0_6 = arith.constant 0 : index
    %11 = vector.load %arg4[%c0_5, %c0_6] : memref<128x128xbf16, #tpu.memory_space<vmem>>, vector<128x128xbf16>
    tpu.vector_store %arg4[%c0_5, %c0_6], %10 {strides = array<i32>} : memref<128x128xbf16, #tpu.memory_space<vmem>>, vector<128x128xbf16>,
    return
  }
  func.func @transform_0(%arg0: i32) -> (i32, i32) {
    %c0_i32 = arith.constant 0 : i32
    %c0_i32_0 = arith.constant 0 : i32
    return %arg0, %c0_i32 : i32, i32
  }
  func.func @transform_1(%arg0: i32) -> (i32, i32) {
    %c0_i32 = arith.constant 0 : i32
    %c0_i32_0 = arith.constant 0 : i32
    %c0_i32_1 = arith.constant 0 : i32
    return %c0_i32, %c0_i32_0 : i32, i32
  }
  func.func @transform_2(%arg0: i32) -> (i32, i32) {
    %c0_i32 = arith.constant 0 : i32
    %c0_i32_0 = arith.constant 0 : i32
    %c0_i32_1 = arith.constant 0 : i32
    return %c0_i32, %c0_i32_0 : i32, i32
  }
  func.func @transform_3(%arg0: i32) -> (i32, i32) {
    %c0_i32 = arith.constant 0 : i32
    %c0_i32_0 = arith.constant 0 : i32
    return %arg0, %c0_i32 : i32, i32
  }
}

module attributes {stable_mosaic.version = 11 : i64} {
  func.func @_matmul_stats_kernel(%arg0: i32, %arg1: memref<128x1152xbf16, #tpu.memory_space<vmem>>, %arg2: memref<1152x128xbf16, #tpu.memory_space<vmem>>, %arg3: memref<128x128xf32, #tpu.memory_space<vmem>>, %arg4: memref<1x2x128xf32, #tpu.memory_space<vmem>>) attributes {dimension_semantics = [#tpu.dimension_semantics<parallel>], iteration_bounds = array<i64: 1>, scalar_prefetch = 0 : i64, scratch_operands = 0 : i64, tpu.core_type = #tpu.core_type<tc>, window_params = [{transform_indices = @transform_0, window_bounds = array<i64: 128, 1152>}, {pipeline_mode = #tpu.pipeline_mode<synchronous>, transform_indices = @transform_1, window_bounds = array<i64: 1152, 128>}, {transform_indices = @transform_2, window_bounds = array<i64: 128, 128>}, {transform_indices = @transform_3, window_bounds = array<i64: 1, 2, 128>}]} {
    %c0 = arith.constant 0 : index
    %c0_0 = arith.constant 0 : index
    %0 = vector.load %arg1[%c0, %c0_0] : memref<128x1152xbf16, #tpu.memory_space<vmem>>, vector<128x1152xbf16>
    %c0_1 = arith.constant 0 : index
    %c0_2 = arith.constant 0 : index
    %1 = vector.load %arg2[%c0_1, %c0_2] : memref<1152x128xbf16, #tpu.memory_space<vmem>>, vector<1152x128xbf16>
    %cst = arith.constant dense<0.000000e+00> : vector<128x128xf32>
    %2 = tpu.matmul %0, %1, %cst {dimension_numbers = #tpu.dot_dimension_numbers<[1], [0], [0], [1], [0, 0, 1, 1], [], []>} : vector<128x1152xbf16>, vector<1152x128xbf16>, vector<128x128xf32> -> vector<128x128xf32>
    %c0_3 = arith.constant 0 : index
    %c0_4 = arith.constant 0 : index
    %3 = vector.load %arg3[%c0_3, %c0_4] : memref<128x128xf32, #tpu.memory_space<vmem>>, vector<128x128xf32>
    tpu.vector_store %arg3[%c0_3, %c0_4], %2 {strides = array<i32>} : memref<128x128xf32, #tpu.memory_space<vmem>>, vector<128x128xf32>,
    %cst_5 = arith.constant dense<0.000000e+00> : vector<128xf32>
    %4 = vector.multi_reduction <add>, %2, %cst_5 [0] : vector<128x128xf32> to vector<128xf32>
    %5 = vector.shape_cast %4 : vector<128xf32> to vector<1x128xf32>
    %6 = arith.mulf %2, %2 : vector<128x128xf32>
    %cst_6 = arith.constant dense<0.000000e+00> : vector<128xf32>
    %7 = vector.multi_reduction <add>, %6, %cst_6 [0] : vector<128x128xf32> to vector<128xf32>
    %8 = vector.shape_cast %7 : vector<128xf32> to vector<1x128xf32>
    %9 = tpu.concatenate %5, %8 in 0 : vector<1x128xf32>, vector<1x128xf32> -> vector<2x128xf32>
    %c0_7 = arith.constant 0 : index
    %c0_8 = arith.constant 0 : index
    %c0_9 = arith.constant 0 : index
    %10 = vector.load %arg4[%c0_7, %c0_8, %c0_9] : memref<1x2x128xf32, #tpu.memory_space<vmem>>, vector<1x2x128xf32>
    %11 = vector.shape_cast %10 : vector<1x2x128xf32> to vector<2x128xf32>
    %12 = vector.shape_cast %9 : vector<2x128xf32> to vector<1x2x128xf32>
    tpu.vector_store %arg4[%c0_7, %c0_8, %c0_9], %12 {strides = array<i32>} : memref<1x2x128xf32, #tpu.memory_space<vmem>>, vector<1x2x128xf32>,
    return
  }
  func.func @transform_0(%arg0: i32) -> (i32, i32) {
    %c0_i32 = arith.constant 0 : i32
    %c0_i32_0 = arith.constant 0 : i32
    return %arg0, %c0_i32 : i32, i32
  }
  func.func @transform_1(%arg0: i32) -> (i32, i32) {
    %c0_i32 = arith.constant 0 : i32
    %c0_i32_0 = arith.constant 0 : i32
    %c0_i32_1 = arith.constant 0 : i32
    return %c0_i32, %c0_i32_0 : i32, i32
  }
  func.func @transform_2(%arg0: i32) -> (i32, i32) {
    %c0_i32 = arith.constant 0 : i32
    %c0_i32_0 = arith.constant 0 : i32
    return %arg0, %c0_i32 : i32, i32
  }
  func.func @transform_3(%arg0: i32) -> (i32, i32, i32) {
    %c0_i32 = arith.constant 0 : i32
    %c0_i32_0 = arith.constant 0 : i32
    %c0_i32_1 = arith.constant 0 : i32
    return %arg0, %c0_i32, %c0_i32_0 : i32, i32, i32
  }
}

module attributes {stable_mosaic.version = 11 : i64} {
  func.func @kernel(%arg0: i32, %arg1: memref<128x128xf32, #tpu.memory_space<vmem>>, %arg2: memref<128x128xf32, #tpu.memory_space<vmem>>, %arg3: memref<1x128xf32, #tpu.memory_space<vmem>>, %arg4: memref<1x128xf32, #tpu.memory_space<vmem>>, %arg5: memref<1x128xf32, #tpu.memory_space<vmem>>, %arg6: memref<1x128xf32, #tpu.memory_space<vmem>>, %arg7: memref<128x128xf32, #tpu.memory_space<vmem>>, %arg8: memref<128x128xf32, #tpu.memory_space<vmem>>) attributes {dimension_semantics = [#tpu.dimension_semantics<parallel>], iteration_bounds = array<i64: 1>, scalar_prefetch = 0 : i64, scratch_operands = 0 : i64, tpu.core_type = #tpu.core_type<tc>, window_params = [{transform_indices = @transform_0, window_bounds = array<i64: 128, 128>}, {transform_indices = @transform_1, window_bounds = array<i64: 128, 128>}, {pipeline_mode = #tpu.pipeline_mode<synchronous>, transform_indices = @transform_2, window_bounds = array<i64: 1, 128>}, {pipeline_mode = #tpu.pipeline_mode<synchronous>, transform_indices = @transform_3, window_bounds = array<i64: 1, 128>}, {pipeline_mode = #tpu.pipeline_mode<synchronous>, transform_indices = @transform_4, window_bounds = array<i64: 1, 128>}, {pipeline_mode = #tpu.pipeline_mode<synchronous>, transform_indices = @transform_5, window_bounds = array<i64: 1, 128>}, {transform_indices = @transform_6, window_bounds = array<i64: 128, 128>}, {transform_indices = @transform_7, window_bounds = array<i64: 128, 128>}]} {
    %c0 = arith.constant 0 : index
    %c0_0 = arith.constant 0 : index
    %0 = vector.load %arg1[%c0, %c0_0] : memref<128x128xf32, #tpu.memory_space<vmem>>, vector<128x128xf32>
    %c0_1 = arith.constant 0 : index
    %c0_2 = arith.constant 0 : index
    %1 = vector.load %arg3[%c0_1, %c0_2] : memref<1x128xf32, #tpu.memory_space<vmem>>, vector<1x128xf32>
    %2 = vector.broadcast %1 : vector<1x128xf32> to vector<128x128xf32>
    %3 = arith.mulf %0, %2 : vector<128x128xf32>
    %c0_3 = arith.constant 0 : index
    %c0_4 = arith.constant 0 : index
    %4 = vector.load %arg4[%c0_3, %c0_4] : memref<1x128xf32, #tpu.memory_space<vmem>>, vector<1x128xf32>
    %5 = vector.broadcast %4 : vector<1x128xf32> to vector<128x128xf32>
    %6 = arith.addf %3, %5 : vector<128x128xf32>
    %c0_5 = arith.constant 0 : index
    %c0_6 = arith.constant 0 : index
    %7 = vector.load %arg2[%c0_5, %c0_6] : memref<128x128xf32, #tpu.memory_space<vmem>>, vector<128x128xf32>
    %c0_7 = arith.constant 0 : index
    %c0_8 = arith.constant 0 : index
    %8 = vector.load %arg5[%c0_7, %c0_8] : memref<1x128xf32, #tpu.memory_space<vmem>>, vector<1x128xf32>
    %9 = vector.broadcast %8 : vector<1x128xf32> to vector<128x128xf32>
    %10 = arith.mulf %7, %9 : vector<128x128xf32>
    %11 = arith.addf %6, %10 : vector<128x128xf32>
    %c0_9 = arith.constant 0 : index
    %c0_10 = arith.constant 0 : index
    %12 = vector.load %arg6[%c0_9, %c0_10] : memref<1x128xf32, #tpu.memory_space<vmem>>, vector<1x128xf32>
    %13 = vector.broadcast %12 : vector<1x128xf32> to vector<128x128xf32>
    %14 = arith.addf %11, %13 : vector<128x128xf32>
    %cst = arith.constant 0.000000e+00 : f32
    %15 = vector.broadcast %cst : f32 to vector<128x128xf32>
    %16 = arith.maximumf %14, %15 : vector<128x128xf32>
    %c0_11 = arith.constant 0 : index
    %c0_12 = arith.constant 0 : index
    %17 = vector.load %arg7[%c0_11, %c0_12] : memref<128x128xf32, #tpu.memory_space<vmem>>, vector<128x128xf32>
    tpu.vector_store %arg7[%c0_11, %c0_12], %16 {strides = array<i32>} : memref<128x128xf32, #tpu.memory_space<vmem>>, vector<128x128xf32>,
    %c0_13 = arith.constant 0 : index
    %c0_14 = arith.constant 0 : index
    %18 = vector.load %arg8[%c0_13, %c0_14] : memref<128x128xf32, #tpu.memory_space<vmem>>, vector<128x128xf32>
    tpu.vector_store %arg8[%c0_13, %c0_14], %14 {strides = array<i32>} : memref<128x128xf32, #tpu.memory_space<vmem>>, vector<128x128xf32>,
    return
  }
  func.func @transform_0(%arg0: i32) -> (i32, i32) {
    %c0_i32 = arith.constant 0 : i32
    %c0_i32_0 = arith.constant 0 : i32
    return %arg0, %c0_i32 : i32, i32
  }
  func.func @transform_1(%arg0: i32) -> (i32, i32) {
    %c0_i32 = arith.constant 0 : i32
    %c0_i32_0 = arith.constant 0 : i32
    return %arg0, %c0_i32 : i32, i32
  }
  func.func @transform_2(%arg0: i32) -> (i32, i32) {
    %c0_i32 = arith.constant 0 : i32
    %c0_i32_0 = arith.constant 0 : i32
    %c0_i32_1 = arith.constant 0 : i32
    return %c0_i32, %c0_i32_0 : i32, i32
  }
  func.func @transform_3(%arg0: i32) -> (i32, i32) {
    %c0_i32 = arith.constant 0 : i32
    %c0_i32_0 = arith.constant 0 : i32
    %c0_i32_1 = arith.constant 0 : i32
    return %c0_i32, %c0_i32_0 : i32, i32
  }
  func.func @transform_4(%arg0: i32) -> (i32, i32) {
    %c0_i32 = arith.constant 0 : i32
    %c0_i32_0 = arith.constant 0 : i32
    %c0_i32_1 = arith.constant 0 : i32
    return %c0_i32, %c0_i32_0 : i32, i32
  }
  func.func @transform_5(%arg0: i32) -> (i32, i32) {
    %c0_i32 = arith.constant 0 : i32
    %c0_i32_0 = arith.constant 0 : i32
    %c0_i32_1 = arith.constant 0 : i32
    return %c0_i32, %c0_i32_0 : i32, i32
  }
  func.func @transform_6(%arg0: i32) -> (i32, i32) {
    %c0_i32 = arith.constant 0 : i32
    %c0_i32_0 = arith.constant 0 : i32
    return %arg0, %c0_i32 : i32, i32
  }
  func.func @transform_7(%arg0: i32) -> (i32, i32) {
    %c0_i32 = arith.constant 0 : i32
    %c0_i32_0 = arith.constant 0 : i32
    return %arg0, %c0_i32 : i32, i32
  }
}

</mosaic_0001>

<llo_original>
// kernel: basic_block_forward.5
$region0: #{basic_block_forward.5}
  #allocation0 [shape = 'u32[]', space=smem, size = 0x4, offset = 0x4, fixed_abs, tag = 'smem constant byte address 0x4 - core index']
  #allocation1 [shape = 'u32[144,128]{1,0:T(1,128)}', space=vmem, size = 0x12000, scoped, tag = 'internal scratch']
  %s0 = inlined_call_operand.vmem [shape: bf16[128,128], index: 0, kind: input, shape index: {}]
  %s1 = inlined_call_operand.vmem [shape: f32[1,128], index: 1, kind: input, shape index: {}]
  %s2 = inlined_call_operand.vmem [shape: f32[1,128], index: 2, kind: input, shape index: {}]
  %s3 = inlined_call_operand.vmem [shape: bf16[128,128], index: 3, kind: output, shape index: {}]
  %s4 = sld [smem:[#allocation0]]
  $region22: #{basic_block_forward.5} parent=0
    _
  %s6 = ssub.s32 1, %s4
  %s7 = scalar_select 0, %s6, %s4
  // Predicated region
  $region2: #{basic_block_forward.5} parent=0 // pred_check
    _
  $region3: #{basic_block_forward.5} parent=0 // pred_check_branch
    %9 = sbr.rel (0) target = $region5
  $region4: #{basic_block_forward.5} parent=0 // pred_region
    _
  $region5: #{basic_block_forward.5} parent=0 // pred_fallthru
    _
  // Predicated region
  $region6: #{basic_block_forward.5} parent=0 // pred_check
    _
  $region7: #{basic_block_forward.5} parent=0 // pred_check_branch
    %11 = sbr.rel (0) target = $region9
  $region8: #{basic_block_forward.5} parent=0 // pred_region
    _
  $region9: #{basic_block_forward.5} parent=0 // pred_fallthru
    _
  // Predicated region
  $region10: #{basic_block_forward.5} parent=0 // pred_check
    _
  $region11: #{basic_block_forward.5} parent=0 // pred_check_branch
    %13 = sbr.rel (0) target = $region13
  $region12: #{basic_block_forward.5} parent=0 // pred_region
    _
  $region13: #{basic_block_forward.5} parent=0 // pred_fallthru
    _
  %v14 = vld [vmem:[%s0] sm:$0xf]
  %v15 = vld [vmem:[%s0 + $0x4] sm:$0xf]
  %v16 = vld [vmem:[%s0 + $0x8] sm:$0xf]
  %v17 = vld [vmem:[%s0 + $0xc] sm:$0xf]
  %v18 = vld [vmem:[%s0 + $0x10] sm:$0xf]
  %v19 = vld [vmem:[%s0 + $0x14] sm:$0xf]
  %v20 = vld [vmem:[%s0 + $0x18] sm:$0xf]
  %v21 = vld [vmem:[%s0 + $0x1c] sm:$0xf]
  %v22 = vld [vmem:[%s0 + $0x20] sm:$0xf]
  %v23 = vld [vmem:[%s0 + $0x24] sm:$0xf]
  %v24 = vld [vmem:[%s0 + $0x28] sm:$0xf]
  %v25 = vld [vmem:[%s0 + $0x2c] sm:$0xf]
  %v26 = vld [vmem:[%s0 + $0x30] sm:$0xf]
  %v27 = vld [vmem:[%s0 + $0x34] sm:$0xf]
  %v28 = vld [vmem:[%s0 + $0x38] sm:$0xf]
  %v29 = vld [vmem:[%s0 + $0x3c] sm:$0xf]
  %v30 = vld [vmem:[%s1] sm:$0x1]
  %v31 = vunpack.c.l.bf16 %v14
  %v32 = vunpack.c.l.bf16 %v15
  %v33 = vunpack.c.l.bf16 %v16
  %v34 = vunpack.c.l.bf16 %v17
  %v35 = vunpack.c.l.bf16 %v18
  %v36 = vunpack.c.l.bf16 %v19
  %v37 = vunpack.c.l.bf16 %v20
  %v38 = vunpack.c.l.bf16 %v21
  %v39 = vunpack.c.l.bf16 %v22
  %v40 = vunpack.c.l.bf16 %v23
  %v41 = vunpack.c.l.bf16 %v24
  %v42 = vunpack.c.l.bf16 %v25
  %v43 = vunpack.c.l.bf16 %v26
  %v44 = vunpack.c.l.bf16 %v27
  %v45 = vunpack.c.l.bf16 %v28
  %v46 = vunpack.c.l.bf16 %v29
  %v48 = vlaneseq
  %v49 = vshrl.u32 %v48, 7
  %v50 = vsub.s32 0, %v49
  %v51 = vrot.slane %v30, %v50
  %v53 = vmul.f32 %v31, %v51
  %v54 = vmul.f32 %v32, %v51
  %v55 = vmul.f32 %v33, %v51
  %v56 = vmul.f32 %v34, %v51
  %v57 = vmul.f32 %v35, %v51
  %v58 = vmul.f32 %v36, %v51
  %v59 = vmul.f32 %v37, %v51
  %v60 = vmul.f32 %v38, %v51
  %v61 = vmul.f32 %v39, %v51
  %v62 = vmul.f32 %v40, %v51
  %v63 = vmul.f32 %v41, %v51
  %v64 = vmul.f32 %v42, %v51
  %v65 = vmul.f32 %v43, %v51
  %v66 = vmul.f32 %v44, %v51
  %v67 = vmul.f32 %v45, %v51
  %v68 = vmul.f32 %v46, %v51
  %v69 = vld [vmem:[%s2] sm:$0x1]
  %v71 = vlaneseq
  %v72 = vshrl.u32 %v71, 7
  %v73 = vsub.s32 0, %v72
  %v74 = vrot.slane %v69, %v73
  %v76 = vadd.f32 %v53, %v74
  %v77 = vadd.f32 %v54, %v74
  %v78 = vadd.f32 %v55, %v74
  %v79 = vadd.f32 %v56, %v74
  %v80 = vadd.f32 %v57, %v74
  %v81 = vadd.f32 %v58, %v74
  %v82 = vadd.f32 %v59, %v74
  %v83 = vadd.f32 %v60, %v74
  %v84 = vadd.f32 %v61, %v74
  %v85 = vadd.f32 %v62, %v74
  %v86 = vadd.f32 %v63, %v74
  %v87 = vadd.f32 %v64, %v74
  %v88 = vadd.f32 %v65, %v74
  %v89 = vadd.f32 %v66, %v74
  %v90 = vadd.f32 %v67, %v74
  %v91 = vadd.f32 %v68, %v74
  %v92 = vmax.f32 %v76, 0.0
  %v93 = vmax.f32 %v77, 0.0
  %v94 = vmax.f32 %v78, 0.0
  %v95 = vmax.f32 %v79, 0.0
  %v96 = vmax.f32 %v80, 0.0
  %v97 = vmax.f32 %v81, 0.0
  %v98 = vmax.f32 %v82, 0.0
  %v99 = vmax.f32 %v83, 0.0
  %v100 = vmax.f32 %v84, 0.0
  %v101 = vmax.f32 %v85, 0.0
  %v102 = vmax.f32 %v86, 0.0
  %v103 = vmax.f32 %v87, 0.0
  %v104 = vmax.f32 %v88, 0.0
  %v105 = vmax.f32 %v89, 0.0
  %v106 = vmax.f32 %v90, 0.0
  %v107 = vmax.f32 %v91, 0.0
  %v108 = vpack.c.bf16 %v93, %v92
  %v109 = vpack.c.bf16 %v95, %v94
  %v110 = vpack.c.bf16 %v97, %v96
  %v111 = vpack.c.bf16 %v99, %v98
  %v112 = vpack.c.bf16 %v101, %v100
  %v113 = vpack.c.bf16 %v103, %v102
  %v114 = vpack.c.bf16 %v105, %v104
  %v115 = vpack.c.bf16 %v107, %v106
  %v124 = vunpack.c.l.b16 %v108
  %v125 = vunpack.c.h.b16 %v108
  %v126 = vunpack.c.l.b16 %v109
  %v127 = vunpack.c.h.b16 %v109
  %v128 = vunpack.c.l.b16 %v110
  %v129 = vunpack.c.h.b16 %v110
  %v130 = vunpack.c.l.b16 %v111
  %v131 = vunpack.c.h.b16 %v111
  %v132 = vunpack.c.l.b16 %v112
  %v133 = vunpack.c.h.b16 %v112
  %v134 = vunpack.c.l.b16 %v113
  %v135 = vunpack.c.h.b16 %v113
  %v136 = vunpack.c.l.b16 %v114
  %v137 = vunpack.c.h.b16 %v114
  %v138 = vunpack.c.l.b16 %v115
  %v139 = vunpack.c.h.b16 %v115
  %v140 = vpack.c.b16 %v124, %v124
  %v141 = vpack.c.b16 %v125, %v125
  %v142 = vpack.c.b16 %v126, %v126
  %v143 = vpack.c.b16 %v127, %v127
  %v144 = vpack.c.b16 %v128, %v128
  %v145 = vpack.c.b16 %v129, %v129
  %v146 = vpack.c.b16 %v130, %v130
  %v147 = vpack.c.b16 %v131, %v131
  %v148 = vpack.c.b16 %v132, %v132
  %v149 = vpack.c.b16 %v133, %v133
  %v150 = vpack.c.b16 %v134, %v134
  %v151 = vpack.c.b16 %v135, %v135
  %v152 = vpack.c.b16 %v136, %v136
  %v153 = vpack.c.b16 %v137, %v137
  %v154 = vpack.c.b16 %v138, %v138
  %v155 = vpack.c.b16 %v139, %v139
  %172 = vst [vmem:[%s3] sm:$0xf] %v140
  %173 = vst [vmem:[%s3 + $0x4] sm:$0xf] %v141
  %174 = vst [vmem:[%s3 + $0x8] sm:$0xf] %v142
  %175 = vst [vmem:[%s3 + $0xc] sm:$0xf] %v143
  %176 = vst [vmem:[%s3 + $0x10] sm:$0xf] %v144
  %177 = vst [vmem:[%s3 + $0x14] sm:$0xf] %v145
  %178 = vst [vmem:[%s3 + $0x18] sm:$0xf] %v146
  %179 = vst [vmem:[%s3 + $0x1c] sm:$0xf] %v147
  %180 = vst [vmem:[%s3 + $0x20] sm:$0xf] %v148
  %181 = vst [vmem:[%s3 + $0x24] sm:$0xf] %v149
  %182 = vst [vmem:[%s3 + $0x28] sm:$0xf] %v150
  %183 = vst [vmem:[%s3 + $0x2c] sm:$0xf] %v151
  %184 = vst [vmem:[%s3 + $0x30] sm:$0xf] %v152
  %185 = vst [vmem:[%s3 + $0x34] sm:$0xf] %v153
  %186 = vst [vmem:[%s3 + $0x38] sm:$0xf] %v154
  %187 = vst [vmem:[%s3 + $0x3c] sm:$0xf] %v155
  // Predicated region
  $region14: #{basic_block_forward.5} parent=0 // pred_check
    _
  $region15: #{basic_block_forward.5} parent=0 // pred_check_branch
    %189 = sbr.rel (0) target = $region17
  $region16: #{basic_block_forward.5} parent=0 // pred_region
    _
  $region17: #{basic_block_forward.5} parent=0 // pred_fallthru
    _
  // Predicated region
  $region18: #{basic_block_forward.5} parent=0 // pred_check
    _
  $region19: #{basic_block_forward.5} parent=0 // pred_check_branch
    %191 = sbr.rel (0) target = $region21
  $region20: #{basic_block_forward.5} parent=0 // pred_region
    _
  $region21: #{basic_block_forward.5} parent=0 // pred_fallthru
    _

// kernel: basic_block_forward.4
$region0: #{basic_block_forward.4}
  #allocation0 [shape = 'u32[]', space=smem, size = 0x4, offset = 0x4, fixed_abs, tag = 'smem constant byte address 0x4 - core index']
  #allocation1 [shape = 'u32[144,128]{1,0:T(1,128)}', space=vmem, size = 0x12000, scoped, tag = 'internal scratch']
  %s0 = inlined_call_operand.vmem [shape: bf16[128,1152], index: 0, kind: input, shape index: {}]
  %s1 = inlined_call_operand.vmem [shape: bf16[1152,128], index: 1, kind: input, shape index: {}]
  %s2 = inlined_call_operand.vmem [shape: bf16[128,128], index: 2, kind: input, shape index: {}]
  %s3 = inlined_call_operand.vmem [shape: bf16[128,128], index: 3, kind: output, shape index: {0}]
  %s4 = inlined_call_operand.vmem [shape: f32[1,2,128], index: 4, kind: output, shape index: {1}]
  %s5 = inlined_call_operand.vmem [shape: f32[128,128], index: 5, kind: output, shape index: {2}]
  %s6 = inlined_call_operand.vmem [shape: f32[1,2,128], index: 6, kind: output, shape index: {3}]
  %7 = xla_tuple %s3, %s4, %s5, %s6
  %s8 = sld [smem:[#allocation0]]
  $region46: #{basic_block_forward.4} parent=0
    _
  %s10 = ssub.s32 1, %s8
  %s11 = scalar_select 0, %s10, %s8
  // Predicated region
  $region2: #{basic_block_forward.4} parent=0 // pred_check
    _
  $region3: #{basic_block_forward.4} parent=0 // pred_check_branch
    %13 = sbr.rel (0) target = $region5
  $region4: #{basic_block_forward.4} parent=0 // pred_region
    _
  $region5: #{basic_block_forward.4} parent=0 // pred_fallthru
    _
  // Predicated region
  $region6: #{basic_block_forward.4} parent=0 // pred_check
    _
  $region7: #{basic_block_forward.4} parent=0 // pred_check_branch
    %15 = sbr.rel (0) target = $region9
  $region8: #{basic_block_forward.4} parent=0 // pred_region
    _
  $region9: #{basic_block_forward.4} parent=0 // pred_fallthru
    _
  // Predicated region
  $region10: #{basic_block_forward.4} parent=0 // pred_check
    _
  $region11: #{basic_block_forward.4} parent=0 // pred_check_branch
    %17 = sbr.rel (0) target = $region13
  $region12: #{basic_block_forward.4} parent=0 // pred_region
    _
  $region13: #{basic_block_forward.4} parent=0 // pred_fallthru
    _
  %v19 = vld [vmem:[%s0] sm:$0xff]
  %v20 = vld [vmem:[%s0 + $0x8] sm:$0xff]
  %v21 = vld [vmem:[%s0 + $0x10] sm:$0xff]
  %v22 = vld [vmem:[%s0 + $0x18] sm:$0xff]
  %v23 = vld [vmem:[%s0 + $0x20] sm:$0xf]
  %v24 = vld [vmem:[%s0 + $0x24] sm:$0xff]
  %v25 = vld [vmem:[%s0 + $0x2c] sm:$0xff]
  %v26 = vld [vmem:[%s0 + $0x34] sm:$0xff]
  %v27 = vld [vmem:[%s0 + $0x3c] sm:$0xff]
  %v28 = vld [vmem:[%s0 + $0x44] sm:$0xf]
  %v29 = vld [vmem:[%s0 + $0x48] sm:$0xff]
  %v30 = vld [vmem:[%s0 + $0x50] sm:$0xff]
  %v31 = vld [vmem:[%s0 + $0x58] sm:$0xff]
  %v32 = vld [vmem:[%s0 + $0x60] sm:$0xff]
  %v33 = vld [vmem:[%s0 + $0x68] sm:$0xf]
  %v34 = vld [vmem:[%s0 + $0x6c] sm:$0xff]
  %v35 = vld [vmem:[%s0 + $0x74] sm:$0xff]
  %v36 = vld [vmem:[%s0 + $0x7c] sm:$0xff]
  %v37 = vld [vmem:[%s0 + $0x84] sm:$0xff]
  %v38 = vld [vmem:[%s0 + $0x8c] sm:$0xf]
  %v39 = vld [vmem:[%s0 + $0x90] sm:$0xff]
  %v40 = vld [vmem:[%s0 + $0x98] sm:$0xff]
  %v41 = vld [vmem:[%s0 + $0xa0] sm:$0xff]
  %v42 = vld [vmem:[%s0 + $0xa8] sm:$0xff]
  %v43 = vld [vmem:[%s0 + $0xb0] sm:$0xf]
  %v44 = vld [vmem:[%s0 + $0xb4] sm:$0xff]
  %v45 = vld [vmem:[%s0 + $0xbc] sm:$0xff]
  %v46 = vld [vmem:[%s0 + $0xc4] sm:$0xff]
  %v47 = vld [vmem:[%s0 + $0xcc] sm:$0xff]
  %v48 = vld [vmem:[%s0 + $0xd4] sm:$0xf]
  %v49 = vld [vmem:[%s0 + $0xd8] sm:$0xff]
  %v50 = vld [vmem:[%s0 + $0xe0] sm:$0xff]
  %v51 = vld [vmem:[%s0 + $0xe8] sm:$0xff]
  %v52 = vld [vmem:[%s0 + $0xf0] sm:$0xff]
  %v53 = vld [vmem:[%s0 + $0xf8] sm:$0xf]
  %v54 = vld [vmem:[%s0 + $0xfc] sm:$0xff]
  %v55 = vld [vmem:[%s0 + $0x104] sm:$0xff]
  %v56 = vld [vmem:[%s0 + $0x10c] sm:$0xff]
  %v57 = vld [vmem:[%s0 + $0x114] sm:$0xff]
  %v58 = vld [vmem:[%s0 + $0x11c] sm:$0xf]
  %v59 = vld [vmem:[%s0 + $0x120] sm:$0xff]
  %v60 = vld [vmem:[%s0 + $0x128] sm:$0xff]
  %v61 = vld [vmem:[%s0 + $0x130] sm:$0xff]
  %v62 = vld [vmem:[%s0 + $0x138] sm:$0xff]
  %v63 = vld [vmem:[%s0 + $0x140] sm:$0xf]
  %v64 = vld [vmem:[%s0 + $0x144] sm:$0xff]
  %v65 = vld [vmem:[%s0 + $0x14c] sm:$0xff]
  %v66 = vld [vmem:[%s0 + $0x154] sm:$0xff]
  %v67 = vld [vmem:[%s0 + $0x15c] sm:$0xff]
  %v68 = vld [vmem:[%s0 + $0x164] sm:$0xf]
  %v69 = vld [vmem:[%s0 + $0x168] sm:$0xff]
  %v70 = vld [vmem:[%s0 + $0x170] sm:$0xff]
  %v71 = vld [vmem:[%s0 + $0x178] sm:$0xff]
  %v72 = vld [vmem:[%s0 + $0x180] sm:$0xff]
  %v73 = vld [vmem:[%s0 + $0x188] sm:$0xf]
  %v74 = vld [vmem:[%s0 + $0x18c] sm:$0xff]
  %v75 = vld [vmem:[%s0 + $0x194] sm:$0xff]
  %v76 = vld [vmem:[%s0 + $0x19c] sm:$0xff]
  %v77 = vld [vmem:[%s0 + $0x1a4] sm:$0xff]
  %v78 = vld [vmem:[%s0 + $0x1ac] sm:$0xf]
  %v79 = vld [vmem:[%s0 + $0x1b0] sm:$0xff]
  %v80 = vld [vmem:[%s0 + $0x1b8] sm:$0xff]
  %v81 = vld [vmem:[%s0 + $0x1c0] sm:$0xff]
  %v82 = vld [vmem:[%s0 + $0x1c8] sm:$0xff]
  %v83 = vld [vmem:[%s0 + $0x1d0] sm:$0xf]
  %v84 = vld [vmem:[%s0 + $0x1d4] sm:$0xff]
  %v85 = vld [vmem:[%s0 + $0x1dc] sm:$0xff]
  %v86 = vld [vmem:[%s0 + $0x1e4] sm:$0xff]
  %v87 = vld [vmem:[%s0 + $0x1ec] sm:$0xff]
  %v88 = vld [vmem:[%s0 + $0x1f4] sm:$0xf]
  %v89 = vld [vmem:[%s0 + $0x1f8] sm:$0xff]
  %v90 = vld [vmem:[%s0 + $0x200] sm:$0xff]
  %v91 = vld [vmem:[%s0 + $0x208] sm:$0xff]
  %v92 = vld [vmem:[%s0 + $0x210] sm:$0xff]
  %v93 = vld [vmem:[%s0 + $0x218] sm:$0xf]
  %v94 = vld [vmem:[%s0 + $0x21c] sm:$0xff]
  %v95 = vld [vmem:[%s0 + $0x224] sm:$0xff]
  %v96 = vld [vmem:[%s0 + $0x22c] sm:$0xff]
  %v97 = vld [vmem:[%s0 + $0x234] sm:$0xff]
  %v98 = vld [vmem:[%s0 + $0x23c] sm:$0xf]
  %v99 = vld [vmem:[%s1] sm:$0xf]
  %v100 = vld [vmem:[%s1 + $0x4] sm:$0xf]
  %v101 = vld [vmem:[%s1 + $0x8] sm:$0xf]
  %v102 = vld [vmem:[%s1 + $0xc] sm:$0xf]
  %v103 = vld [vmem:[%s1 + $0x10] sm:$0xf]
  %v104 = vld [vmem:[%s1 + $0x14] sm:$0xf]
  %v105 = vld [vmem:[%s1 + $0x18] sm:$0xf]
  %v106 = vld [vmem:[%s1 + $0x1c] sm:$0xf]
  %v107 = vld [vmem:[%s1 + $0x20] sm:$0xf]
  %v108 = vld [vmem:[%s1 + $0x24] sm:$0xf]
  %v109 = vld [vmem:[%s1 + $0x28] sm:$0xf]
  %v110 = vld [vmem:[%s1 + $0x2c] sm:$0xf]
  %v111 = vld [vmem:[%s1 + $0x30] sm:$0xf]
  %v112 = vld [vmem:[%s1 + $0x34] sm:$0xf]
  %v113 = vld [vmem:[%s1 + $0x38] sm:$0xf]
  %v114 = vld [vmem:[%s1 + $0x3c] sm:$0xf]
  %v115 = vld [vmem:[%s1 + $0x40] sm:$0xf]
  %v116 = vld [vmem:[%s1 + $0x44] sm:$0xf]
  %v117 = vld [vmem:[%s1 + $0x48] sm:$0xf]
  %v118 = vld [vmem:[%s1 + $0x4c] sm:$0xf]
  %v119 = vld [vmem:[%s1 + $0x50] sm:$0xf]
  %v120 = vld [vmem:[%s1 + $0x54] sm:$0xf]
  %v121 = vld [vmem:[%s1 + $0x58] sm:$0xf]
  %v122 = vld [vmem:[%s1 + $0x5c] sm:$0xf]
  %v123 = vld [vmem:[%s1 + $0x60] sm:$0xf]
  %v124 = vld [vmem:[%s1 + $0x64] sm:$0xf]
  %v125 = vld [vmem:[%s1 + $0x68] sm:$0xf]
  %v126 = vld [vmem:[%s1 + $0x6c] sm:$0xf]
  %v127 = vld [vmem:[%s1 + $0x70] sm:$0xf]
  %v128 = vld [vmem:[%s1 + $0x74] sm:$0xf]
  %v129 = vld [vmem:[%s1 + $0x78] sm:$0xf]
  %v130 = vld [vmem:[%s1 + $0x7c] sm:$0xf]
  %v131 = vld [vmem:[%s1 + $0x80] sm:$0xf]
  %v132 = vld [vmem:[%s1 + $0x84] sm:$0xf]
  %v133 = vld [vmem:[%s1 + $0x88] sm:$0xf]
  %v134 = vld [vmem:[%s1 + $0x8c] sm:$0xf]
  %v135 = vld [vmem:[%s1 + $0x90] sm:$0xf]
  %v136 = vld [vmem:[%s1 + $0x94] sm:$0xf]
  %v137 = vld [vmem:[%s1 + $0x98] sm:$0xf]
  %v138 = vld [vmem:[%s1 + $0x9c] sm:$0xf]
  %v139 = vld [vmem:[%s1 + $0xa0] sm:$0xf]
  %v140 = vld [vmem:[%s1 + $0xa4] sm:$0xf]
  %v141 = vld [vmem:[%s1 + $0xa8] sm:$0xf]
  %v142 = vld [vmem:[%s1 + $0xac] sm:$0xf]
  %v143 = vld [vmem:[%s1 + $0xb0] sm:$0xf]
  %v144 = vld [vmem:[%s1 + $0xb4] sm:$0xf]
  %v145 = vld [vmem:[%s1 + $0xb8] sm:$0xf]
  %v146 = vld [vmem:[%s1 + $0xbc] sm:$0xf]
  %v147 = vld [vmem:[%s1 + $0xc0] sm:$0xf]
  %v148 = vld [vmem:[%s1 + $0xc4] sm:$0xf]
  %v149 = vld [vmem:[%s1 + $0xc8] sm:$0xf]
  %v150 = vld [vmem:[%s1 + $0xcc] sm:$0xf]
  %v151 = vld [vmem:[%s1 + $0xd0] sm:$0xf]
  %v152 = vld [vmem:[%s1 + $0xd4] sm:$0xf]
  %v153 = vld [vmem:[%s1 + $0xd8] sm:$0xf]
  %v154 = vld [vmem:[%s1 + $0xdc] sm:$0xf]
  %v155 = vld [vmem:[%s1 + $0xe0] sm:$0xf]
  %v156 = vld [vmem:[%s1 + $0xe4] sm:$0xf]
  %v157 = vld [vmem:[%s1 + $0xe8] sm:$0xf]
  %v158 = vld [vmem:[%s1 + $0xec] sm:$0xf]
  %v159 = vld [vmem:[%s1 + $0xf0] sm:$0xf]
  %v160 = vld [vmem:[%s1 + $0xf4] sm:$0xf]
  %v161 = vld [vmem:[%s1 + $0xf8] sm:$0xf]
  %v162 = vld [vmem:[%s1 + $0xfc] sm:$0xf]
  %v163 = vld [vmem:[%s1 + $0x100] sm:$0xf]
  %v164 = vld [vmem:[%s1 + $0x104] sm:$0xf]
  %v165 = vld [vmem:[%s1 + $0x108] sm:$0xf]
  %v166 = vld [vmem:[%s1 + $0x10c] sm:$0xf]
  %v167 = vld [vmem:[%s1 + $0x110] sm:$0xf]
  %v168 = vld [vmem:[%s1 + $0x114] sm:$0xf]
  %v169 = vld [vmem:[%s1 + $0x118] sm:$0xf]
  %v170 = vld [vmem:[%s1 + $0x11c] sm:$0xf]
  %v171 = vld [vmem:[%s1 + $0x120] sm:$0xf]
  %v172 = vld [vmem:[%s1 + $0x124] sm:$0xf]
  %v173 = vld [vmem:[%s1 + $0x128] sm:$0xf]
  %v174 = vld [vmem:[%s1 + $0x12c] sm:$0xf]
  %v175 = vld [vmem:[%s1 + $0x130] sm:$0xf]
  %v176 = vld [vmem:[%s1 + $0x134] sm:$0xf]
  %v177 = vld [vmem:[%s1 + $0x138] sm:$0xf]
  %v178 = vld [vmem:[%s1 + $0x13c] sm:$0xf]
  %v179 = vld [vmem:[%s1 + $0x140] sm:$0xf]
  %v180 = vld [vmem:[%s1 + $0x144] sm:$0xf]
  %v181 = vld [vmem:[%s1 + $0x148] sm:$0xf]
  %v182 = vld [vmem:[%s1 + $0x14c] sm:$0xf]
  %v183 = vld [vmem:[%s1 + $0x150] sm:$0xf]
  %v184 = vld [vmem:[%s1 + $0x154] sm:$0xf]
  %v185 = vld [vmem:[%s1 + $0x158] sm:$0xf]
  %v186 = vld [vmem:[%s1 + $0x15c] sm:$0xf]
  %v187 = vld [vmem:[%s1 + $0x160] sm:$0xf]
  %v188 = vld [vmem:[%s1 + $0x164] sm:$0xf]
  %v189 = vld [vmem:[%s1 + $0x168] sm:$0xf]
  %v190 = vld [vmem:[%s1 + $0x16c] sm:$0xf]
  %v191 = vld [vmem:[%s1 + $0x170] sm:$0xf]
  %v192 = vld [vmem:[%s1 + $0x174] sm:$0xf]
  %v193 = vld [vmem:[%s1 + $0x178] sm:$0xf]
  %v194 = vld [vmem:[%s1 + $0x17c] sm:$0xf]
  %v195 = vld [vmem:[%s1 + $0x180] sm:$0xf]
  %v196 = vld [vmem:[%s1 + $0x184] sm:$0xf]
  %v197 = vld [vmem:[%s1 + $0x188] sm:$0xf]
  %v198 = vld [vmem:[%s1 + $0x18c] sm:$0xf]
  %v199 = vld [vmem:[%s1 + $0x190] sm:$0xf]
  %v200 = vld [vmem:[%s1 + $0x194] sm:$0xf]
  %v201 = vld [vmem:[%s1 + $0x198] sm:$0xf]
  %v202 = vld [vmem:[%s1 + $0x19c] sm:$0xf]
  %v203 = vld [vmem:[%s1 + $0x1a0] sm:$0xf]
  %v204 = vld [vmem:[%s1 + $0x1a4] sm:$0xf]
  %v205 = vld [vmem:[%s1 + $0x1a8] sm:$0xf]
  %v206 = vld [vmem:[%s1 + $0x1ac] sm:$0xf]
  %v207 = vld [vmem:[%s1 + $0x1b0] sm:$0xf]
  %v208 = vld [vmem:[%s1 + $0x1b4] sm:$0xf]
  %v209 = vld [vmem:[%s1 + $0x1b8] sm:$0xf]
  %v210 = vld [vmem:[%s1 + $0x1bc] sm:$0xf]
  %v211 = vld [vmem:[%s1 + $0x1c0] sm:$0xf]
  %v212 = vld [vmem:[%s1 + $0x1c4] sm:$0xf]
  %v213 = vld [vmem:[%s1 + $0x1c8] sm:$0xf]
  %v214 = vld [vmem:[%s1 + $0x1cc] sm:$0xf]
  %v215 = vld [vmem:[%s1 + $0x1d0] sm:$0xf]
  %v216 = vld [vmem:[%s1 + $0x1d4] sm:$0xf]
  %v217 = vld [vmem:[%s1 + $0x1d8] sm:$0xf]
  %v218 = vld [vmem:[%s1 + $0x1dc] sm:$0xf]
  %v219 = vld [vmem:[%s1 + $0x1e0] sm:$0xf]
  %v220 = vld [vmem:[%s1 + $0x1e4] sm:$0xf]
  %v221 = vld [vmem:[%s1 + $0x1e8] sm:$0xf]
  %v222 = vld [vmem:[%s1 + $0x1ec] sm:$0xf]
  %v223 = vld [vmem:[%s1 + $0x1f0] sm:$0xf]
  %v224 = vld [vmem:[%s1 + $0x1f4] sm:$0xf]
  %v225 = vld [vmem:[%s1 + $0x1f8] sm:$0xf]
  %v226 = vld [vmem:[%s1 + $0x1fc] sm:$0xf]
  %v227 = vld [vmem:[%s1 + $0x200] sm:$0xf]
  %v228 = vld [vmem:[%s1 + $0x204] sm:$0xf]
  %v229 = vld [vmem:[%s1 + $0x208] sm:$0xf]
  %v230 = vld [vmem:[%s1 + $0x20c] sm:$0xf]
  %v231 = vld [vmem:[%s1 + $0x210] sm:$0xf]
  %v232 = vld [vmem:[%s1 + $0x214] sm:$0xf]
  %v233 = vld [vmem:[%s1 + $0x218] sm:$0xf]
  %v234 = vld [vmem:[%s1 + $0x21c] sm:$0xf]
  %v235 = vld [vmem:[%s1 + $0x220] sm:$0xf]
  %v236 = vld [vmem:[%s1 + $0x224] sm:$0xf]
  %v237 = vld [vmem:[%s1 + $0x228] sm:$0xf]
  %v238 = vld [vmem:[%s1 + $0x22c] sm:$0xf]
  %v239 = vld [vmem:[%s1 + $0x230] sm:$0xf]
  %v240 = vld [vmem:[%s1 + $0x234] sm:$0xf]
  %v241 = vld [vmem:[%s1 + $0x238] sm:$0xf]
  %v242 = vld [vmem:[%s1 + $0x23c] sm:$0xf]
  %v323 = vunpack.c.l.b16 %v19
  %v324 = vunpack.c.h.b16 %v19
  %v325 = vunpack.c.l.b16 %v20
  %v326 = vunpack.c.h.b16 %v20
  %v327 = vunpack.c.l.b16 %v21
  %v328 = vunpack.c.h.b16 %v21
  %v329 = vunpack.c.l.b16 %v22
  %v330 = vunpack.c.h.b16 %v22
  %v331 = vunpack.c.l.b16 %v23
  %v332 = vunpack.c.l.b16 %v24
  %v333 = vunpack.c.h.b16 %v24
  %v334 = vunpack.c.l.b16 %v25
  %v335 = vunpack.c.h.b16 %v25
  %v336 = vunpack.c.l.b16 %v26
  %v337 = vunpack.c.h.b16 %v26
  %v338 = vunpack.c.l.b16 %v27
  %v339 = vunpack.c.h.b16 %v27
  %v340 = vunpack.c.l.b16 %v28
  %v341 = vunpack.c.l.b16 %v29
  %v342 = vunpack.c.h.b16 %v29
  %v343 = vunpack.c.l.b16 %v30
  %v344 = vunpack.c.h.b16 %v30
  %v345 = vunpack.c.l.b16 %v31
  %v346 = vunpack.c.h.b16 %v31
  %v347 = vunpack.c.l.b16 %v32
  %v348 = vunpack.c.h.b16 %v32
  %v349 = vunpack.c.l.b16 %v33
  %v350 = vunpack.c.l.b16 %v34
  %v351 = vunpack.c.h.b16 %v34
  %v352 = vunpack.c.l.b16 %v35
  %v353 = vunpack.c.h.b16 %v35
  %v354 = vunpack.c.l.b16 %v36
  %v355 = vunpack.c.h.b16 %v36
  %v356 = vunpack.c.l.b16 %v37
  %v357 = vunpack.c.h.b16 %v37
  %v358 = vunpack.c.l.b16 %v38
  %v359 = vunpack.c.l.b16 %v39
  %v360 = vunpack.c.h.b16 %v39
  %v361 = vunpack.c.l.b16 %v40
  %v362 = vunpack.c.h.b16 %v40
  %v363 = vunpack.c.l.b16 %v41
  %v364 = vunpack.c.h.b16 %v41
  %v365 = vunpack.c.l.b16 %v42
  %v366 = vunpack.c.h.b16 %v42
  %v367 = vunpack.c.l.b16 %v43
  %v368 = vunpack.c.l.b16 %v44
  %v369 = vunpack.c.h.b16 %v44
  %v370 = vunpack.c.l.b16 %v45
  %v371 = vunpack.c.h.b16 %v45
  %v372 = vunpack.c.l.b16 %v46
  %v373 = vunpack.c.h.b16 %v46
  %v374 = vunpack.c.l.b16 %v47
  %v375 = vunpack.c.h.b16 %v47
  %v376 = vunpack.c.l.b16 %v48
  %v377 = vunpack.c.l.b16 %v49
  %v378 = vunpack.c.h.b16 %v49
  %v379 = vunpack.c.l.b16 %v50
  %v380 = vunpack.c.h.b16 %v50
  %v381 = vunpack.c.l.b16 %v51
  %v382 = vunpack.c.h.b16 %v51
  %v383 = vunpack.c.l.b16 %v52
  %v384 = vunpack.c.h.b16 %v52
  %v385 = vunpack.c.l.b16 %v53
  %v386 = vunpack.c.l.b16 %v54
  %v387 = vunpack.c.h.b16 %v54
  %v388 = vunpack.c.l.b16 %v55
  %v389 = vunpack.c.h.b16 %v55
  %v390 = vunpack.c.l.b16 %v56
  %v391 = vunpack.c.h.b16 %v56
  %v392 = vunpack.c.l.b16 %v57
  %v393 = vunpack.c.h.b16 %v57
  %v394 = vunpack.c.l.b16 %v58
  %v395 = vunpack.c.l.b16 %v59
  %v396 = vunpack.c.h.b16 %v59
  %v397 = vunpack.c.l.b16 %v60
  %v398 = vunpack.c.h.b16 %v60
  %v399 = vunpack.c.l.b16 %v61
  %v400 = vunpack.c.h.b16 %v61
  %v401 = vunpack.c.l.b16 %v62
  %v402 = vunpack.c.h.b16 %v62
  %v403 = vunpack.c.l.b16 %v63
  %v404 = vunpack.c.l.b16 %v64
  %v405 = vunpack.c.h.b16 %v64
  %v406 = vunpack.c.l.b16 %v65
  %v407 = vunpack.c.h.b16 %v65
  %v408 = vunpack.c.l.b16 %v66
  %v409 = vunpack.c.h.b16 %v66
  %v410 = vunpack.c.l.b16 %v67
  %v411 = vunpack.c.h.b16 %v67
  %v412 = vunpack.c.l.b16 %v68
  %v413 = vunpack.c.l.b16 %v69
  %v414 = vunpack.c.h.b16 %v69
  %v415 = vunpack.c.l.b16 %v70
  %v416 = vunpack.c.h.b16 %v70
  %v417 = vunpack.c.l.b16 %v71
  %v418 = vunpack.c.h.b16 %v71
  %v419 = vunpack.c.l.b16 %v72
  %v420 = vunpack.c.h.b16 %v72
  %v421 = vunpack.c.l.b16 %v73
  %v422 = vunpack.c.l.b16 %v74
  %v423 = vunpack.c.h.b16 %v74
  %v424 = vunpack.c.l.b16 %v75
  %v425 = vunpack.c.h.b16 %v75
  %v426 = vunpack.c.l.b16 %v76
  %v427 = vunpack.c.h.b16 %v76
  %v428 = vunpack.c.l.b16 %v77
  %v429 = vunpack.c.h.b16 %v77
  %v430 = vunpack.c.l.b16 %v78
  %v431 = vunpack.c.l.b16 %v79
  %v432 = vunpack.c.h.b16 %v79
  %v433 = vunpack.c.l.b16 %v80
  %v434 = vunpack.c.h.b16 %v80
  %v435 = vunpack.c.l.b16 %v81
  %v436 = vunpack.c.h.b16 %v81
  %v437 = vunpack.c.l.b16 %v82
  %v438 = vunpack.c.h.b16 %v82
  %v439 = vunpack.c.l.b16 %v83
  %v440 = vunpack.c.l.b16 %v84
  %v441 = vunpack.c.h.b16 %v84
  %v442 = vunpack.c.l.b16 %v85
  %v443 = vunpack.c.h.b16 %v85
  %v444 = vunpack.c.l.b16 %v86
  %v445 = vunpack.c.h.b16 %v86
  %v446 = vunpack.c.l.b16 %v87
  %v447 = vunpack.c.h.b16 %v87
  %v448 = vunpack.c.l.b16 %v88
  %v449 = vunpack.c.l.b16 %v89
  %v450 = vunpack.c.h.b16 %v89
  %v451 = vunpack.c.l.b16 %v90
  %v452 = vunpack.c.h.b16 %v90
  %v453 = vunpack.c.l.b16 %v91
  %v454 = vunpack.c.h.b16 %v91
  %v455 = vunpack.c.l.b16 %v92
  %v456 = vunpack.c.h.b16 %v92
  %v457 = vunpack.c.l.b16 %v93
  %v458 = vunpack.c.l.b16 %v94
  %v459 = vunpack.c.h.b16 %v94
  %v460 = vunpack.c.l.b16 %v95
  %v461 = vunpack.c.h.b16 %v95
  %v462 = vunpack.c.l.b16 %v96
  %v463 = vunpack.c.h.b16 %v96
  %v464 = vunpack.c.l.b16 %v97
  %v465 = vunpack.c.h.b16 %v97
  %v466 = vunpack.c.l.b16 %v98
  %v467 = vpack.c.b16 %v332, %v323
  %v468 = vpack.c.b16 %v333, %v324
  %v469 = vpack.c.b16 %v334, %v325
  %v470 = vpack.c.b16 %v335, %v326
  %v471 = vpack.c.b16 %v336, %v327
  %v472 = vpack.c.b16 %v337, %v328
  %v473 = vpack.c.b16 %v338, %v329
  %v474 = vpack.c.b16 %v339, %v330
  %v475 = vpack.c.b16 %v340, %v331
  %v476 = vpack.c.b16 %v350, %v341
  %v477 = vpack.c.b16 %v351, %v342
  %v478 = vpack.c.b16 %v352, %v343
  %v479 = vpack.c.b16 %v353, %v344
  %v480 = vpack.c.b16 %v354, %v345
  %v481 = vpack.c.b16 %v355, %v346
  %v482 = vpack.c.b16 %v356, %v347
  %v483 = vpack.c.b16 %v357, %v348
  %v484 = vpack.c.b16 %v358, %v349
  %v485 = vpack.c.b16 %v368, %v359
  %v486 = vpack.c.b16 %v369, %v360
  %v487 = vpack.c.b16 %v370, %v361
  %v488 = vpack.c.b16 %v371, %v362
  %v489 = vpack.c.b16 %v372, %v363
  %v490 = vpack.c.b16 %v373, %v364
  %v491 = vpack.c.b16 %v374, %v365
  %v492 = vpack.c.b16 %v375, %v366
  %v493 = vpack.c.b16 %v376, %v367
  %v494 = vpack.c.b16 %v386, %v377
  %v495 = vpack.c.b16 %v387, %v378
  %v496 = vpack.c.b16 %v388, %v379
  %v497 = vpack.c.b16 %v389, %v380
  %v498 = vpack.c.b16 %v390, %v381
  %v499 = vpack.c.b16 %v391, %v382
  %v500 = vpack.c.b16 %v392, %v383
  %v501 = vpack.c.b16 %v393, %v384
  %v502 = vpack.c.b16 %v394, %v385
  %v503 = vpack.c.b16 %v404, %v395
  %v504 = vpack.c.b16 %v405, %v396
  %v505 = vpack.c.b16 %v406, %v397
  %v506 = vpack.c.b16 %v407, %v398
  %v507 = vpack.c.b16 %v408, %v399
  %v508 = vpack.c.b16 %v409, %v400
  %v509 = vpack.c.b16 %v410, %v401
  %v510 = vpack.c.b16 %v411, %v402
  %v511 = vpack.c.b16 %v412, %v403
  %v512 = vpack.c.b16 %v422, %v413
  %v513 = vpack.c.b16 %v423, %v414
  %v514 = vpack.c.b16 %v424, %v415
  %v515 = vpack.c.b16 %v425, %v416
  %v516 = vpack.c.b16 %v426, %v417
  %v517 = vpack.c.b16 %v427, %v418
  %v518 = vpack.c.b16 %v428, %v419
  %v519 = vpack.c.b16 %v429, %v420
  %v520 = vpack.c.b16 %v430, %v421
  %v521 = vpack.c.b16 %v440, %v431
  %v522 = vpack.c.b16 %v441, %v432
  %v523 = vpack.c.b16 %v442, %v433
  %v524 = vpack.c.b16 %v443, %v434
  %v525 = vpack.c.b16 %v444, %v435
  %v526 = vpack.c.b16 %v445, %v436
  %v527 = vpack.c.b16 %v446, %v437
  %v528 = vpack.c.b16 %v447, %v438
  %v529 = vpack.c.b16 %v448, %v439
  %v530 = vpack.c.b16 %v458, %v449
  %v531 = vpack.c.b16 %v459, %v450
  %v532 = vpack.c.b16 %v460, %v451
  %v533 = vpack.c.b16 %v461, %v452
  %v534 = vpack.c.b16 %v462, %v453
  %v535 = vpack.c.b16 %v463, %v454
  %v536 = vpack.c.b16 %v464, %v455
  %v537 = vpack.c.b16 %v465, %v456
  %v538 = vpack.c.b16 %v466, %v457
  %v755 = vunpack.c.l.b16 %v99
  %v756 = vunpack.c.l.b16 %v100
  %v757 = vunpack.c.l.b16 %v101
  %v758 = vunpack.c.l.b16 %v102
  %v759 = vunpack.c.l.b16 %v103
  %v760 = vunpack.c.l.b16 %v104
  %v761 = vunpack.c.l.b16 %v105
  %v762 = vunpack.c.l.b16 %v106
  %v763 = vunpack.c.l.b16 %v107
  %v764 = vunpack.c.l.b16 %v108
  %v765 = vunpack.c.l.b16 %v109
  %v766 = vunpack.c.l.b16 %v110
  %v767 = vunpack.c.l.b16 %v111
  %v768 = vunpack.c.l.b16 %v112
  %v769 = vunpack.c.l.b16 %v113
  %v770 = vunpack.c.l.b16 %v114
  %v771 = vunpack.c.l.b16 %v115
  %v772 = vunpack.c.l.b16 %v116
  %v773 = vunpack.c.l.b16 %v117
  %v774 = vunpack.c.l.b16 %v118
  %v775 = vunpack.c.l.b16 %v119
  %v776 = vunpack.c.l.b16 %v120
  %v777 = vunpack.c.l.b16 %v121
  %v778 = vunpack.c.l.b16 %v122
  %v779 = vunpack.c.l.b16 %v123
  %v780 = vunpack.c.l.b16 %v124
  %v781 = vunpack.c.l.b16 %v125
  %v782 = vunpack.c.l.b16 %v126
  %v783 = vunpack.c.l.b16 %v127
  %v784 = vunpack.c.l.b16 %v128
  %v785 = vunpack.c.l.b16 %v129
  %v786 = vunpack.c.l.b16 %v130
  %v787 = vunpack.c.l.b16 %v131
  %v788 = vunpack.c.l.b16 %v132
  %v789 = vunpack.c.l.b16 %v133
  %v790 = vunpack.c.l.b16 %v134
  %v791 = vunpack.c.l.b16 %v135
  %v792 = vunpack.c.l.b16 %v136
  %v793 = vunpack.c.l.b16 %v137
  %v794 = vunpack.c.l.b16 %v138
  %v795 = vunpack.c.l.b16 %v139
  %v796 = vunpack.c.l.b16 %v140
  %v797 = vunpack.c.l.b16 %v141
  %v798 = vunpack.c.l.b16 %v142
  %v799 = vunpack.c.l.b16 %v143
  %v800 = vunpack.c.l.b16 %v144
  %v801 = vunpack.c.l.b16 %v145
  %v802 = vunpack.c.l.b16 %v146
  %v803 = vunpack.c.l.b16 %v147
  %v804 = vunpack.c.l.b16 %v148
  %v805 = vunpack.c.l.b16 %v149
  %v806 = vunpack.c.l.b16 %v150
  %v807 = vunpack.c.l.b16 %v151
  %v808 = vunpack.c.l.b16 %v152
  %v809 = vunpack.c.l.b16 %v153
  %v810 = vunpack.c.l.b16 %v154
  %v811 = vunpack.c.l.b16 %v155
  %v812 = vunpack.c.l.b16 %v156
  %v813 = vunpack.c.l.b16 %v157
  %v814 = vunpack.c.l.b16 %v158
  %v815 = vunpack.c.l.b16 %v159
  %v816 = vunpack.c.l.b16 %v160
  %v817 = vunpack.c.l.b16 %v161
  %v818 = vunpack.c.l.b16 %v162
  %v819 = vunpack.c.l.b16 %v163
  %v820 = vunpack.c.l.b16 %v164
  %v821 = vunpack.c.l.b16 %v165
  %v822 = vunpack.c.l.b16 %v166
  %v823 = vunpack.c.l.b16 %v167
  %v824 = vunpack.c.l.b16 %v168
  %v825 = vunpack.c.l.b16 %v169
  %v826 = vunpack.c.l.b16 %v170
  %v827 = vunpack.c.l.b16 %v171
  %v828 = vunpack.c.l.b16 %v172
  %v829 = vunpack.c.l.b16 %v173
  %v830 = vunpack.c.l.b16 %v174
  %v831 = vunpack.c.l.b16 %v175
  %v832 = vunpack.c.l.b16 %v176
  %v833 = vunpack.c.l.b16 %v177
  %v834 = vunpack.c.l.b16 %v178
  %v835 = vunpack.c.l.b16 %v179
  %v836 = vunpack.c.l.b16 %v180
  %v837 = vunpack.c.l.b16 %v181
  %v838 = vunpack.c.l.b16 %v182
  %v839 = vunpack.c.l.b16 %v183
  %v840 = vunpack.c.l.b16 %v184
  %v841 = vunpack.c.l.b16 %v185
  %v842 = vunpack.c.l.b16 %v186
  %v843 = vunpack.c.l.b16 %v187
  %v844 = vunpack.c.l.b16 %v188
  %v845 = vunpack.c.l.b16 %v189
  %v846 = vunpack.c.l.b16 %v190
  %v847 = vunpack.c.l.b16 %v191
  %v848 = vunpack.c.l.b16 %v192
  %v849 = vunpack.c.l.b16 %v193
  %v850 = vunpack.c.l.b16 %v194
  %v851 = vunpack.c.l.b16 %v195
  %v852 = vunpack.c.l.b16 %v196
  %v853 = vunpack.c.l.b16 %v197
  %v854 = vunpack.c.l.b16 %v198
  %v855 = vunpack.c.l.b16 %v199
  %v856 = vunpack.c.l.b16 %v200
  %v857 = vunpack.c.l.b16 %v201
  %v858 = vunpack.c.l.b16 %v202
  %v859 = vunpack.c.l.b16 %v203
  %v860 = vunpack.c.l.b16 %v204
  %v861 = vunpack.c.l.b16 %v205
  %v862 = vunpack.c.l.b16 %v206
  %v863 = vunpack.c.l.b16 %v207
  %v864 = vunpack.c.l.b16 %v208
  %v865 = vunpack.c.l.b16 %v209
  %v866 = vunpack.c.l.b16 %v210
  %v867 = vunpack.c.l.b16 %v211
  %v868 = vunpack.c.l.b16 %v212
  %v869 = vunpack.c.l.b16 %v213
  %v870 = vunpack.c.l.b16 %v214
  %v871 = vunpack.c.l.b16 %v215
  %v872 = vunpack.c.l.b16 %v216
  %v873 = vunpack.c.l.b16 %v217
  %v874 = vunpack.c.l.b16 %v218
  %v875 = vunpack.c.l.b16 %v219
  %v876 = vunpack.c.l.b16 %v220
  %v877 = vunpack.c.l.b16 %v221
  %v878 = vunpack.c.l.b16 %v222
  %v879 = vunpack.c.l.b16 %v223
  %v880 = vunpack.c.l.b16 %v224
  %v881 = vunpack.c.l.b16 %v225
  %v882 = vunpack.c.l.b16 %v226
  %v883 = vunpack.c.l.b16 %v227
  %v884 = vunpack.c.l.b16 %v228
  %v885 = vunpack.c.l.b16 %v229
  %v886 = vunpack.c.l.b16 %v230
  %v887 = vunpack.c.l.b16 %v231
  %v888 = vunpack.c.l.b16 %v232
  %v889 = vunpack.c.l.b16 %v233
  %v890 = vunpack.c.l.b16 %v234
  %v891 = vunpack.c.l.b16 %v235
  %v892 = vunpack.c.l.b16 %v236
  %v893 = vunpack.c.l.b16 %v237
  %v894 = vunpack.c.l.b16 %v238
  %v895 = vunpack.c.l.b16 %v239
  %v896 = vunpack.c.l.b16 %v240
  %v897 = vunpack.c.l.b16 %v241
  %v898 = vunpack.c.l.b16 %v242
  %v899 = vpack.c.b16 %v756, %v755
  %v900 = vpack.c.b16 %v758, %v757
  %v901 = vpack.c.b16 %v760, %v759
  %v902 = vpack.c.b16 %v762, %v761
  %v903 = vpack.c.b16 %v764, %v763
  %v904 = vpack.c.b16 %v766, %v765
  %v905 = vpack.c.b16 %v768, %v767
  %v906 = vpack.c.b16 %v770, %v769
  %v907 = vpack.c.b16 %v772, %v771
  %v908 = vpack.c.b16 %v774, %v773
  %v909 = vpack.c.b16 %v776, %v775
  %v910 = vpack.c.b16 %v778, %v777
  %v911 = vpack.c.b16 %v780, %v779
  %v912 = vpack.c.b16 %v782, %v781
  %v913 = vpack.c.b16 %v784, %v783
  %v914 = vpack.c.b16 %v786, %v785
  %v915 = vpack.c.b16 %v788, %v787
  %v916 = vpack.c.b16 %v790, %v789
  %v917 = vpack.c.b16 %v792, %v791
  %v918 = vpack.c.b16 %v794, %v793
  %v919 = vpack.c.b16 %v796, %v795
  %v920 = vpack.c.b16 %v798, %v797
  %v921 = vpack.c.b16 %v800, %v799
  %v922 = vpack.c.b16 %v802, %v801
  %v923 = vpack.c.b16 %v804, %v803
  %v924 = vpack.c.b16 %v806, %v805
  %v925 = vpack.c.b16 %v808, %v807
  %v926 = vpack.c.b16 %v810, %v809
  %v927 = vpack.c.b16 %v812, %v811
  %v928 = vpack.c.b16 %v814, %v813
  %v929 = vpack.c.b16 %v816, %v815
  %v930 = vpack.c.b16 %v818, %v817
  %v931 = vpack.c.b16 %v820, %v819
  %v932 = vpack.c.b16 %v822, %v821
  %v933 = vpack.c.b16 %v824, %v823
  %v934 = vpack.c.b16 %v826, %v825
  %v935 = vpack.c.b16 %v828, %v827
  %v936 = vpack.c.b16 %v830, %v829
  %v937 = vpack.c.b16 %v832, %v831
  %v938 = vpack.c.b16 %v834, %v833
  %v939 = vpack.c.b16 %v836, %v835
  %v940 = vpack.c.b16 %v838, %v837
  %v941 = vpack.c.b16 %v840, %v839
  %v942 = vpack.c.b16 %v842, %v841
  %v943 = vpack.c.b16 %v844, %v843
  %v944 = vpack.c.b16 %v846, %v845
  %v945 = vpack.c.b16 %v848, %v847
  %v946 = vpack.c.b16 %v850, %v849
  %v947 = vpack.c.b16 %v852, %v851
  %v948 = vpack.c.b16 %v854, %v853
  %v949 = vpack.c.b16 %v856, %v855
  %v950 = vpack.c.b16 %v858, %v857
  %v951 = vpack.c.b16 %v860, %v859
  %v952 = vpack.c.b16 %v862, %v861
  %v953 = vpack.c.b16 %v864, %v863
  %v954 = vpack.c.b16 %v866, %v865
  %v955 = vpack.c.b16 %v868, %v867
  %v956 = vpack.c.b16 %v870, %v869
  %v957 = vpack.c.b16 %v872, %v871
  %v958 = vpack.c.b16 %v874, %v873
  %v959 = vpack.c.b16 %v876, %v875
  %v960 = vpack.c.b16 %v878, %v877
  %v961 = vpack.c.b16 %v880, %v879
  %v962 = vpack.c.b16 %v882, %v881
  %v963 = vpack.c.b16 %v884, %v883
  %v964 = vpack.c.b16 %v886, %v885
  %v965 = vpack.c.b16 %v888, %v887
  %v966 = vpack.c.b16 %v890, %v889
  %v967 = vpack.c.b16 %v892, %v891
  %v968 = vpack.c.b16 %v894, %v893
  %v969 = vpack.c.b16 %v896, %v895
  %v970 = vpack.c.b16 %v898, %v897
  %1043 = vmatprep.subr.bf16.mxu0 0
  %1044 = vmatpush1.bf16.msra.mxu0 %v906
  %1045 = vmatprep.subr.bf16.mxu0 0
  %1046 = vmatpush1.bf16.msra.mxu0 %v905
  %1047 = vmatprep.subr.bf16.mxu0 0
  %1048 = vmatpush1.bf16.msra.mxu0 %v904
  %1049 = vmatprep.subr.bf16.mxu0 0
  %1050 = vmatpush1.bf16.msra.mxu0 %v903
  %1051 = vmatprep.subr.bf16.mxu0 0
  %1052 = vmatpush1.bf16.msra.mxu0 %v902
  %1053 = vmatprep.subr.bf16.mxu0 0
  %1054 = vmatpush1.bf16.msra.mxu0 %v901
  %1055 = vmatprep.subr.bf16.mxu0 0
  %1056 = vmatpush1.bf16.msra.mxu0 %v900
  %1057 = vmatprep.subr.bf16.mxu0 0
  %1058 = vmatpush1.bf16.msra.mxu0 %v899
  %1059 = vmatprep.subr.bf16.mxu0 0
  %1060 = vmatpush2.bf16.msra.mxu0 %v914
  %1061 = vmatprep.subr.bf16.mxu0 0
  %1062 = vmatpush2.bf16.msra.mxu0 %v913
  %1063 = vmatprep.subr.bf16.mxu0 0
  %1064 = vmatpush2.bf16.msra.mxu0 %v912
  %1065 = vmatprep.subr.bf16.mxu0 0
  %1066 = vmatpush2.bf16.msra.mxu0 %v911
  %1067 = vmatprep.subr.bf16.mxu0 0
  %1068 = vmatpush2.bf16.msra.mxu0 %v910
  %1069 = vmatprep.subr.bf16.mxu0 0
  %1070 = vmatpush2.bf16.msra.mxu0 %v909
  %1071 = vmatprep.subr.bf16.mxu0 0
  %1072 = vmatpush2.bf16.msra.mxu0 %v908
  %1073 = vmatprep.subr.bf16.mxu0 0
  %1074 = vmatpush2.bf16.msra.mxu0 %v907
  %1075 = vmatprep.mubr.bf16.mxu0 %v468
  %1076 = vmatmul.mubr.bf16.gmra.mxu0 %v467
  %v1077 = vpop.f32.mrf.mxu0
  %v1078 = vadd.f32 0.0, %v1077
  %v1079 = vpop.f32.mrf.mxu0
  %v1080 = vpop.f32.mrf.mxu0
  %v1081 = vadd.f32 0.0, %v1080
  %v1082 = vpop.f32.mrf.mxu0
  %1083 = vmatprep.mubr.bf16.mxu0 %v477
  %1084 = vmatmul.mubr.bf16.gmra.mxu0 %v476
  %v1085 = vpop.f32.mrf.mxu0
  %v1086 = vadd.f32 0.0, %v1085
  %v1087 = vpop.f32.mrf.mxu0
  %v1088 = vpop.f32.mrf.mxu0
  %v1089 = vadd.f32 0.0, %v1088
  %v1090 = vpop.f32.mrf.mxu0
  %1091 = vmatprep.mubr.bf16.mxu0 %v486
  %1092 = vmatmul.mubr.bf16.gmra.mxu0 %v485
  %v1093 = vpop.f32.mrf.mxu0
  %v1094 = vadd.f32 0.0, %v1093
  %v1095 = vpop.f32.mrf.mxu0
  %v1096 = vpop.f32.mrf.mxu0
  %v1097 = vadd.f32 0.0, %v1096
  %v1098 = vpop.f32.mrf.mxu0
  %1099 = vmatprep.mubr.bf16.mxu0 %v495
  %1100 = vmatmul.mubr.bf16.gmra.mxu0 %v494
  %v1101 = vpop.f32.mrf.mxu0
  %v1102 = vadd.f32 0.0, %v1101
  %v1103 = vpop.f32.mrf.mxu0
  %v1104 = vpop.f32.mrf.mxu0
  %v1105 = vadd.f32 0.0, %v1104
  %v1106 = vpop.f32.mrf.mxu0
  %1107 = vmatprep.mubr.bf16.mxu0 %v504
  %1108 = vmatmul.mubr.bf16.gmra.mxu0 %v503
  %v1109 = vpop.f32.mrf.mxu0
  %v1110 = vadd.f32 0.0, %v1109
  %v1111 = vpop.f32.mrf.mxu0
  %v1112 = vpop.f32.mrf.mxu0
  %v1113 = vadd.f32 0.0, %v1112
  %v1114 = vpop.f32.mrf.mxu0
  %1115 = vmatprep.mubr.bf16.mxu0 %v513
  %1116 = vmatmul.mubr.bf16.gmra.mxu0 %v512
  %v1117 = vpop.f32.mrf.mxu0
  %v1118 = vadd.f32 0.0, %v1117
  %v1119 = vpop.f32.mrf.mxu0
  %v1120 = vpop.f32.mrf.mxu0
  %v1121 = vadd.f32 0.0, %v1120
  %v1122 = vpop.f32.mrf.mxu0
  %1123 = vmatprep.mubr.bf16.mxu0 %v522
  %1124 = vmatmul.mubr.bf16.gmra.mxu0 %v521
  %v1125 = vpop.f32.mrf.mxu0
  %v1126 = vadd.f32 0.0, %v1125
  %v1127 = vpop.f32.mrf.mxu0
  %v1128 = vpop.f32.mrf.mxu0
  %v1129 = vadd.f32 0.0, %v1128
  %v1130 = vpop.f32.mrf.mxu0
  %1131 = vmatprep.mubr.bf16.mxu0 %v531
  %1132 = vmatmul.mubr.bf16.gmra.mxu0 %v530
  %v1133 = vpop.f32.mrf.mxu0
  %v1134 = vadd.f32 0.0, %v1133
  %v1135 = vpop.f32.mrf.mxu0
  %v1136 = vpop.f32.mrf.mxu0
  %v1137 = vadd.f32 0.0, %v1136
  %v1138 = vpop.f32.mrf.mxu0
  %1139 = vdwg.mxu0
  %1140 = vmatprep.subr.bf16.mxu0 0
  %1141 = vmatpush1.bf16.msra.mxu0 %v922
  %1142 = vmatprep.subr.bf16.mxu0 0
  %1143 = vmatpush1.bf16.msra.mxu0 %v921
  %1144 = vmatprep.subr.bf16.mxu0 0
  %1145 = vmatpush1.bf16.msra.mxu0 %v920
  %1146 = vmatprep.subr.bf16.mxu0 0
  %1147 = vmatpush1.bf16.msra.mxu0 %v919
  %1148 = vmatprep.subr.bf16.mxu0 0
  %1149 = vmatpush1.bf16.msra.mxu0 %v918
  %1150 = vmatprep.subr.bf16.mxu0 0
  %1151 = vmatpush1.bf16.msra.mxu0 %v917
  %1152 = vmatprep.subr.bf16.mxu0 0
  %1153 = vmatpush1.bf16.msra.mxu0 %v916
  %1154 = vmatprep.subr.bf16.mxu0 0
  %1155 = vmatpush1.bf16.msra.mxu0 %v915
  %1156 = vmatprep.subr.bf16.mxu0 0
  %1157 = vmatpush2.bf16.msra.mxu0 %v930
  %1158 = vmatprep.subr.bf16.mxu0 0
  %1159 = vmatpush2.bf16.msra.mxu0 %v929
  %1160 = vmatprep.subr.bf16.mxu0 0
  %1161 = vmatpush2.bf16.msra.mxu0 %v928
  %1162 = vmatprep.subr.bf16.mxu0 0
  %1163 = vmatpush2.bf16.msra.mxu0 %v927
  %1164 = vmatprep.subr.bf16.mxu0 0
  %1165 = vmatpush2.bf16.msra.mxu0 %v926
  %1166 = vmatprep.subr.bf16.mxu0 0
  %1167 = vmatpush2.bf16.msra.mxu0 %v925
  %1168 = vmatprep.subr.bf16.mxu0 0
  %1169 = vmatpush2.bf16.msra.mxu0 %v924
  %1170 = vmatprep.subr.bf16.mxu0 0
  %1171 = vmatpush2.bf16.msra.mxu0 %v923
  %1172 = vmatprep.mubr.bf16.mxu0 %v470
  %1173 = vmatmul.mubr.bf16.gmra.mxu0 %v469
  %v1174 = vpop.f32.mrf.mxu0
  %v1175 = vadd.f32 %v1078, %v1174
  %v1176 = vpop.f32.mrf.mxu0
  %v1177 = vpop.f32.mrf.mxu0
  %v1178 = vadd.f32 %v1081, %v1177
  %v1179 = vpop.f32.mrf.mxu0
  %1180 = vmatprep.mubr.bf16.mxu0 %v479
  %1181 = vmatmul.mubr.bf16.gmra.mxu0 %v478
  %v1182 = vpop.f32.mrf.mxu0
  %v1183 = vadd.f32 %v1086, %v1182
  %v1184 = vpop.f32.mrf.mxu0
  %v1185 = vpop.f32.mrf.mxu0
  %v1186 = vadd.f32 %v1089, %v1185
  %v1187 = vpop.f32.mrf.mxu0
  %1188 = vmatprep.mubr.bf16.mxu0 %v488
  %1189 = vmatmul.mubr.bf16.gmra.mxu0 %v487
  %v1190 = vpop.f32.mrf.mxu0
  %v1191 = vadd.f32 %v1094, %v1190
  %v1192 = vpop.f32.mrf.mxu0
  %v1193 = vpop.f32.mrf.mxu0
  %v1194 = vadd.f32 %v1097, %v1193
  %v1195 = vpop.f32.mrf.mxu0
  %1196 = vmatprep.mubr.bf16.mxu0 %v497
  %1197 = vmatmul.mubr.bf16.gmra.mxu0 %v496
  %v1198 = vpop.f32.mrf.mxu0
  %v1199 = vadd.f32 %v1102, %v1198
  %v1200 = vpop.f32.mrf.mxu0
  %v1201 = vpop.f32.mrf.mxu0
  %v1202 = vadd.f32 %v1105, %v1201
  %v1203 = vpop.f32.mrf.mxu0
  %1204 = vmatprep.mubr.bf16.mxu0 %v506
  %1205 = vmatmul.mubr.bf16.gmra.mxu0 %v505
  %v1206 = vpop.f32.mrf.mxu0
  %v1207 = vadd.f32 %v1110, %v1206
  %v1208 = vpop.f32.mrf.mxu0
  %v1209 = vpop.f32.mrf.mxu0
  %v1210 = vadd.f32 %v1113, %v1209
  %v1211 = vpop.f32.mrf.mxu0
  %1212 = vmatprep.mubr.bf16.mxu0 %v515
  %1213 = vmatmul.mubr.bf16.gmra.mxu0 %v514
  %v1214 = vpop.f32.mrf.mxu0
  %v1215 = vadd.f32 %v1118, %v1214
  %v1216 = vpop.f32.mrf.mxu0
  %v1217 = vpop.f32.mrf.mxu0
  %v1218 = vadd.f32 %v1121, %v1217
  %v1219 = vpop.f32.mrf.mxu0
  %1220 = vmatprep.mubr.bf16.mxu0 %v524
  %1221 = vmatmul.mubr.bf16.gmra.mxu0 %v523
  %v1222 = vpop.f32.mrf.mxu0
  %v1223 = vadd.f32 %v1126, %v1222
  %v1224 = vpop.f32.mrf.mxu0
  %v1225 = vpop.f32.mrf.mxu0
  %v1226 = vadd.f32 %v1129, %v1225
  %v1227 = vpop.f32.mrf.mxu0
  %1228 = vmatprep.mubr.bf16.mxu0 %v533
  %1229 = vmatmul.mubr.bf16.gmra.mxu0 %v532
  %v1230 = vpop.f32.mrf.mxu0
  %v1231 = vadd.f32 %v1134, %v1230
  %v1232 = vpop.f32.mrf.mxu0
  %v1233 = vpop.f32.mrf.mxu0
  %v1234 = vadd.f32 %v1137, %v1233
  %v1235 = vpop.f32.mrf.mxu0
  %1236 = vdwg.mxu0
  %1237 = vmatprep.subr.bf16.mxu0 0
  %1238 = vmatpush1.bf16.msra.mxu0 %v938
  %1239 = vmatprep.subr.bf16.mxu0 0
  %1240 = vmatpush1.bf16.msra.mxu0 %v937
  %1241 = vmatprep.subr.bf16.mxu0 0
  %1242 = vmatpush1.bf16.msra.mxu0 %v936
  %1243 = vmatprep.subr.bf16.mxu0 0
  %1244 = vmatpush1.bf16.msra.mxu0 %v935
  %1245 = vmatprep.subr.bf16.mxu0 0
  %1246 = vmatpush1.bf16.msra.mxu0 %v934
  %1247 = vmatprep.subr.bf16.mxu0 0
  %1248 = vmatpush1.bf16.msra.mxu0 %v933
  %1249 = vmatprep.subr.bf16.mxu0 0
  %1250 = vmatpush1.bf16.msra.mxu0 %v932
  %1251 = vmatprep.subr.bf16.mxu0 0
  %1252 = vmatpush1.bf16.msra.mxu0 %v931
  %1253 = vmatprep.subr.bf16.mxu0 0
  %1254 = vmatpush2.bf16.msra.mxu0 %v946
  %1255 = vmatprep.subr.bf16.mxu0 0
  %1256 = vmatpush2.bf16.msra.mxu0 %v945
  %1257 = vmatprep.subr.bf16.mxu0 0
  %1258 = vmatpush2.bf16.msra.mxu0 %v944
  %1259 = vmatprep.subr.bf16.mxu0 0
  %1260 = vmatpush2.bf16.msra.mxu0 %v943
  %1261 = vmatprep.subr.bf16.mxu0 0
  %1262 = vmatpush2.bf16.msra.mxu0 %v942
  %1263 = vmatprep.subr.bf16.mxu0 0
  %1264 = vmatpush2.bf16.msra.mxu0 %v941
  %1265 = vmatprep.subr.bf16.mxu0 0
  %1266 = vmatpush2.bf16.msra.mxu0 %v940
  %1267 = vmatprep.subr.bf16.mxu0 0
  %1268 = vmatpush2.bf16.msra.mxu0 %v939
  %1269 = vmatprep.mubr.bf16.mxu0 %v472
  %1270 = vmatmul.mubr.bf16.gmra.mxu0 %v471
  %v1271 = vpop.f32.mrf.mxu0
  %v1272 = vadd.f32 %v1175, %v1271
  %v1273 = vpop.f32.mrf.mxu0
  %v1274 = vpop.f32.mrf.mxu0
  %v1275 = vadd.f32 %v1178, %v1274
  %v1276 = vpop.f32.mrf.mxu0
  %1277 = vmatprep.mubr.bf16.mxu0 %v481
  %1278 = vmatmul.mubr.bf16.gmra.mxu0 %v480
  %v1279 = vpop.f32.mrf.mxu0
  %v1280 = vadd.f32 %v1183, %v1279
  %v1281 = vpop.f32.mrf.mxu0
  %v1282 = vpop.f32.mrf.mxu0
  %v1283 = vadd.f32 %v1186, %v1282
  %v1284 = vpop.f32.mrf.mxu0
  %1285 = vmatprep.mubr.bf16.mxu0 %v490
  %1286 = vmatmul.mubr.bf16.gmra.mxu0 %v489
  %v1287 = vpop.f32.mrf.mxu0
  %v1288 = vadd.f32 %v1191, %v1287
  %v1289 = vpop.f32.mrf.mxu0
  %v1290 = vpop.f32.mrf.mxu0
  %v1291 = vadd.f32 %v1194, %v1290
  %v1292 = vpop.f32.mrf.mxu0
  %1293 = vmatprep.mubr.bf16.mxu0 %v499
  %1294 = vmatmul.mubr.bf16.gmra.mxu0 %v498
  %v1295 = vpop.f32.mrf.mxu0
  %v1296 = vadd.f32 %v1199, %v1295
  %v1297 = vpop.f32.mrf.mxu0
  %v1298 = vpop.f32.mrf.mxu0
  %v1299 = vadd.f32 %v1202, %v1298
  %v1300 = vpop.f32.mrf.mxu0
  %1301 = vmatprep.mubr.bf16.mxu0 %v508
  %1302 = vmatmul.mubr.bf16.gmra.mxu0 %v507
  %v1303 = vpop.f32.mrf.mxu0
  %v1304 = vadd.f32 %v1207, %v1303
  %v1305 = vpop.f32.mrf.mxu0
  %v1306 = vpop.f32.mrf.mxu0
  %v1307 = vadd.f32 %v1210, %v1306
  %v1308 = vpop.f32.mrf.mxu0
  %1309 = vmatprep.mubr.bf16.mxu0 %v517
  %1310 = vmatmul.mubr.bf16.gmra.mxu0 %v516
  %v1311 = vpop.f32.mrf.mxu0
  %v1312 = vadd.f32 %v1215, %v1311
  %v1313 = vpop.f32.mrf.mxu0
  %v1314 = vpop.f32.mrf.mxu0
  %v1315 = vadd.f32 %v1218, %v1314
  %v1316 = vpop.f32.mrf.mxu0
  %1317 = vmatprep.mubr.bf16.mxu0 %v526
  %1318 = vmatmul.mubr.bf16.gmra.mxu0 %v525
  %v1319 = vpop.f32.mrf.mxu0
  %v1320 = vadd.f32 %v1223, %v1319
  %v1321 = vpop.f32.mrf.mxu0
  %v1322 = vpop.f32.mrf.mxu0
  %v1323 = vadd.f32 %v1226, %v1322
  %v1324 = vpop.f32.mrf.mxu0
  %1325 = vmatprep.mubr.bf16.mxu0 %v535
  %1326 = vmatmul.mubr.bf16.gmra.mxu0 %v534
  %v1327 = vpop.f32.mrf.mxu0
  %v1328 = vadd.f32 %v1231, %v1327
  %v1329 = vpop.f32.mrf.mxu0
  %v1330 = vpop.f32.mrf.mxu0
  %v1331 = vadd.f32 %v1234, %v1330
  %v1332 = vpop.f32.mrf.mxu0
  %1333 = vdwg.mxu0
  %1334 = vmatprep.subr.bf16.mxu0 0
  %1335 = vmatpush1.bf16.msra.mxu0 %v954
  %1336 = vmatprep.subr.bf16.mxu0 0
  %1337 = vmatpush1.bf16.msra.mxu0 %v953
  %1338 = vmatprep.subr.bf16.mxu0 0
  %1339 = vmatpush1.bf16.msra.mxu0 %v952
  %1340 = vmatprep.subr.bf16.mxu0 0
  %1341 = vmatpush1.bf16.msra.mxu0 %v951
  %1342 = vmatprep.subr.bf16.mxu0 0
  %1343 = vmatpush1.bf16.msra.mxu0 %v950
  %1344 = vmatprep.subr.bf16.mxu0 0
  %1345 = vmatpush1.bf16.msra.mxu0 %v949
  %1346 = vmatprep.subr.bf16.mxu0 0
  %1347 = vmatpush1.bf16.msra.mxu0 %v948
  %1348 = vmatprep.subr.bf16.mxu0 0
  %1349 = vmatpush1.bf16.msra.mxu0 %v947
  %1350 = vmatprep.subr.bf16.mxu0 0
  %1351 = vmatpush2.bf16.msra.mxu0 %v962
  %1352 = vmatprep.subr.bf16.mxu0 0
  %1353 = vmatpush2.bf16.msra.mxu0 %v961
  %1354 = vmatprep.subr.bf16.mxu0 0
  %1355 = vmatpush2.bf16.msra.mxu0 %v960
  %1356 = vmatprep.subr.bf16.mxu0 0
  %1357 = vmatpush2.bf16.msra.mxu0 %v959
  %1358 = vmatprep.subr.bf16.mxu0 0
  %1359 = vmatpush2.bf16.msra.mxu0 %v958
  %1360 = vmatprep.subr.bf16.mxu0 0
  %1361 = vmatpush2.bf16.msra.mxu0 %v957
  %1362 = vmatprep.subr.bf16.mxu0 0
  %1363 = vmatpush2.bf16.msra.mxu0 %v956
  %1364 = vmatprep.subr.bf16.mxu0 0
  %1365 = vmatpush2.bf16.msra.mxu0 %v955
  %1366 = vmatprep.mubr.bf16.mxu0 %v474
  %1367 = vmatmul.mubr.bf16.gmra.mxu0 %v473
  %v1368 = vpop.f32.mrf.mxu0
  %v1369 = vadd.f32 %v1272, %v1368
  %v1370 = vpop.f32.mrf.mxu0
  %v1371 = vpop.f32.mrf.mxu0
  %v1372 = vadd.f32 %v1275, %v1371
  %v1373 = vpop.f32.mrf.mxu0
  %1374 = vmatprep.mubr.bf16.mxu0 %v483
  %1375 = vmatmul.mubr.bf16.gmra.mxu0 %v482
  %v1376 = vpop.f32.mrf.mxu0
  %v1377 = vadd.f32 %v1280, %v1376
  %v1378 = vpop.f32.mrf.mxu0
  %v1379 = vpop.f32.mrf.mxu0
  %v1380 = vadd.f32 %v1283, %v1379
  %v1381 = vpop.f32.mrf.mxu0
  %1382 = vmatprep.mubr.bf16.mxu0 %v492
  %1383 = vmatmul.mubr.bf16.gmra.mxu0 %v491
  %v1384 = vpop.f32.mrf.mxu0
  %v1385 = vadd.f32 %v1288, %v1384
  %v1386 = vpop.f32.mrf.mxu0
  %v1387 = vpop.f32.mrf.mxu0
  %v1388 = vadd.f32 %v1291, %v1387
  %v1389 = vpop.f32.mrf.mxu0
  %1390 = vmatprep.mubr.bf16.mxu0 %v501
  %1391 = vmatmul.mubr.bf16.gmra.mxu0 %v500
  %v1392 = vpop.f32.mrf.mxu0
  %v1393 = vadd.f32 %v1296, %v1392
  %v1394 = vpop.f32.mrf.mxu0
  %v1395 = vpop.f32.mrf.mxu0
  %v1396 = vadd.f32 %v1299, %v1395
  %v1397 = vpop.f32.mrf.mxu0
  %1398 = vmatprep.mubr.bf16.mxu0 %v510
  %1399 = vmatmul.mubr.bf16.gmra.mxu0 %v509
  %v1400 = vpop.f32.mrf.mxu0
  %v1401 = vadd.f32 %v1304, %v1400
  %v1402 = vpop.f32.mrf.mxu0
  %v1403 = vpop.f32.mrf.mxu0
  %v1404 = vadd.f32 %v1307, %v1403
  %v1405 = vpop.f32.mrf.mxu0
  %1406 = vmatprep.mubr.bf16.mxu0 %v519
  %1407 = vmatmul.mubr.bf16.gmra.mxu0 %v518
  %v1408 = vpop.f32.mrf.mxu0
  %v1409 = vadd.f32 %v1312, %v1408
  %v1410 = vpop.f32.mrf.mxu0
  %v1411 = vpop.f32.mrf.mxu0
  %v1412 = vadd.f32 %v1315, %v1411
  %v1413 = vpop.f32.mrf.mxu0
  %1414 = vmatprep.mubr.bf16.mxu0 %v528
  %1415 = vmatmul.mubr.bf16.gmra.mxu0 %v527
  %v1416 = vpop.f32.mrf.mxu0
  %v1417 = vadd.f32 %v1320, %v1416
  %v1418 = vpop.f32.mrf.mxu0
  %v1419 = vpop.f32.mrf.mxu0
  %v1420 = vadd.f32 %v1323, %v1419
  %v1421 = vpop.f32.mrf.mxu0
  %1422 = vmatprep.mubr.bf16.mxu0 %v537
  %1423 = vmatmul.mubr.bf16.gmra.mxu0 %v536
  %v1424 = vpop.f32.mrf.mxu0
  %v1425 = vadd.f32 %v1328, %v1424
  %v1426 = vpop.f32.mrf.mxu0
  %v1427 = vpop.f32.mrf.mxu0
  %v1428 = vadd.f32 %v1331, %v1427
  %v1429 = vpop.f32.mrf.mxu0
  %1430 = vdwg.mxu0
  %1431 = vmatprep.subr.bf16.mxu0 0
  %1432 = vmatpush1.bf16.msra.mxu0 %v970
  %1433 = vmatprep.subr.bf16.mxu0 0
  %1434 = vmatpush1.bf16.msra.mxu0 %v969
  %1435 = vmatprep.subr.bf16.mxu0 0
  %1436 = vmatpush1.bf16.msra.mxu0 %v968
  %1437 = vmatprep.subr.bf16.mxu0 0
  %1438 = vmatpush1.bf16.msra.mxu0 %v967
  %1439 = vmatprep.subr.bf16.mxu0 0
  %1440 = vmatpush1.bf16.msra.mxu0 %v966
  %1441 = vmatprep.subr.bf16.mxu0 0
  %1442 = vmatpush1.bf16.msra.mxu0 %v965
  %1443 = vmatprep.subr.bf16.mxu0 0
  %1444 = vmatpush1.bf16.msra.mxu0 %v964
  %1445 = vmatprep.subr.bf16.mxu0 0
  %1446 = vmatpush1.bf16.msra.mxu0 %v963
  %1447 = vmatprep.subr.bf16.mxu0 0
  %1448 = vmatpush2.bf16.msra.mxu0 0
  %1449 = vmatprep.subr.bf16.mxu0 0
  %1450 = vmatpush2.bf16.msra.mxu0 0
  %1451 = vmatprep.subr.bf16.mxu0 0
  %1452 = vmatpush2.bf16.msra.mxu0 0
  %1453 = vmatprep.subr.bf16.mxu0 0
  %1454 = vmatpush2.bf16.msra.mxu0 0
  %1455 = vmatprep.subr.bf16.mxu0 0
  %1456 = vmatpush2.bf16.msra.mxu0 0
  %1457 = vmatprep.subr.bf16.mxu0 0
  %1458 = vmatpush2.bf16.msra.mxu0 0
  %1459 = vmatprep.subr.bf16.mxu0 0
  %1460 = vmatpush2.bf16.msra.mxu0 0
  %1461 = vmatprep.subr.bf16.mxu0 0
  %1462 = vmatpush2.bf16.msra.mxu0 0
  %1463 = vmatprep.mubr.bf16.mxu0 0
  %1464 = vmatmul.mubr.bf16.gmra.mxu0 %v475
  %v1465 = vpop.f32.mrf.mxu0
  %v1466 = vadd.f32 %v1369, %v1465
  %v1467 = vpop.f32.mrf.mxu0
  %v1468 = vpop.f32.mrf.mxu0
  %v1469 = vadd.f32 %v1372, %v1468
  %v1470 = vpop.f32.mrf.mxu0
  %1471 = vmatprep.mubr.bf16.mxu0 0
  %1472 = vmatmul.mubr.bf16.gmra.mxu0 %v484
  %v1473 = vpop.f32.mrf.mxu0
  %v1474 = vadd.f32 %v1377, %v1473
  %v1475 = vpop.f32.mrf.mxu0
  %v1476 = vpop.f32.mrf.mxu0
  %v1477 = vadd.f32 %v1380, %v1476
  %v1478 = vpop.f32.mrf.mxu0
  %1479 = vmatprep.mubr.bf16.mxu0 0
  %1480 = vmatmul.mubr.bf16.gmra.mxu0 %v493
  %v1481 = vpop.f32.mrf.mxu0
  %v1482 = vadd.f32 %v1385, %v1481
  %v1483 = vpop.f32.mrf.mxu0
  %v1484 = vpop.f32.mrf.mxu0
  %v1485 = vadd.f32 %v1388, %v1484
  %v1486 = vpop.f32.mrf.mxu0
  %1487 = vmatprep.mubr.bf16.mxu0 0
  %1488 = vmatmul.mubr.bf16.gmra.mxu0 %v502
  %v1489 = vpop.f32.mrf.mxu0
  %v1490 = vadd.f32 %v1393, %v1489
  %v1491 = vpop.f32.mrf.mxu0
  %v1492 = vpop.f32.mrf.mxu0
  %v1493 = vadd.f32 %v1396, %v1492
  %v1494 = vpop.f32.mrf.mxu0
  %1495 = vmatprep.mubr.bf16.mxu0 0
  %1496 = vmatmul.mubr.bf16.gmra.mxu0 %v511
  %v1497 = vpop.f32.mrf.mxu0
  %v1498 = vadd.f32 %v1401, %v1497
  %v1499 = vpop.f32.mrf.mxu0
  %v1500 = vpop.f32.mrf.mxu0
  %v1501 = vadd.f32 %v1404, %v1500
  %v1502 = vpop.f32.mrf.mxu0
  %1503 = vmatprep.mubr.bf16.mxu0 0
  %1504 = vmatmul.mubr.bf16.gmra.mxu0 %v520
  %v1505 = vpop.f32.mrf.mxu0
  %v1506 = vadd.f32 %v1409, %v1505
  %v1507 = vpop.f32.mrf.mxu0
  %v1508 = vpop.f32.mrf.mxu0
  %v1509 = vadd.f32 %v1412, %v1508
  %v1510 = vpop.f32.mrf.mxu0
  %1511 = vmatprep.mubr.bf16.mxu0 0
  %1512 = vmatmul.mubr.bf16.gmra.mxu0 %v529
  %v1513 = vpop.f32.mrf.mxu0
  %v1514 = vadd.f32 %v1417, %v1513
  %v1515 = vpop.f32.mrf.mxu0
  %v1516 = vpop.f32.mrf.mxu0
  %v1517 = vadd.f32 %v1420, %v1516
  %v1518 = vpop.f32.mrf.mxu0
  %1519 = vmatprep.mubr.bf16.mxu0 0
  %1520 = vmatmul.mubr.bf16.gmra.mxu0 %v538
  %v1521 = vpop.f32.mrf.mxu0
  %v1522 = vadd.f32 %v1425, %v1521
  %v1523 = vpop.f32.mrf.mxu0
  %v1524 = vpop.f32.mrf.mxu0
  %v1525 = vadd.f32 %v1428, %v1524
  %v1526 = vpop.f32.mrf.mxu0
  %1527 = vdwg.mxu0
  %v1528 = vpack.c.bf16 %v1469, %v1466
  %v1529 = vpack.c.bf16 %v1477, %v1474
  %v1530 = vpack.c.bf16 %v1485, %v1482
  %v1531 = vpack.c.bf16 %v1493, %v1490
  %v1532 = vpack.c.bf16 %v1501, %v1498
  %v1533 = vpack.c.bf16 %v1509, %v1506
  %v1534 = vpack.c.bf16 %v1517, %v1514
  %v1535 = vpack.c.bf16 %v1525, %v1522
  %v1544 = vunpack.c.l.b16 %v1528
  %v1545 = vunpack.c.h.b16 %v1528
  %v1546 = vunpack.c.l.b16 %v1529
  %v1547 = vunpack.c.h.b16 %v1529
  %v1548 = vunpack.c.l.b16 %v1530
  %v1549 = vunpack.c.h.b16 %v1530
  %v1550 = vunpack.c.l.b16 %v1531
  %v1551 = vunpack.c.h.b16 %v1531
  %v1552 = vunpack.c.l.b16 %v1532
  %v1553 = vunpack.c.h.b16 %v1532
  %v1554 = vunpack.c.l.b16 %v1533
  %v1555 = vunpack.c.h.b16 %v1533
  %v1556 = vunpack.c.l.b16 %v1534
  %v1557 = vunpack.c.h.b16 %v1534
  %v1558 = vunpack.c.l.b16 %v1535
  %v1559 = vunpack.c.h.b16 %v1535
  %v1560 = vpack.c.b16 %v1544, %v1544
  %v1561 = vpack.c.b16 %v1545, %v1545
  %v1562 = vpack.c.b16 %v1546, %v1546
  %v1563 = vpack.c.b16 %v1547, %v1547
  %v1564 = vpack.c.b16 %v1548, %v1548
  %v1565 = vpack.c.b16 %v1549, %v1549
  %v1566 = vpack.c.b16 %v1550, %v1550
  %v1567 = vpack.c.b16 %v1551, %v1551
  %v1568 = vpack.c.b16 %v1552, %v1552
  %v1569 = vpack.c.b16 %v1553, %v1553
  %v1570 = vpack.c.b16 %v1554, %v1554
  %v1571 = vpack.c.b16 %v1555, %v1555
  %v1572 = vpack.c.b16 %v1556, %v1556
  %v1573 = vpack.c.b16 %v1557, %v1557
  %v1574 = vpack.c.b16 %v1558, %v1558
  %v1575 = vpack.c.b16 %v1559, %v1559
  %1592 = vst [vmem:[%s3] sm:$0xf] %v1560
  %1593 = vst [vmem:[%s3 + $0x4] sm:$0xf] %v1561
  %1594 = vst [vmem:[%s3 + $0x8] sm:$0xf] %v1562
  %1595 = vst [vmem:[%s3 + $0xc] sm:$0xf] %v1563
  %1596 = vst [vmem:[%s3 + $0x10] sm:$0xf] %v1564
  %1597 = vst [vmem:[%s3 + $0x14] sm:$0xf] %v1565
  %1598 = vst [vmem:[%s3 + $0x18] sm:$0xf] %v1566
  %1599 = vst [vmem:[%s3 + $0x1c] sm:$0xf] %v1567
  %1600 = vst [vmem:[%s3 + $0x20] sm:$0xf] %v1568
  %1601 = vst [vmem:[%s3 + $0x24] sm:$0xf] %v1569
  %1602 = vst [vmem:[%s3 + $0x28] sm:$0xf] %v1570
  %1603 = vst [vmem:[%s3 + $0x2c] sm:$0xf] %v1571
  %1604 = vst [vmem:[%s3 + $0x30] sm:$0xf] %v1572
  %1605 = vst [vmem:[%s3 + $0x34] sm:$0xf] %v1573
  %1606 = vst [vmem:[%s3 + $0x38] sm:$0xf] %v1574
  %1607 = vst [vmem:[%s3 + $0x3c] sm:$0xf] %v1575
  %v1608 = vadd.f32 %v1466, %v1469
  %v1609 = vadd.f32 %v1608, %v1474
  %v1610 = vadd.f32 %v1609, %v1477
  %v1611 = vadd.f32 %v1610, %v1482
  %v1612 = vadd.f32 %v1611, %v1485
  %v1613 = vadd.f32 %v1612, %v1490
  %v1614 = vadd.f32 %v1613, %v1493
  %v1615 = vadd.f32 %v1614, %v1498
  %v1616 = vadd.f32 %v1615, %v1501
  %v1617 = vadd.f32 %v1616, %v1506
  %v1618 = vadd.f32 %v1617, %v1509
  %v1619 = vadd.f32 %v1618, %v1514
  %v1620 = vadd.f32 %v1619, %v1517
  %v1621 = vadd.f32 %v1620, %v1522
  %v1622 = vadd.f32 %v1621, %v1525
  %v1623 = vrot.slane %v1622, 4
  %v1624 = vadd.f32 %v1622, %v1623
  %v1625 = vrot.slane %v1624, 2
  %v1626 = vadd.f32 %v1624, %v1625
  %v1627 = vrot.slane %v1626, 1
  %v1628 = vadd.f32 %v1626, %v1627
  %v1629 = vmul.f32 %v1466, %v1466
  %v1630 = vmul.f32 %v1469, %v1469
  %v1631 = vmul.f32 %v1474, %v1474
  %v1632 = vmul.f32 %v1477, %v1477
  %v1633 = vmul.f32 %v1482, %v1482
  %v1634 = vmul.f32 %v1485, %v1485
  %v1635 = vmul.f32 %v1490, %v1490
  %v1636 = vmul.f32 %v1493, %v1493
  %v1637 = vmul.f32 %v1498, %v1498
  %v1638 = vmul.f32 %v1501, %v1501
  %v1639 = vmul.f32 %v1506, %v1506
  %v1640 = vmul.f32 %v1509, %v1509
  %v1641 = vmul.f32 %v1514, %v1514
  %v1642 = vmul.f32 %v1517, %v1517
  %v1643 = vmul.f32 %v1522, %v1522
  %v1644 = vmul.f32 %v1525, %v1525
  %v1645 = vadd.f32 %v1629, %v1630
  %v1646 = vadd.f32 %v1645, %v1631
  %v1647 = vadd.f32 %v1646, %v1632
  %v1648 = vadd.f32 %v1647, %v1633
  %v1649 = vadd.f32 %v1648, %v1634
  %v1650 = vadd.f32 %v1649, %v1635
  %v1651 = vadd.f32 %v1650, %v1636
  %v1652 = vadd.f32 %v1651, %v1637
  %v1653 = vadd.f32 %v1652, %v1638
  %v1654 = vadd.f32 %v1653, %v1639
  %v1655 = vadd.f32 %v1654, %v1640
  %v1656 = vadd.f32 %v1655, %v1641
  %v1657 = vadd.f32 %v1656, %v1642
  %v1658 = vadd.f32 %v1657, %v1643
  %v1659 = vadd.f32 %v1658, %v1644
  %v1660 = vrot.slane %v1659, 4
  %v1661 = vadd.f32 %v1659, %v1660
  %v1662 = vrot.slane %v1661, 2
  %v1663 = vadd.f32 %v1661, %v1662
  %v1664 = vrot.slane %v1663, 1
  %v1665 = vadd.f32 %v1663, %v1664
  %vm1666 = vcmask 1040384
  %v1667 = vsel %vm1666, %v1628, %v1665
  %1668 = vst [vmem:[%s4] sm:$0x3] %v1667
  %v1669 = vld [vmem:[%s2] sm:$0xf]
  %v1670 = vld [vmem:[%s2 + $0x4] sm:$0xf]
  %v1671 = vld [vmem:[%s2 + $0x8] sm:$0xf]
  %v1672 = vld [vmem:[%s2 + $0xc] sm:$0xf]
  %v1673 = vld [vmem:[%s2 + $0x10] sm:$0xf]
  %v1674 = vld [vmem:[%s2 + $0x14] sm:$0xf]
  %v1675 = vld [vmem:[%s2 + $0x18] sm:$0xf]
  %v1676 = vld [vmem:[%s2 + $0x1c] sm:$0xf]
  %v1677 = vld [vmem:[%s2 + $0x20] sm:$0xf]
  %v1678 = vld [vmem:[%s2 + $0x24] sm:$0xf]
  %v1679 = vld [vmem:[%s2 + $0x28] sm:$0xf]
  %v1680 = vld [vmem:[%s2 + $0x2c] sm:$0xf]
  %v1681 = vld [vmem:[%s2 + $0x30] sm:$0xf]
  %v1682 = vld [vmem:[%s2 + $0x34] sm:$0xf]
  %v1683 = vld [vmem:[%s2 + $0x38] sm:$0xf]
  %v1684 = vld [vmem:[%s2 + $0x3c] sm:$0xf]
  %v1701 = vunpack.c.l.b16 %v1669
  %v1702 = vunpack.c.l.b16 %v1670
  %v1703 = vunpack.c.l.b16 %v1671
  %v1704 = vunpack.c.l.b16 %v1672
  %v1705 = vunpack.c.l.b16 %v1673
  %v1706 = vunpack.c.l.b16 %v1674
  %v1707 = vunpack.c.l.b16 %v1675
  %v1708 = vunpack.c.l.b16 %v1676
  %v1709 = vunpack.c.l.b16 %v1677
  %v1710 = vunpack.c.l.b16 %v1678
  %v1711 = vunpack.c.l.b16 %v1679
  %v1712 = vunpack.c.l.b16 %v1680
  %v1713 = vunpack.c.l.b16 %v1681
  %v1714 = vunpack.c.l.b16 %v1682
  %v1715 = vunpack.c.l.b16 %v1683
  %v1716 = vunpack.c.l.b16 %v1684
  %v1717 = vpack.c.b16 %v1702, %v1701
  %v1718 = vpack.c.b16 %v1704, %v1703
  %v1719 = vpack.c.b16 %v1706, %v1705
  %v1720 = vpack.c.b16 %v1708, %v1707
  %v1721 = vpack.c.b16 %v1710, %v1709
  %v1722 = vpack.c.b16 %v1712, %v1711
  %v1723 = vpack.c.b16 %v1714, %v1713
  %v1724 = vpack.c.b16 %v1716, %v1715
  %1733 = vmatprep.subr.bf16.mxu0 0
  %1734 = vmatpush1.bf16.msra.mxu0 %v1724
  %1735 = vmatprep.subr.bf16.mxu0 0
  %1736 = vmatpush1.bf16.msra.mxu0 %v1723
  %1737 = vmatprep.subr.bf16.mxu0 0
  %1738 = vmatpush1.bf16.msra.mxu0 %v1722
  %1739 = vmatprep.subr.bf16.mxu0 0
  %1740 = vmatpush1.bf16.msra.mxu0 %v1721
  %1741 = vmatprep.subr.bf16.mxu0 0
  %1742 = vmatpush1.bf16.msra.mxu0 %v1720
  %1743 = vmatprep.subr.bf16.mxu0 0
  %1744 = vmatpush1.bf16.msra.mxu0 %v1719
  %1745 = vmatprep.subr.bf16.mxu0 0
  %1746 = vmatpush1.bf16.msra.mxu0 %v1718
  %1747 = vmatprep.subr.bf16.mxu0 0
  %1748 = vmatpush1.bf16.msra.mxu0 %v1717
  %1749 = vmatprep.subr.bf16.mxu0 0
  %1750 = vmatpush2.bf16.msra.mxu0 0
  %1751 = vmatprep.subr.bf16.mxu0 0
  %1752 = vmatpush2.bf16.msra.mxu0 0
  %1753 = vmatprep.subr.bf16.mxu0 0
  %1754 = vmatpush2.bf16.msra.mxu0 0
  %1755 = vmatprep.subr.bf16.mxu0 0
  %1756 = vmatpush2.bf16.msra.mxu0 0
  %1757 = vmatprep.subr.bf16.mxu0 0
  %1758 = vmatpush2.bf16.msra.mxu0 0
  %1759 = vmatprep.subr.bf16.mxu0 0
  %1760 = vmatpush2.bf16.msra.mxu0 0
  %1761 = vmatprep.subr.bf16.mxu0 0
  %1762 = vmatpush2.bf16.msra.mxu0 0
  %1763 = vmatprep.subr.bf16.mxu0 0
  %1764 = vmatpush2.bf16.msra.mxu0 0
  %1765 = vmatprep.mubr.bf16.mxu0 0
  %1766 = vmatmul.mubr.bf16.gmra.mxu0 %v471
  %v1767 = vpop.f32.mrf.mxu0
  %v1768 = vadd.f32 0.0, %v1767
  %v1769 = vpop.f32.mrf.mxu0
  %v1770 = vpop.f32.mrf.mxu0
  %v1771 = vadd.f32 0.0, %v1770
  %v1772 = vpop.f32.mrf.mxu0
  %1773 = vmatprep.mubr.bf16.mxu0 0
  %1774 = vmatmul.mubr.bf16.gmra.mxu0 %v480
  %v1775 = vpop.f32.mrf.mxu0
  %v1776 = vadd.f32 0.0, %v1775
  %v1777 = vpop.f32.mrf.mxu0
  %v1778 = vpop.f32.mrf.mxu0
  %v1779 = vadd.f32 0.0, %v1778
  %v1780 = vpop.f32.mrf.mxu0
  %1781 = vmatprep.mubr.bf16.mxu0 0
  %1782 = vmatmul.mubr.bf16.gmra.mxu0 %v489
  %v1783 = vpop.f32.mrf.mxu0
  %v1784 = vadd.f32 0.0, %v1783
  %v1785 = vpop.f32.mrf.mxu0
  %v1786 = vpop.f32.mrf.mxu0
  %v1787 = vadd.f32 0.0, %v1786
  %v1788 = vpop.f32.mrf.mxu0
  %1789 = vmatprep.mubr.bf16.mxu0 0
  %1790 = vmatmul.mubr.bf16.gmra.mxu0 %v498
  %v1791 = vpop.f32.mrf.mxu0
  %v1792 = vadd.f32 0.0, %v1791
  %v1793 = vpop.f32.mrf.mxu0
  %v1794 = vpop.f32.mrf.mxu0
  %v1795 = vadd.f32 0.0, %v1794
  %v1796 = vpop.f32.mrf.mxu0
  %1797 = vmatprep.mubr.bf16.mxu0 0
  %1798 = vmatmul.mubr.bf16.gmra.mxu0 %v507
  %v1799 = vpop.f32.mrf.mxu0
  %v1800 = vadd.f32 0.0, %v1799
  %v1801 = vpop.f32.mrf.mxu0
  %v1802 = vpop.f32.mrf.mxu0
  %v1803 = vadd.f32 0.0, %v1802
  %v1804 = vpop.f32.mrf.mxu0
  %1805 = vmatprep.mubr.bf16.mxu0 0
  %1806 = vmatmul.mubr.bf16.gmra.mxu0 %v516
  %v1807 = vpop.f32.mrf.mxu0
  %v1808 = vadd.f32 0.0, %v1807
  %v1809 = vpop.f32.mrf.mxu0
  %v1810 = vpop.f32.mrf.mxu0
  %v1811 = vadd.f32 0.0, %v1810
  %v1812 = vpop.f32.mrf.mxu0
  %1813 = vmatprep.mubr.bf16.mxu0 0
  %1814 = vmatmul.mubr.bf16.gmra.mxu0 %v525
  %v1815 = vpop.f32.mrf.mxu0
  %v1816 = vadd.f32 0.0, %v1815
  %v1817 = vpop.f32.mrf.mxu0
  %v1818 = vpop.f32.mrf.mxu0
  %v1819 = vadd.f32 0.0, %v1818
  %v1820 = vpop.f32.mrf.mxu0
  %1821 = vmatprep.mubr.bf16.mxu0 0
  %1822 = vmatmul.mubr.bf16.gmra.mxu0 %v534
  %v1823 = vpop.f32.mrf.mxu0
  %v1824 = vadd.f32 0.0, %v1823
  %v1825 = vpop.f32.mrf.mxu0
  %v1826 = vpop.f32.mrf.mxu0
  %v1827 = vadd.f32 0.0, %v1826
  %v1828 = vpop.f32.mrf.mxu0
  %1829 = vdwg.mxu0
  %1830 = vst [vmem:[%s5] sm:$0xff] %v1768
  %1831 = vst [vmem:[%s5 + $0x8] sm:$0xff] %v1771
  %1832 = vst [vmem:[%s5 + $0x10] sm:$0xff] %v1776
  %1833 = vst [vmem:[%s5 + $0x18] sm:$0xff] %v1779
  %1834 = vst [vmem:[%s5 + $0x20] sm:$0xff] %v1784
  %1835 = vst [vmem:[%s5 + $0x28] sm:$0xff] %v1787
  %1836 = vst [vmem:[%s5 + $0x30] sm:$0xff] %v1792
  %1837 = vst [vmem:[%s5 + $0x38] sm:$0xff] %v1795
  %1838 = vst [vmem:[%s5 + $0x40] sm:$0xff] %v1800
  %1839 = vst [vmem:[%s5 + $0x48] sm:$0xff] %v1803
  %1840 = vst [vmem:[%s5 + $0x50] sm:$0xff] %v1808
  %1841 = vst [vmem:[%s5 + $0x58] sm:$0xff] %v1811
  %1842 = vst [vmem:[%s5 + $0x60] sm:$0xff] %v1816
  %1843 = vst [vmem:[%s5 + $0x68] sm:$0xff] %v1819
  %1844 = vst [vmem:[%s5 + $0x70] sm:$0xff] %v1824
  %1845 = vst [vmem:[%s5 + $0x78] sm:$0xff] %v1827
  %v1846 = vadd.f32 %v1768, %v1771
  %v1847 = vadd.f32 %v1846, %v1776
  %v1848 = vadd.f32 %v1847, %v1779
  %v1849 = vadd.f32 %v1848, %v1784
  %v1850 = vadd.f32 %v1849, %v1787
  %v1851 = vadd.f32 %v1850, %v1792
  %v1852 = vadd.f32 %v1851, %v1795
  %v1853 = vadd.f32 %v1852, %v1800
  %v1854 = vadd.f32 %v1853, %v1803
  %v1855 = vadd.f32 %v1854, %v1808
  %v1856 = vadd.f32 %v1855, %v1811
  %v1857 = vadd.f32 %v1856, %v1816
  %v1858 = vadd.f32 %v1857, %v1819
  %v1859 = vadd.f32 %v1858, %v1824
  %v1860 = vadd.f32 %v1859, %v1827
  %v1861 = vrot.slane %v1860, 4
  %v1862 = vadd.f32 %v1860, %v1861
  %v1863 = vrot.slane %v1862, 2
  %v1864 = vadd.f32 %v1862, %v1863
  %v1865 = vrot.slane %v1864, 1
  %v1866 = vadd.f32 %v1864, %v1865
  %v1867 = vmul.f32 %v1768, %v1768
  %v1868 = vmul.f32 %v1771, %v1771
  %v1869 = vmul.f32 %v1776, %v1776
  %v1870 = vmul.f32 %v1779, %v1779
  %v1871 = vmul.f32 %v1784, %v1784
  %v1872 = vmul.f32 %v1787, %v1787
  %v1873 = vmul.f32 %v1792, %v1792
  %v1874 = vmul.f32 %v1795, %v1795
  %v1875 = vmul.f32 %v1800, %v1800
  %v1876 = vmul.f32 %v1803, %v1803
  %v1877 = vmul.f32 %v1808, %v1808
  %v1878 = vmul.f32 %v1811, %v1811
  %v1879 = vmul.f32 %v1816, %v1816
  %v1880 = vmul.f32 %v1819, %v1819
  %v1881 = vmul.f32 %v1824, %v1824
  %v1882 = vmul.f32 %v1827, %v1827
  %v1883 = vadd.f32 %v1867, %v1868
  %v1884 = vadd.f32 %v1883, %v1869
  %v1885 = vadd.f32 %v1884, %v1870
  %v1886 = vadd.f32 %v1885, %v1871
  %v1887 = vadd.f32 %v1886, %v1872
  %v1888 = vadd.f32 %v1887, %v1873
  %v1889 = vadd.f32 %v1888, %v1874
  %v1890 = vadd.f32 %v1889, %v1875
  %v1891 = vadd.f32 %v1890, %v1876
  %v1892 = vadd.f32 %v1891, %v1877
  %v1893 = vadd.f32 %v1892, %v1878
  %v1894 = vadd.f32 %v1893, %v1879
  %v1895 = vadd.f32 %v1894, %v1880
  %v1896 = vadd.f32 %v1895, %v1881
  %v1897 = vadd.f32 %v1896, %v1882
  %v1898 = vrot.slane %v1897, 4
  %v1899 = vadd.f32 %v1897, %v1898
  %v1900 = vrot.slane %v1899, 2
  %v1901 = vadd.f32 %v1899, %v1900
  %v1902 = vrot.slane %v1901, 1
  %v1903 = vadd.f32 %v1901, %v1902
  %v1904 = vsel %vm1666, %v1866, %v1903
  %1905 = vst [vmem:[%s6] sm:$0x3] %v1904
  // Predicated region
  $region14: #{basic_block_forward.4} parent=0 // pred_check
    _
  $region15: #{basic_block_forward.4} parent=0 // pred_check_branch
    %1907 = sbr.rel (0) target = $region17
  $region16: #{basic_block_forward.4} parent=0 // pred_region
    _
  $region17: #{basic_block_forward.4} parent=0 // pred_fallthru
    _
  // Predicated region
  $region18: #{basic_block_forward.4} parent=0 // pred_check
    _
  $region19: #{basic_block_forward.4} parent=0 // pred_check_branch
    %1909 = sbr.rel (0) target = $region21
  $region20: #{basic_block_forward.4} parent=0 // pred_region
    _
  $region21: #{basic_block_forward.4} parent=0 // pred_fallthru
    _
  // Predicated region
  $region22: #{basic_block_forward.4} parent=0 // pred_check
    _
  $region23: #{basic_block_forward.4} parent=0 // pred_check_branch
    %1911 = sbr.rel (0) target = $region25
  $region24: #{basic_block_forward.4} parent=0 // pred_region
    _
  $region25: #{basic_block_forward.4} parent=0 // pred_fallthru
    _
  // Predicated region
  $region26: #{basic_block_forward.4} parent=0 // pred_check
    _
  $region27: #{basic_block_forward.4} parent=0 // pred_check_branch
    %1913 = sbr.rel (0) target = $region29
  $region28: #{basic_block_forward.4} parent=0 // pred_region
    _
  $region29: #{basic_block_forward.4} parent=0 // pred_fallthru
    _
  // Predicated region
  $region30: #{basic_block_forward.4} parent=0 // pred_check
    _
  $region31: #{basic_block_forward.4} parent=0 // pred_check_branch
    %1915 = sbr.rel (0) target = $region33
  $region32: #{basic_block_forward.4} parent=0 // pred_region
    _
  $region33: #{basic_block_forward.4} parent=0 // pred_fallthru
    _
  // Predicated region
  $region34: #{basic_block_forward.4} parent=0 // pred_check
    _
  $region35: #{basic_block_forward.4} parent=0 // pred_check_branch
    %1917 = sbr.rel (0) target = $region37
  $region36: #{basic_block_forward.4} parent=0 // pred_region
    _
  $region37: #{basic_block_forward.4} parent=0 // pred_fallthru
    _
  // Predicated region
  $region38: #{basic_block_forward.4} parent=0 // pred_check
    _
  $region39: #{basic_block_forward.4} parent=0 // pred_check_branch
    %1919 = sbr.rel (0) target = $region41
  $region40: #{basic_block_forward.4} parent=0 // pred_region
    _
  $region41: #{basic_block_forward.4} parent=0 // pred_fallthru
    _
  // Predicated region
  $region42: #{basic_block_forward.4} parent=0 // pred_check
    _
  $region43: #{basic_block_forward.4} parent=0 // pred_check_branch
    %1921 = sbr.rel (0) target = $region45
  $region44: #{basic_block_forward.4} parent=0 // pred_region
    _
  $region45: #{basic_block_forward.4} parent=0 // pred_fallthru
    _

// kernel: basic_block_forward.7
$region0: #{basic_block_forward.7}
  #allocation0 [shape = 'u32[]', space=smem, size = 0x4, offset = 0x4, fixed_abs, tag = 'smem constant byte address 0x4 - core index']
  #allocation1 [shape = 'u32[144,128]{1,0:T(1,128)}', space=vmem, size = 0x12000, scoped, tag = 'internal scratch']
  %s0 = inlined_call_operand.vmem [shape: f32[128,128], index: 0, kind: input, shape index: {}]
  %s1 = inlined_call_operand.vmem [shape: f32[128,128], index: 1, kind: input, shape index: {}]
  %s2 = inlined_call_operand.vmem [shape: f32[1,128], index: 2, kind: input, shape index: {}]
  %s3 = inlined_call_operand.vmem [shape: f32[1,128], index: 3, kind: input, shape index: {}]
  %s4 = inlined_call_operand.vmem [shape: f32[1,128], index: 4, kind: input, shape index: {}]
  %s5 = inlined_call_operand.vmem [shape: f32[1,128], index: 5, kind: input, shape index: {}]
  %s6 = inlined_call_operand.vmem [shape: f32[128,128], index: 6, kind: output, shape index: {0}]
  %s7 = inlined_call_operand.vmem [shape: f32[128,128], index: 7, kind: output, shape index: {1}]
  %8 = xla_tuple %s6, %s7
  %s9 = sld [smem:[#allocation0]]
  $region42: #{basic_block_forward.7} parent=0
    _
  %s11 = ssub.s32 1, %s9
  %s12 = scalar_select 0, %s11, %s9
  // Predicated region
  $region2: #{basic_block_forward.7} parent=0 // pred_check
    _
  $region3: #{basic_block_forward.7} parent=0 // pred_check_branch
    %14 = sbr.rel (0) target = $region5
  $region4: #{basic_block_forward.7} parent=0 // pred_region
    _
  $region5: #{basic_block_forward.7} parent=0 // pred_fallthru
    _
  // Predicated region
  $region6: #{basic_block_forward.7} parent=0 // pred_check
    _
  $region7: #{basic_block_forward.7} parent=0 // pred_check_branch
    %16 = sbr.rel (0) target = $region9
  $region8: #{basic_block_forward.7} parent=0 // pred_region
    _
  $region9: #{basic_block_forward.7} parent=0 // pred_fallthru
    _
  // Predicated region
  $region10: #{basic_block_forward.7} parent=0 // pred_check
    _
  $region11: #{basic_block_forward.7} parent=0 // pred_check_branch
    %18 = sbr.rel (0) target = $region13
  $region12: #{basic_block_forward.7} parent=0 // pred_region
    _
  $region13: #{basic_block_forward.7} parent=0 // pred_fallthru
    _
  // Predicated region
  $region14: #{basic_block_forward.7} parent=0 // pred_check
    _
  $region15: #{basic_block_forward.7} parent=0 // pred_check_branch
    %20 = sbr.rel (0) target = $region17
  $region16: #{basic_block_forward.7} parent=0 // pred_region
    _
  $region17: #{basic_block_forward.7} parent=0 // pred_fallthru
    _
  // Predicated region
  $region18: #{basic_block_forward.7} parent=0 // pred_check
    _
  $region19: #{basic_block_forward.7} parent=0 // pred_check_branch
    %22 = sbr.rel (0) target = $region21
  $region20: #{basic_block_forward.7} parent=0 // pred_region
    _
  $region21: #{basic_block_forward.7} parent=0 // pred_fallthru
    _
  // Predicated region
  $region22: #{basic_block_forward.7} parent=0 // pred_check
    _
  $region23: #{basic_block_forward.7} parent=0 // pred_check_branch
    %24 = sbr.rel (0) target = $region25
  $region24: #{basic_block_forward.7} parent=0 // pred_region
    _
  $region25: #{basic_block_forward.7} parent=0 // pred_fallthru
    _
  %v25 = vld [vmem:[%s0] sm:$0xff]
  %v26 = vld [vmem:[%s0 + $0x8] sm:$0xff]
  %v27 = vld [vmem:[%s0 + $0x10] sm:$0xff]
  %v28 = vld [vmem:[%s0 + $0x18] sm:$0xff]
  %v29 = vld [vmem:[%s0 + $0x20] sm:$0xff]
  %v30 = vld [vmem:[%s0 + $0x28] sm:$0xff]
  %v31 = vld [vmem:[%s0 + $0x30] sm:$0xff]
  %v32 = vld [vmem:[%s0 + $0x38] sm:$0xff]
  %v33 = vld [vmem:[%s0 + $0x40] sm:$0xff]
  %v34 = vld [vmem:[%s0 + $0x48] sm:$0xff]
  %v35 = vld [vmem:[%s0 + $0x50] sm:$0xff]
  %v36 = vld [vmem:[%s0 + $0x58] sm:$0xff]
  %v37 = vld [vmem:[%s0 + $0x60] sm:$0xff]
  %v38 = vld [vmem:[%s0 + $0x68] sm:$0xff]
  %v39 = vld [vmem:[%s0 + $0x70] sm:$0xff]
  %v40 = vld [vmem:[%s0 + $0x78] sm:$0xff]
  %v41 = vld [vmem:[%s2] sm:$0x1]
  %v43 = vlaneseq
  %v44 = vshrl.u32 %v43, 7
  %v45 = vsub.s32 0, %v44
  %v46 = vrot.slane %v41, %v45
  %v48 = vmul.f32 %v25, %v46
  %v49 = vmul.f32 %v26, %v46
  %v50 = vmul.f32 %v27, %v46
  %v51 = vmul.f32 %v28, %v46
  %v52 = vmul.f32 %v29, %v46
  %v53 = vmul.f32 %v30, %v46
  %v54 = vmul.f32 %v31, %v46
  %v55 = vmul.f32 %v32, %v46
  %v56 = vmul.f32 %v33, %v46
  %v57 = vmul.f32 %v34, %v46
  %v58 = vmul.f32 %v35, %v46
  %v59 = vmul.f32 %v36, %v46
  %v60 = vmul.f32 %v37, %v46
  %v61 = vmul.f32 %v38, %v46
  %v62 = vmul.f32 %v39, %v46
  %v63 = vmul.f32 %v40, %v46
  %v64 = vld [vmem:[%s3] sm:$0x1]
  %v66 = vlaneseq
  %v67 = vshrl.u32 %v66, 7
  %v68 = vsub.s32 0, %v67
  %v69 = vrot.slane %v64, %v68
  %v71 = vadd.f32 %v48, %v69
  %v72 = vadd.f32 %v49, %v69
  %v73 = vadd.f32 %v50, %v69
  %v74 = vadd.f32 %v51, %v69
  %v75 = vadd.f32 %v52, %v69
  %v76 = vadd.f32 %v53, %v69
  %v77 = vadd.f32 %v54, %v69
  %v78 = vadd.f32 %v55, %v69
  %v79 = vadd.f32 %v56, %v69
  %v80 = vadd.f32 %v57, %v69
  %v81 = vadd.f32 %v58, %v69
  %v82 = vadd.f32 %v59, %v69
  %v83 = vadd.f32 %v60, %v69
  %v84 = vadd.f32 %v61, %v69
  %v85 = vadd.f32 %v62, %v69
  %v86 = vadd.f32 %v63, %v69
  %v87 = vld [vmem:[%s1] sm:$0xff]
  %v88 = vld [vmem:[%s1 + $0x8] sm:$0xff]
  %v89 = vld [vmem:[%s1 + $0x10] sm:$0xff]
  %v90 = vld [vmem:[%s1 + $0x18] sm:$0xff]
  %v91 = vld [vmem:[%s1 + $0x20] sm:$0xff]
  %v92 = vld [vmem:[%s1 + $0x28] sm:$0xff]
  %v93 = vld [vmem:[%s1 + $0x30] sm:$0xff]
  %v94 = vld [vmem:[%s1 + $0x38] sm:$0xff]
  %v95 = vld [vmem:[%s1 + $0x40] sm:$0xff]
  %v96 = vld [vmem:[%s1 + $0x48] sm:$0xff]
  %v97 = vld [vmem:[%s1 + $0x50] sm:$0xff]
  %v98 = vld [vmem:[%s1 + $0x58] sm:$0xff]
  %v99 = vld [vmem:[%s1 + $0x60] sm:$0xff]
  %v100 = vld [vmem:[%s1 + $0x68] sm:$0xff]
  %v101 = vld [vmem:[%s1 + $0x70] sm:$0xff]
  %v102 = vld [vmem:[%s1 + $0x78] sm:$0xff]
  %v103 = vld [vmem:[%s4] sm:$0x1]
  %v105 = vlaneseq
  %v106 = vshrl.u32 %v105, 7
  %v107 = vsub.s32 0, %v106
  %v108 = vrot.slane %v103, %v107
  %v110 = vmul.f32 %v87, %v108
  %v111 = vmul.f32 %v88, %v108
  %v112 = vmul.f32 %v89, %v108
  %v113 = vmul.f32 %v90, %v108
  %v114 = vmul.f32 %v91, %v108
  %v115 = vmul.f32 %v92, %v108
  %v116 = vmul.f32 %v93, %v108
  %v117 = vmul.f32 %v94, %v108
  %v118 = vmul.f32 %v95, %v108
  %v119 = vmul.f32 %v96, %v108
  %v120 = vmul.f32 %v97, %v108
  %v121 = vmul.f32 %v98, %v108
  %v122 = vmul.f32 %v99, %v108
  %v123 = vmul.f32 %v100, %v108
  %v124 = vmul.f32 %v101, %v108
  %v125 = vmul.f32 %v102, %v108
  %v126 = vadd.f32 %v71, %v110
  %v127 = vadd.f32 %v72, %v111
  %v128 = vadd.f32 %v73, %v112
  %v129 = vadd.f32 %v74, %v113
  %v130 = vadd.f32 %v75, %v114
  %v131 = vadd.f32 %v76, %v115
  %v132 = vadd.f32 %v77, %v116
  %v133 = vadd.f32 %v78, %v117
  %v134 = vadd.f32 %v79, %v118
  %v135 = vadd.f32 %v80, %v119
  %v136 = vadd.f32 %v81, %v120
  %v137 = vadd.f32 %v82, %v121
  %v138 = vadd.f32 %v83, %v122
  %v139 = vadd.f32 %v84, %v123
  %v140 = vadd.f32 %v85, %v124
  %v141 = vadd.f32 %v86, %v125
  %v142 = vld [vmem:[%s5] sm:$0x1]
  %v144 = vlaneseq
  %v145 = vshrl.u32 %v144, 7
  %v146 = vsub.s32 0, %v145
  %v147 = vrot.slane %v142, %v146
  %v149 = vadd.f32 %v126, %v147
  %v150 = vadd.f32 %v127, %v147
  %v151 = vadd.f32 %v128, %v147
  %v152 = vadd.f32 %v129, %v147
  %v153 = vadd.f32 %v130, %v147
  %v154 = vadd.f32 %v131, %v147
  %v155 = vadd.f32 %v132, %v147
  %v156 = vadd.f32 %v133, %v147
  %v157 = vadd.f32 %v134, %v147
  %v158 = vadd.f32 %v135, %v147
  %v159 = vadd.f32 %v136, %v147
  %v160 = vadd.f32 %v137, %v147
  %v161 = vadd.f32 %v138, %v147
  %v162 = vadd.f32 %v139, %v147
  %v163 = vadd.f32 %v140, %v147
  %v164 = vadd.f32 %v141, %v147
  %v165 = vmax.f32 %v149, 0.0
  %v166 = vmax.f32 %v150, 0.0
  %v167 = vmax.f32 %v151, 0.0
  %v168 = vmax.f32 %v152, 0.0
  %v169 = vmax.f32 %v153, 0.0
  %v170 = vmax.f32 %v154, 0.0
  %v171 = vmax.f32 %v155, 0.0
  %v172 = vmax.f32 %v156, 0.0
  %v173 = vmax.f32 %v157, 0.0
  %v174 = vmax.f32 %v158, 0.0
  %v175 = vmax.f32 %v159, 0.0
  %v176 = vmax.f32 %v160, 0.0
  %v177 = vmax.f32 %v161, 0.0
  %v178 = vmax.f32 %v162, 0.0
  %v179 = vmax.f32 %v163, 0.0
  %v180 = vmax.f32 %v164, 0.0
  %181 = vst [vmem:[%s6] sm:$0xff] %v165
  %182 = vst [vmem:[%s6 + $0x8] sm:$0xff] %v166
  %183 = vst [vmem:[%s6 + $0x10] sm:$0xff] %v167
  %184 = vst [vmem:[%s6 + $0x18] sm:$0xff] %v168
  %185 = vst [vmem:[%s6 + $0x20] sm:$0xff] %v169
  %186 = vst [vmem:[%s6 + $0x28] sm:$0xff] %v170
  %187 = vst [vmem:[%s6 + $0x30] sm:$0xff] %v171
  %188 = vst [vmem:[%s6 + $0x38] sm:$0xff] %v172
  %189 = vst [vmem:[%s6 + $0x40] sm:$0xff] %v173
  %190 = vst [vmem:[%s6 + $0x48] sm:$0xff] %v174
  %191 = vst [vmem:[%s6 + $0x50] sm:$0xff] %v175
  %192 = vst [vmem:[%s6 + $0x58] sm:$0xff] %v176
  %193 = vst [vmem:[%s6 + $0x60] sm:$0xff] %v177
  %194 = vst [vmem:[%s6 + $0x68] sm:$0xff] %v178
  %195 = vst [vmem:[%s6 + $0x70] sm:$0xff] %v179
  %196 = vst [vmem:[%s6 + $0x78] sm:$0xff] %v180
  %197 = vst [vmem:[%s7] sm:$0xff] %v149
  %198 = vst [vmem:[%s7 + $0x8] sm:$0xff] %v150
  %199 = vst [vmem:[%s7 + $0x10] sm:$0xff] %v151
  %200 = vst [vmem:[%s7 + $0x18] sm:$0xff] %v152
  %201 = vst [vmem:[%s7 + $0x20] sm:$0xff] %v153
  %202 = vst [vmem:[%s7 + $0x28] sm:$0xff] %v154
  %203 = vst [vmem:[%s7 + $0x30] sm:$0xff] %v155
  %204 = vst [vmem:[%s7 + $0x38] sm:$0xff] %v156
  %205 = vst [vmem:[%s7 + $0x40] sm:$0xff] %v157
  %206 = vst [vmem:[%s7 + $0x48] sm:$0xff] %v158
  %207 = vst [vmem:[%s7 + $0x50] sm:$0xff] %v159
  %208 = vst [vmem:[%s7 + $0x58] sm:$0xff] %v160
  %209 = vst [vmem:[%s7 + $0x60] sm:$0xff] %v161
  %210 = vst [vmem:[%s7 + $0x68] sm:$0xff] %v162
  %211 = vst [vmem:[%s7 + $0x70] sm:$0xff] %v163
  %212 = vst [vmem:[%s7 + $0x78] sm:$0xff] %v164
  // Predicated region
  $region26: #{basic_block_forward.7} parent=0 // pred_check
    _
  $region27: #{basic_block_forward.7} parent=0 // pred_check_branch
    %214 = sbr.rel (0) target = $region29
  $region28: #{basic_block_forward.7} parent=0 // pred_region
    _
  $region29: #{basic_block_forward.7} parent=0 // pred_fallthru
    _
  // Predicated region
  $region30: #{basic_block_forward.7} parent=0 // pred_check
    _
  $region31: #{basic_block_forward.7} parent=0 // pred_check_branch
    %216 = sbr.rel (0) target = $region33
  $region32: #{basic_block_forward.7} parent=0 // pred_region
    _
  $region33: #{basic_block_forward.7} parent=0 // pred_fallthru
    _
  // Predicated region
  $region34: #{basic_block_forward.7} parent=0 // pred_check
    _
  $region35: #{basic_block_forward.7} parent=0 // pred_check_branch
    %218 = sbr.rel (0) target = $region37
  $region36: #{basic_block_forward.7} parent=0 // pred_region
    _
  $region37: #{basic_block_forward.7} parent=0 // pred_fallthru
    _
  // Predicated region
  $region38: #{basic_block_forward.7} parent=0 // pred_check
    _
  $region39: #{basic_block_forward.7} parent=0 // pred_check_branch
    %220 = sbr.rel (0) target = $region41
  $region40: #{basic_block_forward.7} parent=0 // pred_region
    _
  $region41: #{basic_block_forward.7} parent=0 // pred_fallthru
    _

// kernel: basic_block_forward.6
$region0: #{basic_block_forward.6}
  #allocation0 [shape = 'u32[]', space=smem, size = 0x4, offset = 0x4, fixed_abs, tag = 'smem constant byte address 0x4 - core index']
  #allocation1 [shape = 'u32[144,128]{1,0:T(1,128)}', space=vmem, size = 0x12000, scoped, tag = 'internal scratch']
  %s0 = inlined_call_operand.vmem [shape: bf16[128,1152], index: 0, kind: input, shape index: {}]
  %s1 = inlined_call_operand.vmem [shape: bf16[1152,128], index: 1, kind: input, shape index: {}]
  %s2 = inlined_call_operand.vmem [shape: f32[128,128], index: 2, kind: output, shape index: {0}]
  %s3 = inlined_call_operand.vmem [shape: f32[1,2,128], index: 3, kind: output, shape index: {1}]
  %4 = xla_tuple %s2, %s3
  %s5 = sld [smem:[#allocation0]]
  $region26: #{basic_block_forward.6} parent=0
    _
  %s7 = ssub.s32 1, %s5
  %s8 = scalar_select 0, %s7, %s5
  // Predicated region
  $region2: #{basic_block_forward.6} parent=0 // pred_check
    _
  $region3: #{basic_block_forward.6} parent=0 // pred_check_branch
    %10 = sbr.rel (0) target = $region5
  $region4: #{basic_block_forward.6} parent=0 // pred_region
    _
  $region5: #{basic_block_forward.6} parent=0 // pred_fallthru
    _
  // Predicated region
  $region6: #{basic_block_forward.6} parent=0 // pred_check
    _
  $region7: #{basic_block_forward.6} parent=0 // pred_check_branch
    %12 = sbr.rel (0) target = $region9
  $region8: #{basic_block_forward.6} parent=0 // pred_region
    _
  $region9: #{basic_block_forward.6} parent=0 // pred_fallthru
    _
  %v14 = vld [vmem:[%s0] sm:$0xff]
  %v15 = vld [vmem:[%s0 + $0x8] sm:$0xff]
  %v16 = vld [vmem:[%s0 + $0x10] sm:$0xff]
  %v17 = vld [vmem:[%s0 + $0x18] sm:$0xff]
  %v18 = vld [vmem:[%s0 + $0x20] sm:$0xf]
  %v19 = vld [vmem:[%s0 + $0x24] sm:$0xff]
  %v20 = vld [vmem:[%s0 + $0x2c] sm:$0xff]
  %v21 = vld [vmem:[%s0 + $0x34] sm:$0xff]
  %v22 = vld [vmem:[%s0 + $0x3c] sm:$0xff]
  %v23 = vld [vmem:[%s0 + $0x44] sm:$0xf]
  %v24 = vld [vmem:[%s0 + $0x48] sm:$0xff]
  %v25 = vld [vmem:[%s0 + $0x50] sm:$0xff]
  %v26 = vld [vmem:[%s0 + $0x58] sm:$0xff]
  %v27 = vld [vmem:[%s0 + $0x60] sm:$0xff]
  %v28 = vld [vmem:[%s0 + $0x68] sm:$0xf]
  %v29 = vld [vmem:[%s0 + $0x6c] sm:$0xff]
  %v30 = vld [vmem:[%s0 + $0x74] sm:$0xff]
  %v31 = vld [vmem:[%s0 + $0x7c] sm:$0xff]
  %v32 = vld [vmem:[%s0 + $0x84] sm:$0xff]
  %v33 = vld [vmem:[%s0 + $0x8c] sm:$0xf]
  %v34 = vld [vmem:[%s0 + $0x90] sm:$0xff]
  %v35 = vld [vmem:[%s0 + $0x98] sm:$0xff]
  %v36 = vld [vmem:[%s0 + $0xa0] sm:$0xff]
  %v37 = vld [vmem:[%s0 + $0xa8] sm:$0xff]
  %v38 = vld [vmem:[%s0 + $0xb0] sm:$0xf]
  %v39 = vld [vmem:[%s0 + $0xb4] sm:$0xff]
  %v40 = vld [vmem:[%s0 + $0xbc] sm:$0xff]
  %v41 = vld [vmem:[%s0 + $0xc4] sm:$0xff]
  %v42 = vld [vmem:[%s0 + $0xcc] sm:$0xff]
  %v43 = vld [vmem:[%s0 + $0xd4] sm:$0xf]
  %v44 = vld [vmem:[%s0 + $0xd8] sm:$0xff]
  %v45 = vld [vmem:[%s0 + $0xe0] sm:$0xff]
  %v46 = vld [vmem:[%s0 + $0xe8] sm:$0xff]
  %v47 = vld [vmem:[%s0 + $0xf0] sm:$0xff]
  %v48 = vld [vmem:[%s0 + $0xf8] sm:$0xf]
  %v49 = vld [vmem:[%s0 + $0xfc] sm:$0xff]
  %v50 = vld [vmem:[%s0 + $0x104] sm:$0xff]
  %v51 = vld [vmem:[%s0 + $0x10c] sm:$0xff]
  %v52 = vld [vmem:[%s0 + $0x114] sm:$0xff]
  %v53 = vld [vmem:[%s0 + $0x11c] sm:$0xf]
  %v54 = vld [vmem:[%s0 + $0x120] sm:$0xff]
  %v55 = vld [vmem:[%s0 + $0x128] sm:$0xff]
  %v56 = vld [vmem:[%s0 + $0x130] sm:$0xff]
  %v57 = vld [vmem:[%s0 + $0x138] sm:$0xff]
  %v58 = vld [vmem:[%s0 + $0x140] sm:$0xf]
  %v59 = vld [vmem:[%s0 + $0x144] sm:$0xff]
  %v60 = vld [vmem:[%s0 + $0x14c] sm:$0xff]
  %v61 = vld [vmem:[%s0 + $0x154] sm:$0xff]
  %v62 = vld [vmem:[%s0 + $0x15c] sm:$0xff]
  %v63 = vld [vmem:[%s0 + $0x164] sm:$0xf]
  %v64 = vld [vmem:[%s0 + $0x168] sm:$0xff]
  %v65 = vld [vmem:[%s0 + $0x170] sm:$0xff]
  %v66 = vld [vmem:[%s0 + $0x178] sm:$0xff]
  %v67 = vld [vmem:[%s0 + $0x180] sm:$0xff]
  %v68 = vld [vmem:[%s0 + $0x188] sm:$0xf]
  %v69 = vld [vmem:[%s0 + $0x18c] sm:$0xff]
  %v70 = vld [vmem:[%s0 + $0x194] sm:$0xff]
  %v71 = vld [vmem:[%s0 + $0x19c] sm:$0xff]
  %v72 = vld [vmem:[%s0 + $0x1a4] sm:$0xff]
  %v73 = vld [vmem:[%s0 + $0x1ac] sm:$0xf]
  %v74 = vld [vmem:[%s0 + $0x1b0] sm:$0xff]
  %v75 = vld [vmem:[%s0 + $0x1b8] sm:$0xff]
  %v76 = vld [vmem:[%s0 + $0x1c0] sm:$0xff]
  %v77 = vld [vmem:[%s0 + $0x1c8] sm:$0xff]
  %v78 = vld [vmem:[%s0 + $0x1d0] sm:$0xf]
  %v79 = vld [vmem:[%s0 + $0x1d4] sm:$0xff]
  %v80 = vld [vmem:[%s0 + $0x1dc] sm:$0xff]
  %v81 = vld [vmem:[%s0 + $0x1e4] sm:$0xff]
  %v82 = vld [vmem:[%s0 + $0x1ec] sm:$0xff]
  %v83 = vld [vmem:[%s0 + $0x1f4] sm:$0xf]
  %v84 = vld [vmem:[%s0 + $0x1f8] sm:$0xff]
  %v85 = vld [vmem:[%s0 + $0x200] sm:$0xff]
  %v86 = vld [vmem:[%s0 + $0x208] sm:$0xff]
  %v87 = vld [vmem:[%s0 + $0x210] sm:$0xff]
  %v88 = vld [vmem:[%s0 + $0x218] sm:$0xf]
  %v89 = vld [vmem:[%s0 + $0x21c] sm:$0xff]
  %v90 = vld [vmem:[%s0 + $0x224] sm:$0xff]
  %v91 = vld [vmem:[%s0 + $0x22c] sm:$0xff]
  %v92 = vld [vmem:[%s0 + $0x234] sm:$0xff]
  %v93 = vld [vmem:[%s0 + $0x23c] sm:$0xf]
  %v94 = vld [vmem:[%s1] sm:$0xf]
  %v95 = vld [vmem:[%s1 + $0x4] sm:$0xf]
  %v96 = vld [vmem:[%s1 + $0x8] sm:$0xf]
  %v97 = vld [vmem:[%s1 + $0xc] sm:$0xf]
  %v98 = vld [vmem:[%s1 + $0x10] sm:$0xf]
  %v99 = vld [vmem:[%s1 + $0x14] sm:$0xf]
  %v100 = vld [vmem:[%s1 + $0x18] sm:$0xf]
  %v101 = vld [vmem:[%s1 + $0x1c] sm:$0xf]
  %v102 = vld [vmem:[%s1 + $0x20] sm:$0xf]
  %v103 = vld [vmem:[%s1 + $0x24] sm:$0xf]
  %v104 = vld [vmem:[%s1 + $0x28] sm:$0xf]
  %v105 = vld [vmem:[%s1 + $0x2c] sm:$0xf]
  %v106 = vld [vmem:[%s1 + $0x30] sm:$0xf]
  %v107 = vld [vmem:[%s1 + $0x34] sm:$0xf]
  %v108 = vld [vmem:[%s1 + $0x38] sm:$0xf]
  %v109 = vld [vmem:[%s1 + $0x3c] sm:$0xf]
  %v110 = vld [vmem:[%s1 + $0x40] sm:$0xf]
  %v111 = vld [vmem:[%s1 + $0x44] sm:$0xf]
  %v112 = vld [vmem:[%s1 + $0x48] sm:$0xf]
  %v113 = vld [vmem:[%s1 + $0x4c] sm:$0xf]
  %v114 = vld [vmem:[%s1 + $0x50] sm:$0xf]
  %v115 = vld [vmem:[%s1 + $0x54] sm:$0xf]
  %v116 = vld [vmem:[%s1 + $0x58] sm:$0xf]
  %v117 = vld [vmem:[%s1 + $0x5c] sm:$0xf]
  %v118 = vld [vmem:[%s1 + $0x60] sm:$0xf]
  %v119 = vld [vmem:[%s1 + $0x64] sm:$0xf]
  %v120 = vld [vmem:[%s1 + $0x68] sm:$0xf]
  %v121 = vld [vmem:[%s1 + $0x6c] sm:$0xf]
  %v122 = vld [vmem:[%s1 + $0x70] sm:$0xf]
  %v123 = vld [vmem:[%s1 + $0x74] sm:$0xf]
  %v124 = vld [vmem:[%s1 + $0x78] sm:$0xf]
  %v125 = vld [vmem:[%s1 + $0x7c] sm:$0xf]
  %v126 = vld [vmem:[%s1 + $0x80] sm:$0xf]
  %v127 = vld [vmem:[%s1 + $0x84] sm:$0xf]
  %v128 = vld [vmem:[%s1 + $0x88] sm:$0xf]
  %v129 = vld [vmem:[%s1 + $0x8c] sm:$0xf]
  %v130 = vld [vmem:[%s1 + $0x90] sm:$0xf]
  %v131 = vld [vmem:[%s1 + $0x94] sm:$0xf]
  %v132 = vld [vmem:[%s1 + $0x98] sm:$0xf]
  %v133 = vld [vmem:[%s1 + $0x9c] sm:$0xf]
  %v134 = vld [vmem:[%s1 + $0xa0] sm:$0xf]
  %v135 = vld [vmem:[%s1 + $0xa4] sm:$0xf]
  %v136 = vld [vmem:[%s1 + $0xa8] sm:$0xf]
  %v137 = vld [vmem:[%s1 + $0xac] sm:$0xf]
  %v138 = vld [vmem:[%s1 + $0xb0] sm:$0xf]
  %v139 = vld [vmem:[%s1 + $0xb4] sm:$0xf]
  %v140 = vld [vmem:[%s1 + $0xb8] sm:$0xf]
  %v141 = vld [vmem:[%s1 + $0xbc] sm:$0xf]
  %v142 = vld [vmem:[%s1 + $0xc0] sm:$0xf]
  %v143 = vld [vmem:[%s1 + $0xc4] sm:$0xf]
  %v144 = vld [vmem:[%s1 + $0xc8] sm:$0xf]
  %v145 = vld [vmem:[%s1 + $0xcc] sm:$0xf]
  %v146 = vld [vmem:[%s1 + $0xd0] sm:$0xf]
  %v147 = vld [vmem:[%s1 + $0xd4] sm:$0xf]
  %v148 = vld [vmem:[%s1 + $0xd8] sm:$0xf]
  %v149 = vld [vmem:[%s1 + $0xdc] sm:$0xf]
  %v150 = vld [vmem:[%s1 + $0xe0] sm:$0xf]
  %v151 = vld [vmem:[%s1 + $0xe4] sm:$0xf]
  %v152 = vld [vmem:[%s1 + $0xe8] sm:$0xf]
  %v153 = vld [vmem:[%s1 + $0xec] sm:$0xf]
  %v154 = vld [vmem:[%s1 + $0xf0] sm:$0xf]
  %v155 = vld [vmem:[%s1 + $0xf4] sm:$0xf]
  %v156 = vld [vmem:[%s1 + $0xf8] sm:$0xf]
  %v157 = vld [vmem:[%s1 + $0xfc] sm:$0xf]
  %v158 = vld [vmem:[%s1 + $0x100] sm:$0xf]
  %v159 = vld [vmem:[%s1 + $0x104] sm:$0xf]
  %v160 = vld [vmem:[%s1 + $0x108] sm:$0xf]
  %v161 = vld [vmem:[%s1 + $0x10c] sm:$0xf]
  %v162 = vld [vmem:[%s1 + $0x110] sm:$0xf]
  %v163 = vld [vmem:[%s1 + $0x114] sm:$0xf]
  %v164 = vld [vmem:[%s1 + $0x118] sm:$0xf]
  %v165 = vld [vmem:[%s1 + $0x11c] sm:$0xf]
  %v166 = vld [vmem:[%s1 + $0x120] sm:$0xf]
  %v167 = vld [vmem:[%s1 + $0x124] sm:$0xf]
  %v168 = vld [vmem:[%s1 + $0x128] sm:$0xf]
  %v169 = vld [vmem:[%s1 + $0x12c] sm:$0xf]
  %v170 = vld [vmem:[%s1 + $0x130] sm:$0xf]
  %v171 = vld [vmem:[%s1 + $0x134] sm:$0xf]
  %v172 = vld [vmem:[%s1 + $0x138] sm:$0xf]
  %v173 = vld [vmem:[%s1 + $0x13c] sm:$0xf]
  %v174 = vld [vmem:[%s1 + $0x140] sm:$0xf]
  %v175 = vld [vmem:[%s1 + $0x144] sm:$0xf]
  %v176 = vld [vmem:[%s1 + $0x148] sm:$0xf]
  %v177 = vld [vmem:[%s1 + $0x14c] sm:$0xf]
  %v178 = vld [vmem:[%s1 + $0x150] sm:$0xf]
  %v179 = vld [vmem:[%s1 + $0x154] sm:$0xf]
  %v180 = vld [vmem:[%s1 + $0x158] sm:$0xf]
  %v181 = vld [vmem:[%s1 + $0x15c] sm:$0xf]
  %v182 = vld [vmem:[%s1 + $0x160] sm:$0xf]
  %v183 = vld [vmem:[%s1 + $0x164] sm:$0xf]
  %v184 = vld [vmem:[%s1 + $0x168] sm:$0xf]
  %v185 = vld [vmem:[%s1 + $0x16c] sm:$0xf]
  %v186 = vld [vmem:[%s1 + $0x170] sm:$0xf]
  %v187 = vld [vmem:[%s1 + $0x174] sm:$0xf]
  %v188 = vld [vmem:[%s1 + $0x178] sm:$0xf]
  %v189 = vld [vmem:[%s1 + $0x17c] sm:$0xf]
  %v190 = vld [vmem:[%s1 + $0x180] sm:$0xf]
  %v191 = vld [vmem:[%s1 + $0x184] sm:$0xf]
  %v192 = vld [vmem:[%s1 + $0x188] sm:$0xf]
  %v193 = vld [vmem:[%s1 + $0x18c] sm:$0xf]
  %v194 = vld [vmem:[%s1 + $0x190] sm:$0xf]
  %v195 = vld [vmem:[%s1 + $0x194] sm:$0xf]
  %v196 = vld [vmem:[%s1 + $0x198] sm:$0xf]
  %v197 = vld [vmem:[%s1 + $0x19c] sm:$0xf]
  %v198 = vld [vmem:[%s1 + $0x1a0] sm:$0xf]
  %v199 = vld [vmem:[%s1 + $0x1a4] sm:$0xf]
  %v200 = vld [vmem:[%s1 + $0x1a8] sm:$0xf]
  %v201 = vld [vmem:[%s1 + $0x1ac] sm:$0xf]
  %v202 = vld [vmem:[%s1 + $0x1b0] sm:$0xf]
  %v203 = vld [vmem:[%s1 + $0x1b4] sm:$0xf]
  %v204 = vld [vmem:[%s1 + $0x1b8] sm:$0xf]
  %v205 = vld [vmem:[%s1 + $0x1bc] sm:$0xf]
  %v206 = vld [vmem:[%s1 + $0x1c0] sm:$0xf]
  %v207 = vld [vmem:[%s1 + $0x1c4] sm:$0xf]
  %v208 = vld [vmem:[%s1 + $0x1c8] sm:$0xf]
  %v209 = vld [vmem:[%s1 + $0x1cc] sm:$0xf]
  %v210 = vld [vmem:[%s1 + $0x1d0] sm:$0xf]
  %v211 = vld [vmem:[%s1 + $0x1d4] sm:$0xf]
  %v212 = vld [vmem:[%s1 + $0x1d8] sm:$0xf]
  %v213 = vld [vmem:[%s1 + $0x1dc] sm:$0xf]
  %v214 = vld [vmem:[%s1 + $0x1e0] sm:$0xf]
  %v215 = vld [vmem:[%s1 + $0x1e4] sm:$0xf]
  %v216 = vld [vmem:[%s1 + $0x1e8] sm:$0xf]
  %v217 = vld [vmem:[%s1 + $0x1ec] sm:$0xf]
  %v218 = vld [vmem:[%s1 + $0x1f0] sm:$0xf]
  %v219 = vld [vmem:[%s1 + $0x1f4] sm:$0xf]
  %v220 = vld [vmem:[%s1 + $0x1f8] sm:$0xf]
  %v221 = vld [vmem:[%s1 + $0x1fc] sm:$0xf]
  %v222 = vld [vmem:[%s1 + $0x200] sm:$0xf]
  %v223 = vld [vmem:[%s1 + $0x204] sm:$0xf]
  %v224 = vld [vmem:[%s1 + $0x208] sm:$0xf]
  %v225 = vld [vmem:[%s1 + $0x20c] sm:$0xf]
  %v226 = vld [vmem:[%s1 + $0x210] sm:$0xf]
  %v227 = vld [vmem:[%s1 + $0x214] sm:$0xf]
  %v228 = vld [vmem:[%s1 + $0x218] sm:$0xf]
  %v229 = vld [vmem:[%s1 + $0x21c] sm:$0xf]
  %v230 = vld [vmem:[%s1 + $0x220] sm:$0xf]
  %v231 = vld [vmem:[%s1 + $0x224] sm:$0xf]
  %v232 = vld [vmem:[%s1 + $0x228] sm:$0xf]
  %v233 = vld [vmem:[%s1 + $0x22c] sm:$0xf]
  %v234 = vld [vmem:[%s1 + $0x230] sm:$0xf]
  %v235 = vld [vmem:[%s1 + $0x234] sm:$0xf]
  %v236 = vld [vmem:[%s1 + $0x238] sm:$0xf]
  %v237 = vld [vmem:[%s1 + $0x23c] sm:$0xf]
  %v318 = vunpack.c.l.b16 %v14
  %v319 = vunpack.c.h.b16 %v14
  %v320 = vunpack.c.l.b16 %v15
  %v321 = vunpack.c.h.b16 %v15
  %v322 = vunpack.c.l.b16 %v16
  %v323 = vunpack.c.h.b16 %v16
  %v324 = vunpack.c.l.b16 %v17
  %v325 = vunpack.c.h.b16 %v17
  %v326 = vunpack.c.l.b16 %v18
  %v327 = vunpack.c.l.b16 %v19
  %v328 = vunpack.c.h.b16 %v19
  %v329 = vunpack.c.l.b16 %v20
  %v330 = vunpack.c.h.b16 %v20
  %v331 = vunpack.c.l.b16 %v21
  %v332 = vunpack.c.h.b16 %v21
  %v333 = vunpack.c.l.b16 %v22
  %v334 = vunpack.c.h.b16 %v22
  %v335 = vunpack.c.l.b16 %v23
  %v336 = vunpack.c.l.b16 %v24
  %v337 = vunpack.c.h.b16 %v24
  %v338 = vunpack.c.l.b16 %v25
  %v339 = vunpack.c.h.b16 %v25
  %v340 = vunpack.c.l.b16 %v26
  %v341 = vunpack.c.h.b16 %v26
  %v342 = vunpack.c.l.b16 %v27
  %v343 = vunpack.c.h.b16 %v27
  %v344 = vunpack.c.l.b16 %v28
  %v345 = vunpack.c.l.b16 %v29
  %v346 = vunpack.c.h.b16 %v29
  %v347 = vunpack.c.l.b16 %v30
  %v348 = vunpack.c.h.b16 %v30
  %v349 = vunpack.c.l.b16 %v31
  %v350 = vunpack.c.h.b16 %v31
  %v351 = vunpack.c.l.b16 %v32
  %v352 = vunpack.c.h.b16 %v32
  %v353 = vunpack.c.l.b16 %v33
  %v354 = vunpack.c.l.b16 %v34
  %v355 = vunpack.c.h.b16 %v34
  %v356 = vunpack.c.l.b16 %v35
  %v357 = vunpack.c.h.b16 %v35
  %v358 = vunpack.c.l.b16 %v36
  %v359 = vunpack.c.h.b16 %v36
  %v360 = vunpack.c.l.b16 %v37
  %v361 = vunpack.c.h.b16 %v37
  %v362 = vunpack.c.l.b16 %v38
  %v363 = vunpack.c.l.b16 %v39
  %v364 = vunpack.c.h.b16 %v39
  %v365 = vunpack.c.l.b16 %v40
  %v366 = vunpack.c.h.b16 %v40
  %v367 = vunpack.c.l.b16 %v41
  %v368 = vunpack.c.h.b16 %v41
  %v369 = vunpack.c.l.b16 %v42
  %v370 = vunpack.c.h.b16 %v42
  %v371 = vunpack.c.l.b16 %v43
  %v372 = vunpack.c.l.b16 %v44
  %v373 = vunpack.c.h.b16 %v44
  %v374 = vunpack.c.l.b16 %v45
  %v375 = vunpack.c.h.b16 %v45
  %v376 = vunpack.c.l.b16 %v46
  %v377 = vunpack.c.h.b16 %v46
  %v378 = vunpack.c.l.b16 %v47
  %v379 = vunpack.c.h.b16 %v47
  %v380 = vunpack.c.l.b16 %v48
  %v381 = vunpack.c.l.b16 %v49
  %v382 = vunpack.c.h.b16 %v49
  %v383 = vunpack.c.l.b16 %v50
  %v384 = vunpack.c.h.b16 %v50
  %v385 = vunpack.c.l.b16 %v51
  %v386 = vunpack.c.h.b16 %v51
  %v387 = vunpack.c.l.b16 %v52
  %v388 = vunpack.c.h.b16 %v52
  %v389 = vunpack.c.l.b16 %v53
  %v390 = vunpack.c.l.b16 %v54
  %v391 = vunpack.c.h.b16 %v54
  %v392 = vunpack.c.l.b16 %v55
  %v393 = vunpack.c.h.b16 %v55
  %v394 = vunpack.c.l.b16 %v56
  %v395 = vunpack.c.h.b16 %v56
  %v396 = vunpack.c.l.b16 %v57
  %v397 = vunpack.c.h.b16 %v57
  %v398 = vunpack.c.l.b16 %v58
  %v399 = vunpack.c.l.b16 %v59
  %v400 = vunpack.c.h.b16 %v59
  %v401 = vunpack.c.l.b16 %v60
  %v402 = vunpack.c.h.b16 %v60
  %v403 = vunpack.c.l.b16 %v61
  %v404 = vunpack.c.h.b16 %v61
  %v405 = vunpack.c.l.b16 %v62
  %v406 = vunpack.c.h.b16 %v62
  %v407 = vunpack.c.l.b16 %v63
  %v408 = vunpack.c.l.b16 %v64
  %v409 = vunpack.c.h.b16 %v64
  %v410 = vunpack.c.l.b16 %v65
  %v411 = vunpack.c.h.b16 %v65
  %v412 = vunpack.c.l.b16 %v66
  %v413 = vunpack.c.h.b16 %v66
  %v414 = vunpack.c.l.b16 %v67
  %v415 = vunpack.c.h.b16 %v67
  %v416 = vunpack.c.l.b16 %v68
  %v417 = vunpack.c.l.b16 %v69
  %v418 = vunpack.c.h.b16 %v69
  %v419 = vunpack.c.l.b16 %v70
  %v420 = vunpack.c.h.b16 %v70
  %v421 = vunpack.c.l.b16 %v71
  %v422 = vunpack.c.h.b16 %v71
  %v423 = vunpack.c.l.b16 %v72
  %v424 = vunpack.c.h.b16 %v72
  %v425 = vunpack.c.l.b16 %v73
  %v426 = vunpack.c.l.b16 %v74
  %v427 = vunpack.c.h.b16 %v74
  %v428 = vunpack.c.l.b16 %v75
  %v429 = vunpack.c.h.b16 %v75
  %v430 = vunpack.c.l.b16 %v76
  %v431 = vunpack.c.h.b16 %v76
  %v432 = vunpack.c.l.b16 %v77
  %v433 = vunpack.c.h.b16 %v77
  %v434 = vunpack.c.l.b16 %v78
  %v435 = vunpack.c.l.b16 %v79
  %v436 = vunpack.c.h.b16 %v79
  %v437 = vunpack.c.l.b16 %v80
  %v438 = vunpack.c.h.b16 %v80
  %v439 = vunpack.c.l.b16 %v81
  %v440 = vunpack.c.h.b16 %v81
  %v441 = vunpack.c.l.b16 %v82
  %v442 = vunpack.c.h.b16 %v82
  %v443 = vunpack.c.l.b16 %v83
  %v444 = vunpack.c.l.b16 %v84
  %v445 = vunpack.c.h.b16 %v84
  %v446 = vunpack.c.l.b16 %v85
  %v447 = vunpack.c.h.b16 %v85
  %v448 = vunpack.c.l.b16 %v86
  %v449 = vunpack.c.h.b16 %v86
  %v450 = vunpack.c.l.b16 %v87
  %v451 = vunpack.c.h.b16 %v87
  %v452 = vunpack.c.l.b16 %v88
  %v453 = vunpack.c.l.b16 %v89
  %v454 = vunpack.c.h.b16 %v89
  %v455 = vunpack.c.l.b16 %v90
  %v456 = vunpack.c.h.b16 %v90
  %v457 = vunpack.c.l.b16 %v91
  %v458 = vunpack.c.h.b16 %v91
  %v459 = vunpack.c.l.b16 %v92
  %v460 = vunpack.c.h.b16 %v92
  %v461 = vunpack.c.l.b16 %v93
  %v462 = vpack.c.b16 %v327, %v318
  %v463 = vpack.c.b16 %v328, %v319
  %v464 = vpack.c.b16 %v329, %v320
  %v465 = vpack.c.b16 %v330, %v321
  %v466 = vpack.c.b16 %v331, %v322
  %v467 = vpack.c.b16 %v332, %v323
  %v468 = vpack.c.b16 %v333, %v324
  %v469 = vpack.c.b16 %v334, %v325
  %v470 = vpack.c.b16 %v335, %v326
  %v471 = vpack.c.b16 %v345, %v336
  %v472 = vpack.c.b16 %v346, %v337
  %v473 = vpack.c.b16 %v347, %v338
  %v474 = vpack.c.b16 %v348, %v339
  %v475 = vpack.c.b16 %v349, %v340
  %v476 = vpack.c.b16 %v350, %v341
  %v477 = vpack.c.b16 %v351, %v342
  %v478 = vpack.c.b16 %v352, %v343
  %v479 = vpack.c.b16 %v353, %v344
  %v480 = vpack.c.b16 %v363, %v354
  %v481 = vpack.c.b16 %v364, %v355
  %v482 = vpack.c.b16 %v365, %v356
  %v483 = vpack.c.b16 %v366, %v357
  %v484 = vpack.c.b16 %v367, %v358
  %v485 = vpack.c.b16 %v368, %v359
  %v486 = vpack.c.b16 %v369, %v360
  %v487 = vpack.c.b16 %v370, %v361
  %v488 = vpack.c.b16 %v371, %v362
  %v489 = vpack.c.b16 %v381, %v372
  %v490 = vpack.c.b16 %v382, %v373
  %v491 = vpack.c.b16 %v383, %v374
  %v492 = vpack.c.b16 %v384, %v375
  %v493 = vpack.c.b16 %v385, %v376
  %v494 = vpack.c.b16 %v386, %v377
  %v495 = vpack.c.b16 %v387, %v378
  %v496 = vpack.c.b16 %v388, %v379
  %v497 = vpack.c.b16 %v389, %v380
  %v498 = vpack.c.b16 %v399, %v390
  %v499 = vpack.c.b16 %v400, %v391
  %v500 = vpack.c.b16 %v401, %v392
  %v501 = vpack.c.b16 %v402, %v393
  %v502 = vpack.c.b16 %v403, %v394
  %v503 = vpack.c.b16 %v404, %v395
  %v504 = vpack.c.b16 %v405, %v396
  %v505 = vpack.c.b16 %v406, %v397
  %v506 = vpack.c.b16 %v407, %v398
  %v507 = vpack.c.b16 %v417, %v408
  %v508 = vpack.c.b16 %v418, %v409
  %v509 = vpack.c.b16 %v419, %v410
  %v510 = vpack.c.b16 %v420, %v411
  %v511 = vpack.c.b16 %v421, %v412
  %v512 = vpack.c.b16 %v422, %v413
  %v513 = vpack.c.b16 %v423, %v414
  %v514 = vpack.c.b16 %v424, %v415
  %v515 = vpack.c.b16 %v425, %v416
  %v516 = vpack.c.b16 %v435, %v426
  %v517 = vpack.c.b16 %v436, %v427
  %v518 = vpack.c.b16 %v437, %v428
  %v519 = vpack.c.b16 %v438, %v429
  %v520 = vpack.c.b16 %v439, %v430
  %v521 = vpack.c.b16 %v440, %v431
  %v522 = vpack.c.b16 %v441, %v432
  %v523 = vpack.c.b16 %v442, %v433
  %v524 = vpack.c.b16 %v443, %v434
  %v525 = vpack.c.b16 %v453, %v444
  %v526 = vpack.c.b16 %v454, %v445
  %v527 = vpack.c.b16 %v455, %v446
  %v528 = vpack.c.b16 %v456, %v447
  %v529 = vpack.c.b16 %v457, %v448
  %v530 = vpack.c.b16 %v458, %v449
  %v531 = vpack.c.b16 %v459, %v450
  %v532 = vpack.c.b16 %v460, %v451
  %v533 = vpack.c.b16 %v461, %v452
  %v750 = vunpack.c.l.b16 %v94
  %v751 = vunpack.c.l.b16 %v95
  %v752 = vunpack.c.l.b16 %v96
  %v753 = vunpack.c.l.b16 %v97
  %v754 = vunpack.c.l.b16 %v98
  %v755 = vunpack.c.l.b16 %v99
  %v756 = vunpack.c.l.b16 %v100
  %v757 = vunpack.c.l.b16 %v101
  %v758 = vunpack.c.l.b16 %v102
  %v759 = vunpack.c.l.b16 %v103
  %v760 = vunpack.c.l.b16 %v104
  %v761 = vunpack.c.l.b16 %v105
  %v762 = vunpack.c.l.b16 %v106
  %v763 = vunpack.c.l.b16 %v107
  %v764 = vunpack.c.l.b16 %v108
  %v765 = vunpack.c.l.b16 %v109
  %v766 = vunpack.c.l.b16 %v110
  %v767 = vunpack.c.l.b16 %v111
  %v768 = vunpack.c.l.b16 %v112
  %v769 = vunpack.c.l.b16 %v113
  %v770 = vunpack.c.l.b16 %v114
  %v771 = vunpack.c.l.b16 %v115
  %v772 = vunpack.c.l.b16 %v116
  %v773 = vunpack.c.l.b16 %v117
  %v774 = vunpack.c.l.b16 %v118
  %v775 = vunpack.c.l.b16 %v119
  %v776 = vunpack.c.l.b16 %v120
  %v777 = vunpack.c.l.b16 %v121
  %v778 = vunpack.c.l.b16 %v122
  %v779 = vunpack.c.l.b16 %v123
  %v780 = vunpack.c.l.b16 %v124
  %v781 = vunpack.c.l.b16 %v125
  %v782 = vunpack.c.l.b16 %v126
  %v783 = vunpack.c.l.b16 %v127
  %v784 = vunpack.c.l.b16 %v128
  %v785 = vunpack.c.l.b16 %v129
  %v786 = vunpack.c.l.b16 %v130
  %v787 = vunpack.c.l.b16 %v131
  %v788 = vunpack.c.l.b16 %v132
  %v789 = vunpack.c.l.b16 %v133
  %v790 = vunpack.c.l.b16 %v134
  %v791 = vunpack.c.l.b16 %v135
  %v792 = vunpack.c.l.b16 %v136
  %v793 = vunpack.c.l.b16 %v137
  %v794 = vunpack.c.l.b16 %v138
  %v795 = vunpack.c.l.b16 %v139
  %v796 = vunpack.c.l.b16 %v140
  %v797 = vunpack.c.l.b16 %v141
  %v798 = vunpack.c.l.b16 %v142
  %v799 = vunpack.c.l.b16 %v143
  %v800 = vunpack.c.l.b16 %v144
  %v801 = vunpack.c.l.b16 %v145
  %v802 = vunpack.c.l.b16 %v146
  %v803 = vunpack.c.l.b16 %v147
  %v804 = vunpack.c.l.b16 %v148
  %v805 = vunpack.c.l.b16 %v149
  %v806 = vunpack.c.l.b16 %v150
  %v807 = vunpack.c.l.b16 %v151
  %v808 = vunpack.c.l.b16 %v152
  %v809 = vunpack.c.l.b16 %v153
  %v810 = vunpack.c.l.b16 %v154
  %v811 = vunpack.c.l.b16 %v155
  %v812 = vunpack.c.l.b16 %v156
  %v813 = vunpack.c.l.b16 %v157
  %v814 = vunpack.c.l.b16 %v158
  %v815 = vunpack.c.l.b16 %v159
  %v816 = vunpack.c.l.b16 %v160
  %v817 = vunpack.c.l.b16 %v161
  %v818 = vunpack.c.l.b16 %v162
  %v819 = vunpack.c.l.b16 %v163
  %v820 = vunpack.c.l.b16 %v164
  %v821 = vunpack.c.l.b16 %v165
  %v822 = vunpack.c.l.b16 %v166
  %v823 = vunpack.c.l.b16 %v167
  %v824 = vunpack.c.l.b16 %v168
  %v825 = vunpack.c.l.b16 %v169
  %v826 = vunpack.c.l.b16 %v170
  %v827 = vunpack.c.l.b16 %v171
  %v828 = vunpack.c.l.b16 %v172
  %v829 = vunpack.c.l.b16 %v173
  %v830 = vunpack.c.l.b16 %v174
  %v831 = vunpack.c.l.b16 %v175
  %v832 = vunpack.c.l.b16 %v176
  %v833 = vunpack.c.l.b16 %v177
  %v834 = vunpack.c.l.b16 %v178
  %v835 = vunpack.c.l.b16 %v179
  %v836 = vunpack.c.l.b16 %v180
  %v837 = vunpack.c.l.b16 %v181
  %v838 = vunpack.c.l.b16 %v182
  %v839 = vunpack.c.l.b16 %v183
  %v840 = vunpack.c.l.b16 %v184
  %v841 = vunpack.c.l.b16 %v185
  %v842 = vunpack.c.l.b16 %v186
  %v843 = vunpack.c.l.b16 %v187
  %v844 = vunpack.c.l.b16 %v188
  %v845 = vunpack.c.l.b16 %v189
  %v846 = vunpack.c.l.b16 %v190
  %v847 = vunpack.c.l.b16 %v191
  %v848 = vunpack.c.l.b16 %v192
  %v849 = vunpack.c.l.b16 %v193
  %v850 = vunpack.c.l.b16 %v194
  %v851 = vunpack.c.l.b16 %v195
  %v852 = vunpack.c.l.b16 %v196
  %v853 = vunpack.c.l.b16 %v197
  %v854 = vunpack.c.l.b16 %v198
  %v855 = vunpack.c.l.b16 %v199
  %v856 = vunpack.c.l.b16 %v200
  %v857 = vunpack.c.l.b16 %v201
  %v858 = vunpack.c.l.b16 %v202
  %v859 = vunpack.c.l.b16 %v203
  %v860 = vunpack.c.l.b16 %v204
  %v861 = vunpack.c.l.b16 %v205
  %v862 = vunpack.c.l.b16 %v206
  %v863 = vunpack.c.l.b16 %v207
  %v864 = vunpack.c.l.b16 %v208
  %v865 = vunpack.c.l.b16 %v209
  %v866 = vunpack.c.l.b16 %v210
  %v867 = vunpack.c.l.b16 %v211
  %v868 = vunpack.c.l.b16 %v212
  %v869 = vunpack.c.l.b16 %v213
  %v870 = vunpack.c.l.b16 %v214
  %v871 = vunpack.c.l.b16 %v215
  %v872 = vunpack.c.l.b16 %v216
  %v873 = vunpack.c.l.b16 %v217
  %v874 = vunpack.c.l.b16 %v218
  %v875 = vunpack.c.l.b16 %v219
  %v876 = vunpack.c.l.b16 %v220
  %v877 = vunpack.c.l.b16 %v221
  %v878 = vunpack.c.l.b16 %v222
  %v879 = vunpack.c.l.b16 %v223
  %v880 = vunpack.c.l.b16 %v224
  %v881 = vunpack.c.l.b16 %v225
  %v882 = vunpack.c.l.b16 %v226
  %v883 = vunpack.c.l.b16 %v227
  %v884 = vunpack.c.l.b16 %v228
  %v885 = vunpack.c.l.b16 %v229
  %v886 = vunpack.c.l.b16 %v230
  %v887 = vunpack.c.l.b16 %v231
  %v888 = vunpack.c.l.b16 %v232
  %v889 = vunpack.c.l.b16 %v233
  %v890 = vunpack.c.l.b16 %v234
  %v891 = vunpack.c.l.b16 %v235
  %v892 = vunpack.c.l.b16 %v236
  %v893 = vunpack.c.l.b16 %v237
  %v894 = vpack.c.b16 %v751, %v750
  %v895 = vpack.c.b16 %v753, %v752
  %v896 = vpack.c.b16 %v755, %v754
  %v897 = vpack.c.b16 %v757, %v756
  %v898 = vpack.c.b16 %v759, %v758
  %v899 = vpack.c.b16 %v761, %v760
  %v900 = vpack.c.b16 %v763, %v762
  %v901 = vpack.c.b16 %v765, %v764
  %v902 = vpack.c.b16 %v767, %v766
  %v903 = vpack.c.b16 %v769, %v768
  %v904 = vpack.c.b16 %v771, %v770
  %v905 = vpack.c.b16 %v773, %v772
  %v906 = vpack.c.b16 %v775, %v774
  %v907 = vpack.c.b16 %v777, %v776
  %v908 = vpack.c.b16 %v779, %v778
  %v909 = vpack.c.b16 %v781, %v780
  %v910 = vpack.c.b16 %v783, %v782
  %v911 = vpack.c.b16 %v785, %v784
  %v912 = vpack.c.b16 %v787, %v786
  %v913 = vpack.c.b16 %v789, %v788
  %v914 = vpack.c.b16 %v791, %v790
  %v915 = vpack.c.b16 %v793, %v792
  %v916 = vpack.c.b16 %v795, %v794
  %v917 = vpack.c.b16 %v797, %v796
  %v918 = vpack.c.b16 %v799, %v798
  %v919 = vpack.c.b16 %v801, %v800
  %v920 = vpack.c.b16 %v803, %v802
  %v921 = vpack.c.b16 %v805, %v804
  %v922 = vpack.c.b16 %v807, %v806
  %v923 = vpack.c.b16 %v809, %v808
  %v924 = vpack.c.b16 %v811, %v810
  %v925 = vpack.c.b16 %v813, %v812
  %v926 = vpack.c.b16 %v815, %v814
  %v927 = vpack.c.b16 %v817, %v816
  %v928 = vpack.c.b16 %v819, %v818
  %v929 = vpack.c.b16 %v821, %v820
  %v930 = vpack.c.b16 %v823, %v822
  %v931 = vpack.c.b16 %v825, %v824
  %v932 = vpack.c.b16 %v827, %v826
  %v933 = vpack.c.b16 %v829, %v828
  %v934 = vpack.c.b16 %v831, %v830
  %v935 = vpack.c.b16 %v833, %v832
  %v936 = vpack.c.b16 %v835, %v834
  %v937 = vpack.c.b16 %v837, %v836
  %v938 = vpack.c.b16 %v839, %v838
  %v939 = vpack.c.b16 %v841, %v840
  %v940 = vpack.c.b16 %v843, %v842
  %v941 = vpack.c.b16 %v845, %v844
  %v942 = vpack.c.b16 %v847, %v846
  %v943 = vpack.c.b16 %v849, %v848
  %v944 = vpack.c.b16 %v851, %v850
  %v945 = vpack.c.b16 %v853, %v852
  %v946 = vpack.c.b16 %v855, %v854
  %v947 = vpack.c.b16 %v857, %v856
  %v948 = vpack.c.b16 %v859, %v858
  %v949 = vpack.c.b16 %v861, %v860
  %v950 = vpack.c.b16 %v863, %v862
  %v951 = vpack.c.b16 %v865, %v864
  %v952 = vpack.c.b16 %v867, %v866
  %v953 = vpack.c.b16 %v869, %v868
  %v954 = vpack.c.b16 %v871, %v870
  %v955 = vpack.c.b16 %v873, %v872
  %v956 = vpack.c.b16 %v875, %v874
  %v957 = vpack.c.b16 %v877, %v876
  %v958 = vpack.c.b16 %v879, %v878
  %v959 = vpack.c.b16 %v881, %v880
  %v960 = vpack.c.b16 %v883, %v882
  %v961 = vpack.c.b16 %v885, %v884
  %v962 = vpack.c.b16 %v887, %v886
  %v963 = vpack.c.b16 %v889, %v888
  %v964 = vpack.c.b16 %v891, %v890
  %v965 = vpack.c.b16 %v893, %v892
  %1038 = vmatprep.subr.bf16.mxu0 0
  %1039 = vmatpush1.bf16.msra.mxu0 %v901
  %1040 = vmatprep.subr.bf16.mxu0 0
  %1041 = vmatpush1.bf16.msra.mxu0 %v900
  %1042 = vmatprep.subr.bf16.mxu0 0
  %1043 = vmatpush1.bf16.msra.mxu0 %v899
  %1044 = vmatprep.subr.bf16.mxu0 0
  %1045 = vmatpush1.bf16.msra.mxu0 %v898
  %1046 = vmatprep.subr.bf16.mxu0 0
  %1047 = vmatpush1.bf16.msra.mxu0 %v897
  %1048 = vmatprep.subr.bf16.mxu0 0
  %1049 = vmatpush1.bf16.msra.mxu0 %v896
  %1050 = vmatprep.subr.bf16.mxu0 0
  %1051 = vmatpush1.bf16.msra.mxu0 %v895
  %1052 = vmatprep.subr.bf16.mxu0 0
  %1053 = vmatpush1.bf16.msra.mxu0 %v894
  %1054 = vmatprep.subr.bf16.mxu0 0
  %1055 = vmatpush2.bf16.msra.mxu0 %v909
  %1056 = vmatprep.subr.bf16.mxu0 0
  %1057 = vmatpush2.bf16.msra.mxu0 %v908
  %1058 = vmatprep.subr.bf16.mxu0 0
  %1059 = vmatpush2.bf16.msra.mxu0 %v907
  %1060 = vmatprep.subr.bf16.mxu0 0
  %1061 = vmatpush2.bf16.msra.mxu0 %v906
  %1062 = vmatprep.subr.bf16.mxu0 0
  %1063 = vmatpush2.bf16.msra.mxu0 %v905
  %1064 = vmatprep.subr.bf16.mxu0 0
  %1065 = vmatpush2.bf16.msra.mxu0 %v904
  %1066 = vmatprep.subr.bf16.mxu0 0
  %1067 = vmatpush2.bf16.msra.mxu0 %v903
  %1068 = vmatprep.subr.bf16.mxu0 0
  %1069 = vmatpush2.bf16.msra.mxu0 %v902
  %1070 = vmatprep.mubr.bf16.mxu0 %v463
  %1071 = vmatmul.mubr.bf16.gmra.mxu0 %v462
  %v1072 = vpop.f32.mrf.mxu0
  %v1073 = vadd.f32 0.0, %v1072
  %v1074 = vpop.f32.mrf.mxu0
  %v1075 = vpop.f32.mrf.mxu0
  %v1076 = vadd.f32 0.0, %v1075
  %v1077 = vpop.f32.mrf.mxu0
  %1078 = vmatprep.mubr.bf16.mxu0 %v472
  %1079 = vmatmul.mubr.bf16.gmra.mxu0 %v471
  %v1080 = vpop.f32.mrf.mxu0
  %v1081 = vadd.f32 0.0, %v1080
  %v1082 = vpop.f32.mrf.mxu0
  %v1083 = vpop.f32.mrf.mxu0
  %v1084 = vadd.f32 0.0, %v1083
  %v1085 = vpop.f32.mrf.mxu0
  %1086 = vmatprep.mubr.bf16.mxu0 %v481
  %1087 = vmatmul.mubr.bf16.gmra.mxu0 %v480
  %v1088 = vpop.f32.mrf.mxu0
  %v1089 = vadd.f32 0.0, %v1088
  %v1090 = vpop.f32.mrf.mxu0
  %v1091 = vpop.f32.mrf.mxu0
  %v1092 = vadd.f32 0.0, %v1091
  %v1093 = vpop.f32.mrf.mxu0
  %1094 = vmatprep.mubr.bf16.mxu0 %v490
  %1095 = vmatmul.mubr.bf16.gmra.mxu0 %v489
  %v1096 = vpop.f32.mrf.mxu0
  %v1097 = vadd.f32 0.0, %v1096
  %v1098 = vpop.f32.mrf.mxu0
  %v1099 = vpop.f32.mrf.mxu0
  %v1100 = vadd.f32 0.0, %v1099
  %v1101 = vpop.f32.mrf.mxu0
  %1102 = vmatprep.mubr.bf16.mxu0 %v499
  %1103 = vmatmul.mubr.bf16.gmra.mxu0 %v498
  %v1104 = vpop.f32.mrf.mxu0
  %v1105 = vadd.f32 0.0, %v1104
  %v1106 = vpop.f32.mrf.mxu0
  %v1107 = vpop.f32.mrf.mxu0
  %v1108 = vadd.f32 0.0, %v1107
  %v1109 = vpop.f32.mrf.mxu0
  %1110 = vmatprep.mubr.bf16.mxu0 %v508
  %1111 = vmatmul.mubr.bf16.gmra.mxu0 %v507
  %v1112 = vpop.f32.mrf.mxu0
  %v1113 = vadd.f32 0.0, %v1112
  %v1114 = vpop.f32.mrf.mxu0
  %v1115 = vpop.f32.mrf.mxu0
  %v1116 = vadd.f32 0.0, %v1115
  %v1117 = vpop.f32.mrf.mxu0
  %1118 = vmatprep.mubr.bf16.mxu0 %v517
  %1119 = vmatmul.mubr.bf16.gmra.mxu0 %v516
  %v1120 = vpop.f32.mrf.mxu0
  %v1121 = vadd.f32 0.0, %v1120
  %v1122 = vpop.f32.mrf.mxu0
  %v1123 = vpop.f32.mrf.mxu0
  %v1124 = vadd.f32 0.0, %v1123
  %v1125 = vpop.f32.mrf.mxu0
  %1126 = vmatprep.mubr.bf16.mxu0 %v526
  %1127 = vmatmul.mubr.bf16.gmra.mxu0 %v525
  %v1128 = vpop.f32.mrf.mxu0
  %v1129 = vadd.f32 0.0, %v1128
  %v1130 = vpop.f32.mrf.mxu0
  %v1131 = vpop.f32.mrf.mxu0
  %v1132 = vadd.f32 0.0, %v1131
  %v1133 = vpop.f32.mrf.mxu0
  %1134 = vdwg.mxu0
  %1135 = vmatprep.subr.bf16.mxu0 0
  %1136 = vmatpush1.bf16.msra.mxu0 %v917
  %1137 = vmatprep.subr.bf16.mxu0 0
  %1138 = vmatpush1.bf16.msra.mxu0 %v916
  %1139 = vmatprep.subr.bf16.mxu0 0
  %1140 = vmatpush1.bf16.msra.mxu0 %v915
  %1141 = vmatprep.subr.bf16.mxu0 0
  %1142 = vmatpush1.bf16.msra.mxu0 %v914
  %1143 = vmatprep.subr.bf16.mxu0 0
  %1144 = vmatpush1.bf16.msra.mxu0 %v913
  %1145 = vmatprep.subr.bf16.mxu0 0
  %1146 = vmatpush1.bf16.msra.mxu0 %v912
  %1147 = vmatprep.subr.bf16.mxu0 0
  %1148 = vmatpush1.bf16.msra.mxu0 %v911
  %1149 = vmatprep.subr.bf16.mxu0 0
  %1150 = vmatpush1.bf16.msra.mxu0 %v910
  %1151 = vmatprep.subr.bf16.mxu0 0
  %1152 = vmatpush2.bf16.msra.mxu0 %v925
  %1153 = vmatprep.subr.bf16.mxu0 0
  %1154 = vmatpush2.bf16.msra.mxu0 %v924
  %1155 = vmatprep.subr.bf16.mxu0 0
  %1156 = vmatpush2.bf16.msra.mxu0 %v923
  %1157 = vmatprep.subr.bf16.mxu0 0
  %1158 = vmatpush2.bf16.msra.mxu0 %v922
  %1159 = vmatprep.subr.bf16.mxu0 0
  %1160 = vmatpush2.bf16.msra.mxu0 %v921
  %1161 = vmatprep.subr.bf16.mxu0 0
  %1162 = vmatpush2.bf16.msra.mxu0 %v920
  %1163 = vmatprep.subr.bf16.mxu0 0
  %1164 = vmatpush2.bf16.msra.mxu0 %v919
  %1165 = vmatprep.subr.bf16.mxu0 0
  %1166 = vmatpush2.bf16.msra.mxu0 %v918
  %1167 = vmatprep.mubr.bf16.mxu0 %v465
  %1168 = vmatmul.mubr.bf16.gmra.mxu0 %v464
  %v1169 = vpop.f32.mrf.mxu0
  %v1170 = vadd.f32 %v1073, %v1169
  %v1171 = vpop.f32.mrf.mxu0
  %v1172 = vpop.f32.mrf.mxu0
  %v1173 = vadd.f32 %v1076, %v1172
  %v1174 = vpop.f32.mrf.mxu0
  %1175 = vmatprep.mubr.bf16.mxu0 %v474
  %1176 = vmatmul.mubr.bf16.gmra.mxu0 %v473
  %v1177 = vpop.f32.mrf.mxu0
  %v1178 = vadd.f32 %v1081, %v1177
  %v1179 = vpop.f32.mrf.mxu0
  %v1180 = vpop.f32.mrf.mxu0
  %v1181 = vadd.f32 %v1084, %v1180
  %v1182 = vpop.f32.mrf.mxu0
  %1183 = vmatprep.mubr.bf16.mxu0 %v483
  %1184 = vmatmul.mubr.bf16.gmra.mxu0 %v482
  %v1185 = vpop.f32.mrf.mxu0
  %v1186 = vadd.f32 %v1089, %v1185
  %v1187 = vpop.f32.mrf.mxu0
  %v1188 = vpop.f32.mrf.mxu0
  %v1189 = vadd.f32 %v1092, %v1188
  %v1190 = vpop.f32.mrf.mxu0
  %1191 = vmatprep.mubr.bf16.mxu0 %v492
  %1192 = vmatmul.mubr.bf16.gmra.mxu0 %v491
  %v1193 = vpop.f32.mrf.mxu0
  %v1194 = vadd.f32 %v1097, %v1193
  %v1195 = vpop.f32.mrf.mxu0
  %v1196 = vpop.f32.mrf.mxu0
  %v1197 = vadd.f32 %v1100, %v1196
  %v1198 = vpop.f32.mrf.mxu0
  %1199 = vmatprep.mubr.bf16.mxu0 %v501
  %1200 = vmatmul.mubr.bf16.gmra.mxu0 %v500
  %v1201 = vpop.f32.mrf.mxu0
  %v1202 = vadd.f32 %v1105, %v1201
  %v1203 = vpop.f32.mrf.mxu0
  %v1204 = vpop.f32.mrf.mxu0
  %v1205 = vadd.f32 %v1108, %v1204
  %v1206 = vpop.f32.mrf.mxu0
  %1207 = vmatprep.mubr.bf16.mxu0 %v510
  %1208 = vmatmul.mubr.bf16.gmra.mxu0 %v509
  %v1209 = vpop.f32.mrf.mxu0
  %v1210 = vadd.f32 %v1113, %v1209
  %v1211 = vpop.f32.mrf.mxu0
  %v1212 = vpop.f32.mrf.mxu0
  %v1213 = vadd.f32 %v1116, %v1212
  %v1214 = vpop.f32.mrf.mxu0
  %1215 = vmatprep.mubr.bf16.mxu0 %v519
  %1216 = vmatmul.mubr.bf16.gmra.mxu0 %v518
  %v1217 = vpop.f32.mrf.mxu0
  %v1218 = vadd.f32 %v1121, %v1217
  %v1219 = vpop.f32.mrf.mxu0
  %v1220 = vpop.f32.mrf.mxu0
  %v1221 = vadd.f32 %v1124, %v1220
  %v1222 = vpop.f32.mrf.mxu0
  %1223 = vmatprep.mubr.bf16.mxu0 %v528
  %1224 = vmatmul.mubr.bf16.gmra.mxu0 %v527
  %v1225 = vpop.f32.mrf.mxu0
  %v1226 = vadd.f32 %v1129, %v1225
  %v1227 = vpop.f32.mrf.mxu0
  %v1228 = vpop.f32.mrf.mxu0
  %v1229 = vadd.f32 %v1132, %v1228
  %v1230 = vpop.f32.mrf.mxu0
  %1231 = vdwg.mxu0
  %1232 = vmatprep.subr.bf16.mxu0 0
  %1233 = vmatpush1.bf16.msra.mxu0 %v933
  %1234 = vmatprep.subr.bf16.mxu0 0
  %1235 = vmatpush1.bf16.msra.mxu0 %v932
  %1236 = vmatprep.subr.bf16.mxu0 0
  %1237 = vmatpush1.bf16.msra.mxu0 %v931
  %1238 = vmatprep.subr.bf16.mxu0 0
  %1239 = vmatpush1.bf16.msra.mxu0 %v930
  %1240 = vmatprep.subr.bf16.mxu0 0
  %1241 = vmatpush1.bf16.msra.mxu0 %v929
  %1242 = vmatprep.subr.bf16.mxu0 0
  %1243 = vmatpush1.bf16.msra.mxu0 %v928
  %1244 = vmatprep.subr.bf16.mxu0 0
  %1245 = vmatpush1.bf16.msra.mxu0 %v927
  %1246 = vmatprep.subr.bf16.mxu0 0
  %1247 = vmatpush1.bf16.msra.mxu0 %v926
  %1248 = vmatprep.subr.bf16.mxu0 0
  %1249 = vmatpush2.bf16.msra.mxu0 %v941
  %1250 = vmatprep.subr.bf16.mxu0 0
  %1251 = vmatpush2.bf16.msra.mxu0 %v940
  %1252 = vmatprep.subr.bf16.mxu0 0
  %1253 = vmatpush2.bf16.msra.mxu0 %v939
  %1254 = vmatprep.subr.bf16.mxu0 0
  %1255 = vmatpush2.bf16.msra.mxu0 %v938
  %1256 = vmatprep.subr.bf16.mxu0 0
  %1257 = vmatpush2.bf16.msra.mxu0 %v937
  %1258 = vmatprep.subr.bf16.mxu0 0
  %1259 = vmatpush2.bf16.msra.mxu0 %v936
  %1260 = vmatprep.subr.bf16.mxu0 0
  %1261 = vmatpush2.bf16.msra.mxu0 %v935
  %1262 = vmatprep.subr.bf16.mxu0 0
  %1263 = vmatpush2.bf16.msra.mxu0 %v934
  %1264 = vmatprep.mubr.bf16.mxu0 %v467
  %1265 = vmatmul.mubr.bf16.gmra.mxu0 %v466
  %v1266 = vpop.f32.mrf.mxu0
  %v1267 = vadd.f32 %v1170, %v1266
  %v1268 = vpop.f32.mrf.mxu0
  %v1269 = vpop.f32.mrf.mxu0
  %v1270 = vadd.f32 %v1173, %v1269
  %v1271 = vpop.f32.mrf.mxu0
  %1272 = vmatprep.mubr.bf16.mxu0 %v476
  %1273 = vmatmul.mubr.bf16.gmra.mxu0 %v475
  %v1274 = vpop.f32.mrf.mxu0
  %v1275 = vadd.f32 %v1178, %v1274
  %v1276 = vpop.f32.mrf.mxu0
  %v1277 = vpop.f32.mrf.mxu0
  %v1278 = vadd.f32 %v1181, %v1277
  %v1279 = vpop.f32.mrf.mxu0
  %1280 = vmatprep.mubr.bf16.mxu0 %v485
  %1281 = vmatmul.mubr.bf16.gmra.mxu0 %v484
  %v1282 = vpop.f32.mrf.mxu0
  %v1283 = vadd.f32 %v1186, %v1282
  %v1284 = vpop.f32.mrf.mxu0
  %v1285 = vpop.f32.mrf.mxu0
  %v1286 = vadd.f32 %v1189, %v1285
  %v1287 = vpop.f32.mrf.mxu0
  %1288 = vmatprep.mubr.bf16.mxu0 %v494
  %1289 = vmatmul.mubr.bf16.gmra.mxu0 %v493
  %v1290 = vpop.f32.mrf.mxu0
  %v1291 = vadd.f32 %v1194, %v1290
  %v1292 = vpop.f32.mrf.mxu0
  %v1293 = vpop.f32.mrf.mxu0
  %v1294 = vadd.f32 %v1197, %v1293
  %v1295 = vpop.f32.mrf.mxu0
  %1296 = vmatprep.mubr.bf16.mxu0 %v503
  %1297 = vmatmul.mubr.bf16.gmra.mxu0 %v502
  %v1298 = vpop.f32.mrf.mxu0
  %v1299 = vadd.f32 %v1202, %v1298
  %v1300 = vpop.f32.mrf.mxu0
  %v1301 = vpop.f32.mrf.mxu0
  %v1302 = vadd.f32 %v1205, %v1301
  %v1303 = vpop.f32.mrf.mxu0
  %1304 = vmatprep.mubr.bf16.mxu0 %v512
  %1305 = vmatmul.mubr.bf16.gmra.mxu0 %v511
  %v1306 = vpop.f32.mrf.mxu0
  %v1307 = vadd.f32 %v1210, %v1306
  %v1308 = vpop.f32.mrf.mxu0
  %v1309 = vpop.f32.mrf.mxu0
  %v1310 = vadd.f32 %v1213, %v1309
  %v1311 = vpop.f32.mrf.mxu0
  %1312 = vmatprep.mubr.bf16.mxu0 %v521
  %1313 = vmatmul.mubr.bf16.gmra.mxu0 %v520
  %v1314 = vpop.f32.mrf.mxu0
  %v1315 = vadd.f32 %v1218, %v1314
  %v1316 = vpop.f32.mrf.mxu0
  %v1317 = vpop.f32.mrf.mxu0
  %v1318 = vadd.f32 %v1221, %v1317
  %v1319 = vpop.f32.mrf.mxu0
  %1320 = vmatprep.mubr.bf16.mxu0 %v530
  %1321 = vmatmul.mubr.bf16.gmra.mxu0 %v529
  %v1322 = vpop.f32.mrf.mxu0
  %v1323 = vadd.f32 %v1226, %v1322
  %v1324 = vpop.f32.mrf.mxu0
  %v1325 = vpop.f32.mrf.mxu0
  %v1326 = vadd.f32 %v1229, %v1325
  %v1327 = vpop.f32.mrf.mxu0
  %1328 = vdwg.mxu0
  %1329 = vmatprep.subr.bf16.mxu0 0
  %1330 = vmatpush1.bf16.msra.mxu0 %v949
  %1331 = vmatprep.subr.bf16.mxu0 0
  %1332 = vmatpush1.bf16.msra.mxu0 %v948
  %1333 = vmatprep.subr.bf16.mxu0 0
  %1334 = vmatpush1.bf16.msra.mxu0 %v947
  %1335 = vmatprep.subr.bf16.mxu0 0
  %1336 = vmatpush1.bf16.msra.mxu0 %v946
  %1337 = vmatprep.subr.bf16.mxu0 0
  %1338 = vmatpush1.bf16.msra.mxu0 %v945
  %1339 = vmatprep.subr.bf16.mxu0 0
  %1340 = vmatpush1.bf16.msra.mxu0 %v944
  %1341 = vmatprep.subr.bf16.mxu0 0
  %1342 = vmatpush1.bf16.msra.mxu0 %v943
  %1343 = vmatprep.subr.bf16.mxu0 0
  %1344 = vmatpush1.bf16.msra.mxu0 %v942
  %1345 = vmatprep.subr.bf16.mxu0 0
  %1346 = vmatpush2.bf16.msra.mxu0 %v957
  %1347 = vmatprep.subr.bf16.mxu0 0
  %1348 = vmatpush2.bf16.msra.mxu0 %v956
  %1349 = vmatprep.subr.bf16.mxu0 0
  %1350 = vmatpush2.bf16.msra.mxu0 %v955
  %1351 = vmatprep.subr.bf16.mxu0 0
  %1352 = vmatpush2.bf16.msra.mxu0 %v954
  %1353 = vmatprep.subr.bf16.mxu0 0
  %1354 = vmatpush2.bf16.msra.mxu0 %v953
  %1355 = vmatprep.subr.bf16.mxu0 0
  %1356 = vmatpush2.bf16.msra.mxu0 %v952
  %1357 = vmatprep.subr.bf16.mxu0 0
  %1358 = vmatpush2.bf16.msra.mxu0 %v951
  %1359 = vmatprep.subr.bf16.mxu0 0
  %1360 = vmatpush2.bf16.msra.mxu0 %v950
  %1361 = vmatprep.mubr.bf16.mxu0 %v469
  %1362 = vmatmul.mubr.bf16.gmra.mxu0 %v468
  %v1363 = vpop.f32.mrf.mxu0
  %v1364 = vadd.f32 %v1267, %v1363
  %v1365 = vpop.f32.mrf.mxu0
  %v1366 = vpop.f32.mrf.mxu0
  %v1367 = vadd.f32 %v1270, %v1366
  %v1368 = vpop.f32.mrf.mxu0
  %1369 = vmatprep.mubr.bf16.mxu0 %v478
  %1370 = vmatmul.mubr.bf16.gmra.mxu0 %v477
  %v1371 = vpop.f32.mrf.mxu0
  %v1372 = vadd.f32 %v1275, %v1371
  %v1373 = vpop.f32.mrf.mxu0
  %v1374 = vpop.f32.mrf.mxu0
  %v1375 = vadd.f32 %v1278, %v1374
  %v1376 = vpop.f32.mrf.mxu0
  %1377 = vmatprep.mubr.bf16.mxu0 %v487
  %1378 = vmatmul.mubr.bf16.gmra.mxu0 %v486
  %v1379 = vpop.f32.mrf.mxu0
  %v1380 = vadd.f32 %v1283, %v1379
  %v1381 = vpop.f32.mrf.mxu0
  %v1382 = vpop.f32.mrf.mxu0
  %v1383 = vadd.f32 %v1286, %v1382
  %v1384 = vpop.f32.mrf.mxu0
  %1385 = vmatprep.mubr.bf16.mxu0 %v496
  %1386 = vmatmul.mubr.bf16.gmra.mxu0 %v495
  %v1387 = vpop.f32.mrf.mxu0
  %v1388 = vadd.f32 %v1291, %v1387
  %v1389 = vpop.f32.mrf.mxu0
  %v1390 = vpop.f32.mrf.mxu0
  %v1391 = vadd.f32 %v1294, %v1390
  %v1392 = vpop.f32.mrf.mxu0
  %1393 = vmatprep.mubr.bf16.mxu0 %v505
  %1394 = vmatmul.mubr.bf16.gmra.mxu0 %v504
  %v1395 = vpop.f32.mrf.mxu0
  %v1396 = vadd.f32 %v1299, %v1395
  %v1397 = vpop.f32.mrf.mxu0
  %v1398 = vpop.f32.mrf.mxu0
  %v1399 = vadd.f32 %v1302, %v1398
  %v1400 = vpop.f32.mrf.mxu0
  %1401 = vmatprep.mubr.bf16.mxu0 %v514
  %1402 = vmatmul.mubr.bf16.gmra.mxu0 %v513
  %v1403 = vpop.f32.mrf.mxu0
  %v1404 = vadd.f32 %v1307, %v1403
  %v1405 = vpop.f32.mrf.mxu0
  %v1406 = vpop.f32.mrf.mxu0
  %v1407 = vadd.f32 %v1310, %v1406
  %v1408 = vpop.f32.mrf.mxu0
  %1409 = vmatprep.mubr.bf16.mxu0 %v523
  %1410 = vmatmul.mubr.bf16.gmra.mxu0 %v522
  %v1411 = vpop.f32.mrf.mxu0
  %v1412 = vadd.f32 %v1315, %v1411
  %v1413 = vpop.f32.mrf.mxu0
  %v1414 = vpop.f32.mrf.mxu0
  %v1415 = vadd.f32 %v1318, %v1414
  %v1416 = vpop.f32.mrf.mxu0
  %1417 = vmatprep.mubr.bf16.mxu0 %v532
  %1418 = vmatmul.mubr.bf16.gmra.mxu0 %v531
  %v1419 = vpop.f32.mrf.mxu0
  %v1420 = vadd.f32 %v1323, %v1419
  %v1421 = vpop.f32.mrf.mxu0
  %v1422 = vpop.f32.mrf.mxu0
  %v1423 = vadd.f32 %v1326, %v1422
  %v1424 = vpop.f32.mrf.mxu0
  %1425 = vdwg.mxu0
  %1426 = vmatprep.subr.bf16.mxu0 0
  %1427 = vmatpush1.bf16.msra.mxu0 %v965
  %1428 = vmatprep.subr.bf16.mxu0 0
  %1429 = vmatpush1.bf16.msra.mxu0 %v964
  %1430 = vmatprep.subr.bf16.mxu0 0
  %1431 = vmatpush1.bf16.msra.mxu0 %v963
  %1432 = vmatprep.subr.bf16.mxu0 0
  %1433 = vmatpush1.bf16.msra.mxu0 %v962
  %1434 = vmatprep.subr.bf16.mxu0 0
  %1435 = vmatpush1.bf16.msra.mxu0 %v961
  %1436 = vmatprep.subr.bf16.mxu0 0
  %1437 = vmatpush1.bf16.msra.mxu0 %v960
  %1438 = vmatprep.subr.bf16.mxu0 0
  %1439 = vmatpush1.bf16.msra.mxu0 %v959
  %1440 = vmatprep.subr.bf16.mxu0 0
  %1441 = vmatpush1.bf16.msra.mxu0 %v958
  %1442 = vmatprep.subr.bf16.mxu0 0
  %1443 = vmatpush2.bf16.msra.mxu0 0
  %1444 = vmatprep.subr.bf16.mxu0 0
  %1445 = vmatpush2.bf16.msra.mxu0 0
  %1446 = vmatprep.subr.bf16.mxu0 0
  %1447 = vmatpush2.bf16.msra.mxu0 0
  %1448 = vmatprep.subr.bf16.mxu0 0
  %1449 = vmatpush2.bf16.msra.mxu0 0
  %1450 = vmatprep.subr.bf16.mxu0 0
  %1451 = vmatpush2.bf16.msra.mxu0 0
  %1452 = vmatprep.subr.bf16.mxu0 0
  %1453 = vmatpush2.bf16.msra.mxu0 0
  %1454 = vmatprep.subr.bf16.mxu0 0
  %1455 = vmatpush2.bf16.msra.mxu0 0
  %1456 = vmatprep.subr.bf16.mxu0 0
  %1457 = vmatpush2.bf16.msra.mxu0 0
  %1458 = vmatprep.mubr.bf16.mxu0 0
  %1459 = vmatmul.mubr.bf16.gmra.mxu0 %v470
  %v1460 = vpop.f32.mrf.mxu0
  %v1461 = vadd.f32 %v1364, %v1460
  %v1462 = vpop.f32.mrf.mxu0
  %v1463 = vpop.f32.mrf.mxu0
  %v1464 = vadd.f32 %v1367, %v1463
  %v1465 = vpop.f32.mrf.mxu0
  %1466 = vmatprep.mubr.bf16.mxu0 0
  %1467 = vmatmul.mubr.bf16.gmra.mxu0 %v479
  %v1468 = vpop.f32.mrf.mxu0
  %v1469 = vadd.f32 %v1372, %v1468
  %v1470 = vpop.f32.mrf.mxu0
  %v1471 = vpop.f32.mrf.mxu0
  %v1472 = vadd.f32 %v1375, %v1471
  %v1473 = vpop.f32.mrf.mxu0
  %1474 = vmatprep.mubr.bf16.mxu0 0
  %1475 = vmatmul.mubr.bf16.gmra.mxu0 %v488
  %v1476 = vpop.f32.mrf.mxu0
  %v1477 = vadd.f32 %v1380, %v1476
  %v1478 = vpop.f32.mrf.mxu0
  %v1479 = vpop.f32.mrf.mxu0
  %v1480 = vadd.f32 %v1383, %v1479
  %v1481 = vpop.f32.mrf.mxu0
  %1482 = vmatprep.mubr.bf16.mxu0 0
  %1483 = vmatmul.mubr.bf16.gmra.mxu0 %v497
  %v1484 = vpop.f32.mrf.mxu0
  %v1485 = vadd.f32 %v1388, %v1484
  %v1486 = vpop.f32.mrf.mxu0
  %v1487 = vpop.f32.mrf.mxu0
  %v1488 = vadd.f32 %v1391, %v1487
  %v1489 = vpop.f32.mrf.mxu0
  %1490 = vmatprep.mubr.bf16.mxu0 0
  %1491 = vmatmul.mubr.bf16.gmra.mxu0 %v506
  %v1492 = vpop.f32.mrf.mxu0
  %v1493 = vadd.f32 %v1396, %v1492
  %v1494 = vpop.f32.mrf.mxu0
  %v1495 = vpop.f32.mrf.mxu0
  %v1496 = vadd.f32 %v1399, %v1495
  %v1497 = vpop.f32.mrf.mxu0
  %1498 = vmatprep.mubr.bf16.mxu0 0
  %1499 = vmatmul.mubr.bf16.gmra.mxu0 %v515
  %v1500 = vpop.f32.mrf.mxu0
  %v1501 = vadd.f32 %v1404, %v1500
  %v1502 = vpop.f32.mrf.mxu0
  %v1503 = vpop.f32.mrf.mxu0
  %v1504 = vadd.f32 %v1407, %v1503
  %v1505 = vpop.f32.mrf.mxu0
  %1506 = vmatprep.mubr.bf16.mxu0 0
  %1507 = vmatmul.mubr.bf16.gmra.mxu0 %v524
  %v1508 = vpop.f32.mrf.mxu0
  %v1509 = vadd.f32 %v1412, %v1508
  %v1510 = vpop.f32.mrf.mxu0
  %v1511 = vpop.f32.mrf.mxu0
  %v1512 = vadd.f32 %v1415, %v1511
  %v1513 = vpop.f32.mrf.mxu0
  %1514 = vmatprep.mubr.bf16.mxu0 0
  %1515 = vmatmul.mubr.bf16.gmra.mxu0 %v533
  %v1516 = vpop.f32.mrf.mxu0
  %v1517 = vadd.f32 %v1420, %v1516
  %v1518 = vpop.f32.mrf.mxu0
  %v1519 = vpop.f32.mrf.mxu0
  %v1520 = vadd.f32 %v1423, %v1519
  %v1521 = vpop.f32.mrf.mxu0
  %1522 = vdwg.mxu0
  %1523 = vst [vmem:[%s2] sm:$0xff] %v1461
  %1524 = vst [vmem:[%s2 + $0x8] sm:$0xff] %v1464
  %1525 = vst [vmem:[%s2 + $0x10] sm:$0xff] %v1469
  %1526 = vst [vmem:[%s2 + $0x18] sm:$0xff] %v1472
  %1527 = vst [vmem:[%s2 + $0x20] sm:$0xff] %v1477
  %1528 = vst [vmem:[%s2 + $0x28] sm:$0xff] %v1480
  %1529 = vst [vmem:[%s2 + $0x30] sm:$0xff] %v1485
  %1530 = vst [vmem:[%s2 + $0x38] sm:$0xff] %v1488
  %1531 = vst [vmem:[%s2 + $0x40] sm:$0xff] %v1493
  %1532 = vst [vmem:[%s2 + $0x48] sm:$0xff] %v1496
  %1533 = vst [vmem:[%s2 + $0x50] sm:$0xff] %v1501
  %1534 = vst [vmem:[%s2 + $0x58] sm:$0xff] %v1504
  %1535 = vst [vmem:[%s2 + $0x60] sm:$0xff] %v1509
  %1536 = vst [vmem:[%s2 + $0x68] sm:$0xff] %v1512
  %1537 = vst [vmem:[%s2 + $0x70] sm:$0xff] %v1517
  %1538 = vst [vmem:[%s2 + $0x78] sm:$0xff] %v1520
  %v1539 = vadd.f32 %v1461, %v1464
  %v1540 = vadd.f32 %v1539, %v1469
  %v1541 = vadd.f32 %v1540, %v1472
  %v1542 = vadd.f32 %v1541, %v1477
  %v1543 = vadd.f32 %v1542, %v1480
  %v1544 = vadd.f32 %v1543, %v1485
  %v1545 = vadd.f32 %v1544, %v1488
  %v1546 = vadd.f32 %v1545, %v1493
  %v1547 = vadd.f32 %v1546, %v1496
  %v1548 = vadd.f32 %v1547, %v1501
  %v1549 = vadd.f32 %v1548, %v1504
  %v1550 = vadd.f32 %v1549, %v1509
  %v1551 = vadd.f32 %v1550, %v1512
  %v1552 = vadd.f32 %v1551, %v1517
  %v1553 = vadd.f32 %v1552, %v1520
  %v1554 = vrot.slane %v1553, 4
  %v1555 = vadd.f32 %v1553, %v1554
  %v1556 = vrot.slane %v1555, 2
  %v1557 = vadd.f32 %v1555, %v1556
  %v1558 = vrot.slane %v1557, 1
  %v1559 = vadd.f32 %v1557, %v1558
  %v1560 = vmul.f32 %v1461, %v1461
  %v1561 = vmul.f32 %v1464, %v1464
  %v1562 = vmul.f32 %v1469, %v1469
  %v1563 = vmul.f32 %v1472, %v1472
  %v1564 = vmul.f32 %v1477, %v1477
  %v1565 = vmul.f32 %v1480, %v1480
  %v1566 = vmul.f32 %v1485, %v1485
  %v1567 = vmul.f32 %v1488, %v1488
  %v1568 = vmul.f32 %v1493, %v1493
  %v1569 = vmul.f32 %v1496, %v1496
  %v1570 = vmul.f32 %v1501, %v1501
  %v1571 = vmul.f32 %v1504, %v1504
  %v1572 = vmul.f32 %v1509, %v1509
  %v1573 = vmul.f32 %v1512, %v1512
  %v1574 = vmul.f32 %v1517, %v1517
  %v1575 = vmul.f32 %v1520, %v1520
  %v1576 = vadd.f32 %v1560, %v1561
  %v1577 = vadd.f32 %v1576, %v1562
  %v1578 = vadd.f32 %v1577, %v1563
  %v1579 = vadd.f32 %v1578, %v1564
  %v1580 = vadd.f32 %v1579, %v1565
  %v1581 = vadd.f32 %v1580, %v1566
  %v1582 = vadd.f32 %v1581, %v1567
  %v1583 = vadd.f32 %v1582, %v1568
  %v1584 = vadd.f32 %v1583, %v1569
  %v1585 = vadd.f32 %v1584, %v1570
  %v1586 = vadd.f32 %v1585, %v1571
  %v1587 = vadd.f32 %v1586, %v1572
  %v1588 = vadd.f32 %v1587, %v1573
  %v1589 = vadd.f32 %v1588, %v1574
  %v1590 = vadd.f32 %v1589, %v1575
  %v1591 = vrot.slane %v1590, 4
  %v1592 = vadd.f32 %v1590, %v1591
  %v1593 = vrot.slane %v1592, 2
  %v1594 = vadd.f32 %v1592, %v1593
  %v1595 = vrot.slane %v1594, 1
  %v1596 = vadd.f32 %v1594, %v1595
  %vm1597 = vcmask 1040384
  %v1598 = vsel %vm1597, %v1559, %v1596
  %1599 = vst [vmem:[%s3] sm:$0x3] %v1598
  // Predicated region
  $region10: #{basic_block_forward.6} parent=0 // pred_check
    _
  $region11: #{basic_block_forward.6} parent=0 // pred_check_branch
    %1601 = sbr.rel (0) target = $region13
  $region12: #{basic_block_forward.6} parent=0 // pred_region
    _
  $region13: #{basic_block_forward.6} parent=0 // pred_fallthru
    _
  // Predicated region
  $region14: #{basic_block_forward.6} parent=0 // pred_check
    _
  $region15: #{basic_block_forward.6} parent=0 // pred_check_branch
    %1603 = sbr.rel (0) target = $region17
  $region16: #{basic_block_forward.6} parent=0 // pred_region
    _
  $region17: #{basic_block_forward.6} parent=0 // pred_fallthru
    _
  // Predicated region
  $region18: #{basic_block_forward.6} parent=0 // pred_check
    _
  $region19: #{basic_block_forward.6} parent=0 // pred_check_branch
    %1605 = sbr.rel (0) target = $region21
  $region20: #{basic_block_forward.6} parent=0 // pred_region
    _
  $region21: #{basic_block_forward.6} parent=0 // pred_fallthru
    _
  // Predicated region
  $region22: #{basic_block_forward.6} parent=0 // pred_check
    _
  $region23: #{basic_block_forward.6} parent=0 // pred_check_branch
    %1607 = sbr.rel (0) target = $region25
  $region24: #{basic_block_forward.6} parent=0 // pred_region
    _
  $region25: #{basic_block_forward.6} parent=0 // pred_fallthru
    _

</llo_original>
